<compile_context>
chip_gen: v6e
topology: v6e:2x2x1
jax: 0.10.0
libtpu: 0.0.40
codegen_flags: <defaults>
</compile_context>

<pallas_src>
import functools

import jax
import jax.numpy as jnp
from jax import lax
from jax.experimental import pallas as pl
from jax.experimental.pallas import tpu as pltpu


# ----------------------------------------------------------------------------
# Fused decoder kernel (built as a closure over the static configuration)
# ----------------------------------------------------------------------------
def _make_decoder_kernel(*, B, T, Te, H, n_layers, dict_pad, residual, use_attention):
    TB = T * B

    def kernel(*refs):
        tok_ref, emb_ref, h0_ref, c0_ref = refs[:4]
        layer_refs = [refs[4 + 3 * l: 4 + 3 * (l + 1)] for l in range(n_layers)]
        base = 4 + 3 * n_layers
        wc_ref, wx_ref, ba_ref, wout_ref, bout_ref, enc_ref = refs[base:base + 6]
        probs_ref, h_ref, c_ref, attn_ref = refs[base + 6:base + 10]
        f32 = jnp.float32

        # ---- embedding: one-hot @ table (one small MXU GEMM, no serial gathers) ----
        tok = tok_ref[...]                                              # (T*B, 1) int32, time-major rows
        vocab_iota = lax.broadcasted_iota(jnp.int32, (TB, dict_pad), 1)
        onehot = (vocab_iota == tok).astype(f32)                        # (T*B, dict_pad)
        x = jnp.dot(onehot, emb_ref[...], preferred_element_type=f32)   # (T*B, H), row = t*B + b

        h = h0_ref[...]
        c = c0_ref[...]

        # ---- stacked LSTM layers; time loop fully unrolled in-kernel ----
        for l in range(n_layers):
            wih_ref, whh_ref, bg_ref = layer_refs[l]
            prev = x
            # hoisted input projection: one GEMM covers every timestep
            pre = jnp.dot(x, wih_ref[...], preferred_element_type=f32) + bg_ref[...]  # (T*B, 4H)
            w_hh = whh_ref[...]
            ys = []
            for t in range(T):
                g = pre[t * B:(t + 1) * B, :] + jnp.dot(h, w_hh, preferred_element_type=f32)  # (B, 4H)
                sig = jax.nn.sigmoid(g[:, :3 * H])           # gates [i | f | o] in one shot
                i_g = sig[:, 0 * H:1 * H]
                f_g = sig[:, 1 * H:2 * H]
                o_g = sig[:, 2 * H:3 * H]
                g_g = jnp.tanh(g[:, 3 * H:4 * H])            # gate g
                c = f_g * c + i_g * g_g
                h = o_g * jnp.tanh(c)
                ys.append(h)
            y = jnp.concatenate(ys, axis=0)                  # (T*B, H) time-major
            x = y + prev if residual else y
            # here h == y[:, -1] (pre-residual) and c == final cell: exactly the
            # state the reference threads into the next stacked layer.

        # ---- single time-major -> batch-major row shuffle; all later GEMMs are flat ----
        xb = jnp.concatenate(
            [x[t * B + b: t * B + b + 1, :] for b in range(B) for t in range(T)],
            axis=0)                                          # (B*T, H), row = b*T + t

        if use_attention:
            ctx_rows = []
            for b in range(B):
                x_b = xb[b * T:(b + 1) * T, :]               # (T, H)  (tile-aligned slice)
                enc_b = enc_ref[b]                           # (Te, H)
                scores = lax.dot_general(x_b, enc_b, (((1,), (1,)), ((), ())),
                                         preferred_element_type=f32)   # (T, Te)
                attn_b = jax.nn.softmax(scores, axis=-1)
                attn_ref[b] = attn_b
                ctx_rows.append(jnp.dot(attn_b, enc_b, preferred_element_type=f32))  # (T, H)
            ctx = jnp.concatenate(ctx_rows, axis=0)          # (B*T, H)
            # tanh(attn_linear(cat([ctx, x], -1))) with the weight split to avoid concat
            feat = jnp.tanh(jnp.dot(ctx, wc_ref[...], preferred_element_type=f32)
                            + jnp.dot(xb, wx_ref[...], preferred_element_type=f32)
                            + ba_ref[...])
        else:
            attn_ref[...] = jnp.zeros_like(attn_ref)
            feat = xb

        # ---- vocab projection; output padded to 128 lanes -> unmasked full store ----
        probs_ref[...] = (jnp.dot(feat, wout_ref[...], preferred_element_type=f32)
                          + bout_ref[...])
        h_ref[...] = h
        c_ref[...] = c

    return kernel


def _full_spec(shape):
    nd = len(shape)
    return pl.BlockSpec(tuple(shape), lambda i, _nd=nd: (0,) * _nd)


# ----------------------------------------------------------------------------
# Wrapper: full LSTMDecoder.forward in a single pallas_call
# ----------------------------------------------------------------------------
@functools.partial(jax.jit, static_argnames=("residual", "use_attention"))
def lstm_decoder_forward(params, tokens, encoder_c, encoder_out,
                         residual=True, use_attention=True):
    h0, c0 = encoder_c                                   # (B, H), (B, H)
    B, T = tokens.shape
    H = h0.shape[-1]
    Te = encoder_out.shape[0]
    n_layers = len(params["lstm"])
    dict_size = params["w_out"].shape[1]

    dict_pad = ((params["embed"].shape[0] + 7) // 8) * 8       # sublane-aligned embed rows
    d_out_pad = ((dict_size + 127) // 128) * 128               # lane-dense logits

    emb_p = jnp.zeros((dict_pad, H), jnp.float32).at[:params["embed"].shape[0], :].set(params["embed"])
    wout_p = jnp.zeros((H, d_out_pad), jnp.float32).at[:, :dict_size].set(params["w_out"])
    bout_p = jnp.zeros((1, d_out_pad), jnp.float32).at[:, :dict_size].set(params["b_out"])

    enc_bth = jnp.transpose(encoder_out, (1, 0, 2))            # == encoder_out.transpose(0, 1)
    tok_tm = jnp.transpose(tokens.astype(jnp.int32), (1, 0)).reshape(T * B, 1)  # row = t*B + b

    inputs = [tok_tm, emb_p, h0.astype(jnp.float32), c0.astype(jnp.float32)]
    for lyr in params["lstm"]:
        inputs += [lyr["w_ih"], lyr["w_hh"], lyr["b"]]
    inputs += [params["w_ctx"], params["w_x"], params["b_a"], wout_p, bout_p, enc_bth]

    out_shape = (jax.ShapeDtypeStruct((B * T, d_out_pad), jnp.float32),   # logits (lane-dense)
                 jax.ShapeDtypeStruct((B, H), jnp.float32),               # h
                 jax.ShapeDtypeStruct((B, H), jnp.float32),               # c
                 jax.ShapeDtypeStruct((B, T, Te), jnp.float32))           # attention weights

    kernel = _make_decoder_kernel(B=B, T=T, Te=Te, H=H, n_layers=n_layers,
                                  dict_pad=dict_pad, residual=residual,
                                  use_attention=use_attention)

    probs_p, h, c, attn = pl.pallas_call(
        kernel,
        out_shape=out_shape,
        grid_spec=pltpu.PrefetchScalarGridSpec(
            num_scalar_prefetch=0,
            grid=(1,),
            in_specs=[_full_spec(a.shape) for a in inputs],
            out_specs=[_full_spec(s.shape) for s in out_shape],
        ),
        compiler_params=pltpu.CompilerParams(dimension_semantics=("arbitrary",)),
    )(*inputs)

    probs = probs_p.reshape(B, T, d_out_pad)[:, :, :dict_size]
    return probs, (h, c), (attn if use_attention else None)


# ----------------------------------------------------------------------------
# Pure-JAX reference (same parameter convention) for a numerical sanity check
# ----------------------------------------------------------------------------
def reference_forward(params, tokens, encoder_c, encoder_out,
                      residual=True, use_attention=True):
    hi = jax.lax.Precision.HIGHEST
    h, c = encoder_c
    enc = jnp.transpose(encoder_out, (1, 0, 2))                  # (B, Te, H)
    x = jnp.take(params["embed"], tokens, axis=0)                # (B, T, H)
    B, T, H = x.shape
    for lyr in params["lstm"]:
        prev = x
        pre = jnp.einsum("bth,hg->btg", x, lyr["w_ih"], precision=hi) + lyr["b"]
        ys = []
        for t in range(T):
            g = pre[:, t, :] + jnp.dot(h, lyr["w_hh"], precision=hi)
            sig = jax.nn.sigmoid(g[:, :3 * H])
            i_g, f_g, o_g = sig[:, :H], sig[:, H:2 * H], sig[:, 2 * H:]
            g_g = jnp.tanh(g[:, 3 * H:])
            c = f_g * c + i_g * g_g
            h = o_g * jnp.tanh(c)
            ys.append(h)
        y = jnp.stack(ys, axis=1)                                # (B, T, H)
        x = y + prev if residual else y
    if use_attention:
        scores = jnp.einsum("bth,beh->bte", x, enc, precision=hi)
        attn = jax.nn.softmax(scores, axis=-1)
        ctx = jnp.einsum("bte,beh->bth", attn, enc, precision=hi)
        x = jnp.tanh(jnp.einsum("bth,hk->btk", ctx, params["w_ctx"], precision=hi)
                     + jnp.einsum("bth,hk->btk", x, params["w_x"], precision=hi)
                     + params["b_a"])
    else:
        attn = None
    probs = jnp.einsum("bth,hd->btd", x, params["w_out"], precision=hi) + params["b_out"]
    return probs, (h, c), attn


# ----------------------------------------------------------------------------
# Parameter init (gate column order convention: [i | f | o | g])
# ----------------------------------------------------------------------------
def init_params(key, dict_size, hidden, n_layers):
    ks = jax.random.split(key, 4 + n_layers)
    s = 1.0 / jnp.sqrt(hidden)
    p = {
        "embed": jax.random.uniform(ks[0], (dict_size, hidden), jnp.float32, -s, s),
        "w_ctx": jax.random.uniform(ks[1], (hidden, hidden), jnp.float32, -s, s),
        "w_x": jax.random.uniform(ks[2], (hidden, hidden), jnp.float32, -s, s),
        "b_a": jnp.zeros((1, hidden), jnp.float32),
        "w_out": jax.random.uniform(ks[3], (hidden, dict_size), jnp.float32, -s, s),
        "b_out": jnp.zeros((1, dict_size), jnp.float32),
        "lstm": [],
    }
    for l in range(n_layers):
        kih, khh, kb, _ = jax.random.split(ks[4 + l], 4)
        p["lstm"].append({
            "w_ih": jax.random.uniform(kih, (hidden, 4 * hidden), jnp.float32, -s, s),
            "w_hh": jax.random.uniform(khh, (hidden, 4 * hidden), jnp.float32, -s, s),
            "b": jax.random.uniform(kb, (1, 4 * hidden), jnp.float32, -s, s),
        })
    return p


if __name__ == "__main__":
    DICT, H, N_LAYERS = 60, 64, 2
    B, T_DEC, T_ENC = 2, 8, 8

    key = jax.random.PRNGKey(0)
    k_par, k_tok, k_h, k_c, k_enc = jax.random.split(key, 5)

    params = init_params(k_par, DICT, H, N_LAYERS)
    tokens = jax.random.randint(k_tok, (B, T_DEC), 0, DICT, dtype=jnp.int32)
    h0 = jax.random.normal(k_h, (B, H), jnp.float32) * 0.1
    c0 = jax.random.normal(k_c, (B, H), jnp.float32) * 0.1
    encoder_out = jax.random.normal(k_enc, (T_ENC, B, H), jnp.float32) * 0.1

    probs, (h, c), attn = lstm_decoder_forward(params, tokens, (h0, c0), encoder_out)
    jax.block_until_ready((probs, h, c, attn))

    assert probs.shape == (B, T_DEC, DICT)
    assert h.shape == (B, H) and c.shape == (B, H)
    assert attn.shape == (B, T_DEC, T_ENC)

    # sanity check vs a pure-JAX transliteration of the same forward pass
    probs_r, (h_r, c_r), attn_r = reference_forward(params, tokens, (h0, c0), encoder_out)
    for got, ref in ((probs, probs_r), (h, h_r), (c, c_r), (attn, attn_r)):
        err = float(jnp.max(jnp.abs(got - ref)))
        assert err < 5e-2, f"mismatch vs reference: {err}"

    print("KERNEL_OK")
</pallas_src>

<mosaic_0001>
module attributes {stable_mosaic.version = 11 : i64} {
  func.func @kernel(%arg0: i32, %arg1: memref<16x1xi32, #tpu.memory_space<vmem>>, %arg2: memref<64x64xf32, #tpu.memory_space<vmem>>, %arg3: memref<2x64xf32, #tpu.memory_space<vmem>>, %arg4: memref<2x64xf32, #tpu.memory_space<vmem>>, %arg5: memref<64x256xf32, #tpu.memory_space<vmem>>, %arg6: memref<64x256xf32, #tpu.memory_space<vmem>>, %arg7: memref<1x256xf32, #tpu.memory_space<vmem>>, %arg8: memref<64x256xf32, #tpu.memory_space<vmem>>, %arg9: memref<64x256xf32, #tpu.memory_space<vmem>>, %arg10: memref<1x256xf32, #tpu.memory_space<vmem>>, %arg11: memref<64x64xf32, #tpu.memory_space<vmem>>, %arg12: memref<64x64xf32, #tpu.memory_space<vmem>>, %arg13: memref<1x64xf32, #tpu.memory_space<vmem>>, %arg14: memref<64x128xf32, #tpu.memory_space<vmem>>, %arg15: memref<1x128xf32, #tpu.memory_space<vmem>>, %arg16: memref<2x8x64xf32, #tpu.memory_space<vmem>>, %arg17: memref<16x128xf32, #tpu.memory_space<vmem>>, %arg18: memref<2x64xf32, #tpu.memory_space<vmem>>, %arg19: memref<2x64xf32, #tpu.memory_space<vmem>>, %arg20: memref<2x8x8xf32, #tpu.memory_space<vmem>>) attributes {dimension_semantics = [#tpu.dimension_semantics<arbitrary>], iteration_bounds = array<i64: 1>, scalar_prefetch = 0 : i64, scratch_operands = 0 : i64, tpu.core_type = #tpu.core_type<tc>, window_params = [{pipeline_mode = #tpu.pipeline_mode<synchronous>, transform_indices = @transform_0, window_bounds = array<i64: 16, 1>}, {pipeline_mode = #tpu.pipeline_mode<synchronous>, transform_indices = @transform_1, window_bounds = array<i64: 64, 64>}, {pipeline_mode = #tpu.pipeline_mode<synchronous>, transform_indices = @transform_2, window_bounds = array<i64: 2, 64>}, {pipeline_mode = #tpu.pipeline_mode<synchronous>, transform_indices = @transform_3, window_bounds = array<i64: 2, 64>}, {pipeline_mode = #tpu.pipeline_mode<synchronous>, transform_indices = @transform_4, window_bounds = array<i64: 64, 256>}, {pipeline_mode = #tpu.pipeline_mode<synchronous>, transform_indices = @transform_5, window_bounds = array<i64: 64, 256>}, {pipeline_mode = #tpu.pipeline_mode<synchronous>, transform_indices = @transform_6, window_bounds = array<i64: 1, 256>}, {pipeline_mode = #tpu.pipeline_mode<synchronous>, transform_indices = @transform_7, window_bounds = array<i64: 64, 256>}, {pipeline_mode = #tpu.pipeline_mode<synchronous>, transform_indices = @transform_8, window_bounds = array<i64: 64, 256>}, {pipeline_mode = #tpu.pipeline_mode<synchronous>, transform_indices = @transform_9, window_bounds = array<i64: 1, 256>}, {pipeline_mode = #tpu.pipeline_mode<synchronous>, transform_indices = @transform_10, window_bounds = array<i64: 64, 64>}, {pipeline_mode = #tpu.pipeline_mode<synchronous>, transform_indices = @transform_11, window_bounds = array<i64: 64, 64>}, {pipeline_mode = #tpu.pipeline_mode<synchronous>, transform_indices = @transform_12, window_bounds = array<i64: 1, 64>}, {pipeline_mode = #tpu.pipeline_mode<synchronous>, transform_indices = @transform_13, window_bounds = array<i64: 64, 128>}, {pipeline_mode = #tpu.pipeline_mode<synchronous>, transform_indices = @transform_14, window_bounds = array<i64: 1, 128>}, {pipeline_mode = #tpu.pipeline_mode<synchronous>, transform_indices = @transform_15, window_bounds = array<i64: 2, 8, 64>}, {pipeline_mode = #tpu.pipeline_mode<synchronous>, transform_indices = @transform_16, window_bounds = array<i64: 16, 128>}, {pipeline_mode = #tpu.pipeline_mode<synchronous>, transform_indices = @transform_17, window_bounds = array<i64: 2, 64>}, {pipeline_mode = #tpu.pipeline_mode<synchronous>, transform_indices = @transform_18, window_bounds = array<i64: 2, 64>}, {pipeline_mode = #tpu.pipeline_mode<synchronous>, transform_indices = @transform_19, window_bounds = array<i64: 2, 8, 8>}]} {
    %c0 = arith.constant 0 : index
    %c0_0 = arith.constant 0 : index
    %0 = vector.load %arg1[%c0, %c0_0] : memref<16x1xi32, #tpu.memory_space<vmem>>, vector<16x1xi32>
    %1 = tpu.iota {dimensions = array<i32: 1>} : vector<16x64xi32>
    %2 = vector.broadcast %0 : vector<16x1xi32> to vector<16x64xi32>
    %3 = arith.cmpi eq, %1, %2 : vector<16x64xi32>
    %4 = arith.extui %3 : vector<16x64xi1> to vector<16x64xi32>
    %5 = arith.sitofp %4 : vector<16x64xi32> to vector<16x64xf32>
    %c0_1 = arith.constant 0 : index
    %c0_2 = arith.constant 0 : index
    %6 = vector.load %arg2[%c0_1, %c0_2] : memref<64x64xf32, #tpu.memory_space<vmem>>, vector<64x64xf32>
    %cst = arith.constant dense<0.000000e+00> : vector<16x64xf32>
    %7 = tpu.matmul %5, %6, %cst {dimension_numbers = #tpu.dot_dimension_numbers<[1], [0], [0], [1], [0, 0, 1, 1], [], []>} : vector<16x64xf32>, vector<64x64xf32>, vector<16x64xf32> -> vector<16x64xf32>
    %c0_3 = arith.constant 0 : index
    %c0_4 = arith.constant 0 : index
    %8 = vector.load %arg3[%c0_3, %c0_4] : memref<2x64xf32, #tpu.memory_space<vmem>>, vector<2x64xf32>
    %c0_5 = arith.constant 0 : index
    %c0_6 = arith.constant 0 : index
    %9 = vector.load %arg4[%c0_5, %c0_6] : memref<2x64xf32, #tpu.memory_space<vmem>>, vector<2x64xf32>
    %c0_7 = arith.constant 0 : index
    %c0_8 = arith.constant 0 : index
    %10 = vector.load %arg5[%c0_7, %c0_8] : memref<64x256xf32, #tpu.memory_space<vmem>>, vector<64x256xf32>
    %cst_9 = arith.constant dense<0.000000e+00> : vector<16x256xf32>
    %11 = tpu.matmul %7, %10, %cst_9 {dimension_numbers = #tpu.dot_dimension_numbers<[1], [0], [0], [1], [0, 0, 1, 1], [], []>} : vector<16x64xf32>, vector<64x256xf32>, vector<16x256xf32> -> vector<16x256xf32>
    %c0_10 = arith.constant 0 : index
    %c0_11 = arith.constant 0 : index
    %12 = vector.load %arg7[%c0_10, %c0_11] : memref<1x256xf32, #tpu.memory_space<vmem>>, vector<1x256xf32>
    %13 = vector.broadcast %12 : vector<1x256xf32> to vector<16x256xf32>
    %14 = arith.addf %11, %13 : vector<16x256xf32>
    %c0_12 = arith.constant 0 : index
    %c0_13 = arith.constant 0 : index
    %15 = vector.load %arg6[%c0_12, %c0_13] : memref<64x256xf32, #tpu.memory_space<vmem>>, vector<64x256xf32>
    %16 = vector.extract_strided_slice %14 {offsets = [0, 0], sizes = [2, 256], strides = [1, 1]} : vector<16x256xf32> to vector<2x256xf32>
    %cst_14 = arith.constant dense<0.000000e+00> : vector<2x256xf32>
    %17 = tpu.matmul %8, %15, %cst_14 {dimension_numbers = #tpu.dot_dimension_numbers<[1], [0], [0], [1], [0, 0, 1, 1], [], []>} : vector<2x64xf32>, vector<64x256xf32>, vector<2x256xf32> -> vector<2x256xf32>
    %18 = arith.addf %16, %17 : vector<2x256xf32>
    %19 = vector.extract_strided_slice %18 {offsets = [0, 0], sizes = [2, 192], strides = [1, 1]} : vector<2x256xf32> to vector<2x192xf32>
    %20 = arith.negf %19 : vector<2x192xf32>
    %21 = math.exp %20 : vector<2x192xf32>
    %cst_15 = arith.constant 1.000000e+00 : f32
    %22 = vector.broadcast %cst_15 : f32 to vector<2x192xf32>
    %23 = arith.addf %22, %21 : vector<2x192xf32>
    %24 = arith.divf %22, %23 : vector<2x192xf32>
    %25 = vector.extract_strided_slice %24 {offsets = [0, 0], sizes = [2, 64], strides = [1, 1]} : vector<2x192xf32> to vector<2x64xf32>
    %26 = vector.extract_strided_slice %24 {offsets = [0, 64], sizes = [2, 64], strides = [1, 1]} : vector<2x192xf32> to vector<2x64xf32>
    %27 = vector.extract_strided_slice %24 {offsets = [0, 128], sizes = [2, 64], strides = [1, 1]} : vector<2x192xf32> to vector<2x64xf32>
    %28 = vector.extract_strided_slice %18 {offsets = [0, 192], sizes = [2, 64], strides = [1, 1]} : vector<2x256xf32> to vector<2x64xf32>
    %29 = math.tanh %28 : vector<2x64xf32>
    %30 = arith.mulf %26, %9 : vector<2x64xf32>
    %31 = arith.mulf %25, %29 : vector<2x64xf32>
    %32 = arith.addf %30, %31 : vector<2x64xf32>
    %33 = math.tanh %32 : vector<2x64xf32>
    %34 = arith.mulf %27, %33 : vector<2x64xf32>
    %35 = vector.extract_strided_slice %14 {offsets = [2, 0], sizes = [2, 256], strides = [1, 1]} : vector<16x256xf32> to vector<2x256xf32>
    %cst_16 = arith.constant dense<0.000000e+00> : vector<2x256xf32>
    %36 = tpu.matmul %34, %15, %cst_16 {dimension_numbers = #tpu.dot_dimension_numbers<[1], [0], [0], [1], [0, 0, 1, 1], [], []>} : vector<2x64xf32>, vector<64x256xf32>, vector<2x256xf32> -> vector<2x256xf32>
    %37 = arith.addf %35, %36 : vector<2x256xf32>
    %38 = vector.extract_strided_slice %37 {offsets = [0, 0], sizes = [2, 192], strides = [1, 1]} : vector<2x256xf32> to vector<2x192xf32>
    %39 = arith.negf %38 : vector<2x192xf32>
    %40 = math.exp %39 : vector<2x192xf32>
    %cst_17 = arith.constant 1.000000e+00 : f32
    %41 = vector.broadcast %cst_17 : f32 to vector<2x192xf32>
    %42 = arith.addf %41, %40 : vector<2x192xf32>
    %43 = arith.divf %41, %42 : vector<2x192xf32>
    %44 = vector.extract_strided_slice %43 {offsets = [0, 0], sizes = [2, 64], strides = [1, 1]} : vector<2x192xf32> to vector<2x64xf32>
    %45 = vector.extract_strided_slice %43 {offsets = [0, 64], sizes = [2, 64], strides = [1, 1]} : vector<2x192xf32> to vector<2x64xf32>
    %46 = vector.extract_strided_slice %43 {offsets = [0, 128], sizes = [2, 64], strides = [1, 1]} : vector<2x192xf32> to vector<2x64xf32>
    %47 = vector.extract_strided_slice %37 {offsets = [0, 192], sizes = [2, 64], strides = [1, 1]} : vector<2x256xf32> to vector<2x64xf32>
    %48 = math.tanh %47 : vector<2x64xf32>
    %49 = arith.mulf %45, %32 : vector<2x64xf32>
    %50 = arith.mulf %44, %48 : vector<2x64xf32>
    %51 = arith.addf %49, %50 : vector<2x64xf32>
    %52 = math.tanh %51 : vector<2x64xf32>
    %53 = arith.mulf %46, %52 : vector<2x64xf32>
    %54 = vector.extract_strided_slice %14 {offsets = [4, 0], sizes = [2, 256], strides = [1, 1]} : vector<16x256xf32> to vector<2x256xf32>
    %cst_18 = arith.constant dense<0.000000e+00> : vector<2x256xf32>
    %55 = tpu.matmul %53, %15, %cst_18 {dimension_numbers = #tpu.dot_dimension_numbers<[1], [0], [0], [1], [0, 0, 1, 1], [], []>} : vector<2x64xf32>, vector<64x256xf32>, vector<2x256xf32> -> vector<2x256xf32>
    %56 = arith.addf %54, %55 : vector<2x256xf32>
    %57 = vector.extract_strided_slice %56 {offsets = [0, 0], sizes = [2, 192], strides = [1, 1]} : vector<2x256xf32> to vector<2x192xf32>
    %58 = arith.negf %57 : vector<2x192xf32>
    %59 = math.exp %58 : vector<2x192xf32>
    %cst_19 = arith.constant 1.000000e+00 : f32
    %60 = vector.broadcast %cst_19 : f32 to vector<2x192xf32>
    %61 = arith.addf %60, %59 : vector<2x192xf32>
    %62 = arith.divf %60, %61 : vector<2x192xf32>
    %63 = vector.extract_strided_slice %62 {offsets = [0, 0], sizes = [2, 64], strides = [1, 1]} : vector<2x192xf32> to vector<2x64xf32>
    %64 = vector.extract_strided_slice %62 {offsets = [0, 64], sizes = [2, 64], strides = [1, 1]} : vector<2x192xf32> to vector<2x64xf32>
    %65 = vector.extract_strided_slice %62 {offsets = [0, 128], sizes = [2, 64], strides = [1, 1]} : vector<2x192xf32> to vector<2x64xf32>
    %66 = vector.extract_strided_slice %56 {offsets = [0, 192], sizes = [2, 64], strides = [1, 1]} : vector<2x256xf32> to vector<2x64xf32>
    %67 = math.tanh %66 : vector<2x64xf32>
    %68 = arith.mulf %64, %51 : vector<2x64xf32>
    %69 = arith.mulf %63, %67 : vector<2x64xf32>
    %70 = arith.addf %68, %69 : vector<2x64xf32>
    %71 = math.tanh %70 : vector<2x64xf32>
    %72 = arith.mulf %65, %71 : vector<2x64xf32>
    %73 = vector.extract_strided_slice %14 {offsets = [6, 0], sizes = [2, 256], strides = [1, 1]} : vector<16x256xf32> to vector<2x256xf32>
    %cst_20 = arith.constant dense<0.000000e+00> : vector<2x256xf32>
    %74 = tpu.matmul %72, %15, %cst_20 {dimension_numbers = #tpu.dot_dimension_numbers<[1], [0], [0], [1], [0, 0, 1, 1], [], []>} : vector<2x64xf32>, vector<64x256xf32>, vector<2x256xf32> -> vector<2x256xf32>
    %75 = arith.addf %73, %74 : vector<2x256xf32>
    %76 = vector.extract_strided_slice %75 {offsets = [0, 0], sizes = [2, 192], strides = [1, 1]} : vector<2x256xf32> to vector<2x192xf32>
    %77 = arith.negf %76 : vector<2x192xf32>
    %78 = math.exp %77 : vector<2x192xf32>
    %cst_21 = arith.constant 1.000000e+00 : f32
    %79 = vector.broadcast %cst_21 : f32 to vector<2x192xf32>
    %80 = arith.addf %79, %78 : vector<2x192xf32>
    %81 = arith.divf %79, %80 : vector<2x192xf32>
    %82 = vector.extract_strided_slice %81 {offsets = [0, 0], sizes = [2, 64], strides = [1, 1]} : vector<2x192xf32> to vector<2x64xf32>
    %83 = vector.extract_strided_slice %81 {offsets = [0, 64], sizes = [2, 64], strides = [1, 1]} : vector<2x192xf32> to vector<2x64xf32>
    %84 = vector.extract_strided_slice %81 {offsets = [0, 128], sizes = [2, 64], strides = [1, 1]} : vector<2x192xf32> to vector<2x64xf32>
    %85 = vector.extract_strided_slice %75 {offsets = [0, 192], sizes = [2, 64], strides = [1, 1]} : vector<2x256xf32> to vector<2x64xf32>
    %86 = math.tanh %85 : vector<2x64xf32>
    %87 = arith.mulf %83, %70 : vector<2x64xf32>
    %88 = arith.mulf %82, %86 : vector<2x64xf32>
    %89 = arith.addf %87, %88 : vector<2x64xf32>
    %90 = math.tanh %89 : vector<2x64xf32>
    %91 = arith.mulf %84, %90 : vector<2x64xf32>
    %92 = vector.extract_strided_slice %14 {offsets = [8, 0], sizes = [2, 256], strides = [1, 1]} : vector<16x256xf32> to vector<2x256xf32>
    %cst_22 = arith.constant dense<0.000000e+00> : vector<2x256xf32>
    %93 = tpu.matmul %91, %15, %cst_22 {dimension_numbers = #tpu.dot_dimension_numbers<[1], [0], [0], [1], [0, 0, 1, 1], [], []>} : vector<2x64xf32>, vector<64x256xf32>, vector<2x256xf32> -> vector<2x256xf32>
    %94 = arith.addf %92, %93 : vector<2x256xf32>
    %95 = vector.extract_strided_slice %94 {offsets = [0, 0], sizes = [2, 192], strides = [1, 1]} : vector<2x256xf32> to vector<2x192xf32>
    %96 = arith.negf %95 : vector<2x192xf32>
    %97 = math.exp %96 : vector<2x192xf32>
    %cst_23 = arith.constant 1.000000e+00 : f32
    %98 = vector.broadcast %cst_23 : f32 to vector<2x192xf32>
    %99 = arith.addf %98, %97 : vector<2x192xf32>
    %100 = arith.divf %98, %99 : vector<2x192xf32>
    %101 = vector.extract_strided_slice %100 {offsets = [0, 0], sizes = [2, 64], strides = [1, 1]} : vector<2x192xf32> to vector<2x64xf32>
    %102 = vector.extract_strided_slice %100 {offsets = [0, 64], sizes = [2, 64], strides = [1, 1]} : vector<2x192xf32> to vector<2x64xf32>
    %103 = vector.extract_strided_slice %100 {offsets = [0, 128], sizes = [2, 64], strides = [1, 1]} : vector<2x192xf32> to vector<2x64xf32>
    %104 = vector.extract_strided_slice %94 {offsets = [0, 192], sizes = [2, 64], strides = [1, 1]} : vector<2x256xf32> to vector<2x64xf32>
    %105 = math.tanh %104 : vector<2x64xf32>
    %106 = arith.mulf %102, %89 : vector<2x64xf32>
    %107 = arith.mulf %101, %105 : vector<2x64xf32>
    %108 = arith.addf %106, %107 : vector<2x64xf32>
    %109 = math.tanh %108 : vector<2x64xf32>
    %110 = arith.mulf %103, %109 : vector<2x64xf32>
    %111 = vector.extract_strided_slice %14 {offsets = [10, 0], sizes = [2, 256], strides = [1, 1]} : vector<16x256xf32> to vector<2x256xf32>
    %cst_24 = arith.constant dense<0.000000e+00> : vector<2x256xf32>
    %112 = tpu.matmul %110, %15, %cst_24 {dimension_numbers = #tpu.dot_dimension_numbers<[1], [0], [0], [1], [0, 0, 1, 1], [], []>} : vector<2x64xf32>, vector<64x256xf32>, vector<2x256xf32> -> vector<2x256xf32>
    %113 = arith.addf %111, %112 : vector<2x256xf32>
    %114 = vector.extract_strided_slice %113 {offsets = [0, 0], sizes = [2, 192], strides = [1, 1]} : vector<2x256xf32> to vector<2x192xf32>
    %115 = arith.negf %114 : vector<2x192xf32>
    %116 = math.exp %115 : vector<2x192xf32>
    %cst_25 = arith.constant 1.000000e+00 : f32
    %117 = vector.broadcast %cst_25 : f32 to vector<2x192xf32>
    %118 = arith.addf %117, %116 : vector<2x192xf32>
    %119 = arith.divf %117, %118 : vector<2x192xf32>
    %120 = vector.extract_strided_slice %119 {offsets = [0, 0], sizes = [2, 64], strides = [1, 1]} : vector<2x192xf32> to vector<2x64xf32>
    %121 = vector.extract_strided_slice %119 {offsets = [0, 64], sizes = [2, 64], strides = [1, 1]} : vector<2x192xf32> to vector<2x64xf32>
    %122 = vector.extract_strided_slice %119 {offsets = [0, 128], sizes = [2, 64], strides = [1, 1]} : vector<2x192xf32> to vector<2x64xf32>
    %123 = vector.extract_strided_slice %113 {offsets = [0, 192], sizes = [2, 64], strides = [1, 1]} : vector<2x256xf32> to vector<2x64xf32>
    %124 = math.tanh %123 : vector<2x64xf32>
    %125 = arith.mulf %121, %108 : vector<2x64xf32>
    %126 = arith.mulf %120, %124 : vector<2x64xf32>
    %127 = arith.addf %125, %126 : vector<2x64xf32>
    %128 = math.tanh %127 : vector<2x64xf32>
    %129 = arith.mulf %122, %128 : vector<2x64xf32>
    %130 = vector.extract_strided_slice %14 {offsets = [12, 0], sizes = [2, 256], strides = [1, 1]} : vector<16x256xf32> to vector<2x256xf32>
    %cst_26 = arith.constant dense<0.000000e+00> : vector<2x256xf32>
    %131 = tpu.matmul %129, %15, %cst_26 {dimension_numbers = #tpu.dot_dimension_numbers<[1], [0], [0], [1], [0, 0, 1, 1], [], []>} : vector<2x64xf32>, vector<64x256xf32>, vector<2x256xf32> -> vector<2x256xf32>
    %132 = arith.addf %130, %131 : vector<2x256xf32>
    %133 = vector.extract_strided_slice %132 {offsets = [0, 0], sizes = [2, 192], strides = [1, 1]} : vector<2x256xf32> to vector<2x192xf32>
    %134 = arith.negf %133 : vector<2x192xf32>
    %135 = math.exp %134 : vector<2x192xf32>
    %cst_27 = arith.constant 1.000000e+00 : f32
    %136 = vector.broadcast %cst_27 : f32 to vector<2x192xf32>
    %137 = arith.addf %136, %135 : vector<2x192xf32>
    %138 = arith.divf %136, %137 : vector<2x192xf32>
    %139 = vector.extract_strided_slice %138 {offsets = [0, 0], sizes = [2, 64], strides = [1, 1]} : vector<2x192xf32> to vector<2x64xf32>
    %140 = vector.extract_strided_slice %138 {offsets = [0, 64], sizes = [2, 64], strides = [1, 1]} : vector<2x192xf32> to vector<2x64xf32>
    %141 = vector.extract_strided_slice %138 {offsets = [0, 128], sizes = [2, 64], strides = [1, 1]} : vector<2x192xf32> to vector<2x64xf32>
    %142 = vector.extract_strided_slice %132 {offsets = [0, 192], sizes = [2, 64], strides = [1, 1]} : vector<2x256xf32> to vector<2x64xf32>
    %143 = math.tanh %142 : vector<2x64xf32>
    %144 = arith.mulf %140, %127 : vector<2x64xf32>
    %145 = arith.mulf %139, %143 : vector<2x64xf32>
    %146 = arith.addf %144, %145 : vector<2x64xf32>
    %147 = math.tanh %146 : vector<2x64xf32>
    %148 = arith.mulf %141, %147 : vector<2x64xf32>
    %149 = vector.extract_strided_slice %14 {offsets = [14, 0], sizes = [2, 256], strides = [1, 1]} : vector<16x256xf32> to vector<2x256xf32>
    %cst_28 = arith.constant dense<0.000000e+00> : vector<2x256xf32>
    %150 = tpu.matmul %148, %15, %cst_28 {dimension_numbers = #tpu.dot_dimension_numbers<[1], [0], [0], [1], [0, 0, 1, 1], [], []>} : vector<2x64xf32>, vector<64x256xf32>, vector<2x256xf32> -> vector<2x256xf32>
    %151 = arith.addf %149, %150 : vector<2x256xf32>
    %152 = vector.extract_strided_slice %151 {offsets = [0, 0], sizes = [2, 192], strides = [1, 1]} : vector<2x256xf32> to vector<2x192xf32>
    %153 = arith.negf %152 : vector<2x192xf32>
    %154 = math.exp %153 : vector<2x192xf32>
    %cst_29 = arith.constant 1.000000e+00 : f32
    %155 = vector.broadcast %cst_29 : f32 to vector<2x192xf32>
    %156 = arith.addf %155, %154 : vector<2x192xf32>
    %157 = arith.divf %155, %156 : vector<2x192xf32>
    %158 = vector.extract_strided_slice %157 {offsets = [0, 0], sizes = [2, 64], strides = [1, 1]} : vector<2x192xf32> to vector<2x64xf32>
    %159 = vector.extract_strided_slice %157 {offsets = [0, 64], sizes = [2, 64], strides = [1, 1]} : vector<2x192xf32> to vector<2x64xf32>
    %160 = vector.extract_strided_slice %157 {offsets = [0, 128], sizes = [2, 64], strides = [1, 1]} : vector<2x192xf32> to vector<2x64xf32>
    %161 = vector.extract_strided_slice %151 {offsets = [0, 192], sizes = [2, 64], strides = [1, 1]} : vector<2x256xf32> to vector<2x64xf32>
    %162 = math.tanh %161 : vector<2x64xf32>
    %163 = arith.mulf %159, %146 : vector<2x64xf32>
    %164 = arith.mulf %158, %162 : vector<2x64xf32>
    %165 = arith.addf %163, %164 : vector<2x64xf32>
    %166 = math.tanh %165 : vector<2x64xf32>
    %167 = arith.mulf %160, %166 : vector<2x64xf32>
    %168 = tpu.concatenate %34, %53, %72, %91, %110, %129, %148, %167 in 0 : vector<2x64xf32>, vector<2x64xf32>, vector<2x64xf32>, vector<2x64xf32>, vector<2x64xf32>, vector<2x64xf32>, vector<2x64xf32>, vector<2x64xf32> -> vector<16x64xf32>
    %169 = arith.addf %168, %7 : vector<16x64xf32>
    %c0_30 = arith.constant 0 : index
    %c0_31 = arith.constant 0 : index
    %170 = vector.load %arg8[%c0_30, %c0_31] : memref<64x256xf32, #tpu.memory_space<vmem>>, vector<64x256xf32>
    %cst_32 = arith.constant dense<0.000000e+00> : vector<16x256xf32>
    %171 = tpu.matmul %169, %170, %cst_32 {dimension_numbers = #tpu.dot_dimension_numbers<[1], [0], [0], [1], [0, 0, 1, 1], [], []>} : vector<16x64xf32>, vector<64x256xf32>, vector<16x256xf32> -> vector<16x256xf32>
    %c0_33 = arith.constant 0 : index
    %c0_34 = arith.constant 0 : index
    %172 = vector.load %arg10[%c0_33, %c0_34] : memref<1x256xf32, #tpu.memory_space<vmem>>, vector<1x256xf32>
    %173 = vector.broadcast %172 : vector<1x256xf32> to vector<16x256xf32>
    %174 = arith.addf %171, %173 : vector<16x256xf32>
    %c0_35 = arith.constant 0 : index
    %c0_36 = arith.constant 0 : index
    %175 = vector.load %arg9[%c0_35, %c0_36] : memref<64x256xf32, #tpu.memory_space<vmem>>, vector<64x256xf32>
    %176 = vector.extract_strided_slice %174 {offsets = [0, 0], sizes = [2, 256], strides = [1, 1]} : vector<16x256xf32> to vector<2x256xf32>
    %cst_37 = arith.constant dense<0.000000e+00> : vector<2x256xf32>
    %177 = tpu.matmul %167, %175, %cst_37 {dimension_numbers = #tpu.dot_dimension_numbers<[1], [0], [0], [1], [0, 0, 1, 1], [], []>} : vector<2x64xf32>, vector<64x256xf32>, vector<2x256xf32> -> vector<2x256xf32>
    %178 = arith.addf %176, %177 : vector<2x256xf32>
    %179 = vector.extract_strided_slice %178 {offsets = [0, 0], sizes = [2, 192], strides = [1, 1]} : vector<2x256xf32> to vector<2x192xf32>
    %180 = arith.negf %179 : vector<2x192xf32>
    %181 = math.exp %180 : vector<2x192xf32>
    %cst_38 = arith.constant 1.000000e+00 : f32
    %182 = vector.broadcast %cst_38 : f32 to vector<2x192xf32>
    %183 = arith.addf %182, %181 : vector<2x192xf32>
    %184 = arith.divf %182, %183 : vector<2x192xf32>
    %185 = vector.extract_strided_slice %184 {offsets = [0, 0], sizes = [2, 64], strides = [1, 1]} : vector<2x192xf32> to vector<2x64xf32>
    %186 = vector.extract_strided_slice %184 {offsets = [0, 64], sizes = [2, 64], strides = [1, 1]} : vector<2x192xf32> to vector<2x64xf32>
    %187 = vector.extract_strided_slice %184 {offsets = [0, 128], sizes = [2, 64], strides = [1, 1]} : vector<2x192xf32> to vector<2x64xf32>
    %188 = vector.extract_strided_slice %178 {offsets = [0, 192], sizes = [2, 64], strides = [1, 1]} : vector<2x256xf32> to vector<2x64xf32>
    %189 = math.tanh %188 : vector<2x64xf32>
    %190 = arith.mulf %186, %165 : vector<2x64xf32>
    %191 = arith.mulf %185, %189 : vector<2x64xf32>
    %192 = arith.addf %190, %191 : vector<2x64xf32>
    %193 = math.tanh %192 : vector<2x64xf32>
    %194 = arith.mulf %187, %193 : vector<2x64xf32>
    %195 = vector.extract_strided_slice %174 {offsets = [2, 0], sizes = [2, 256], strides = [1, 1]} : vector<16x256xf32> to vector<2x256xf32>
    %cst_39 = arith.constant dense<0.000000e+00> : vector<2x256xf32>
    %196 = tpu.matmul %194, %175, %cst_39 {dimension_numbers = #tpu.dot_dimension_numbers<[1], [0], [0], [1], [0, 0, 1, 1], [], []>} : vector<2x64xf32>, vector<64x256xf32>, vector<2x256xf32> -> vector<2x256xf32>
    %197 = arith.addf %195, %196 : vector<2x256xf32>
    %198 = vector.extract_strided_slice %197 {offsets = [0, 0], sizes = [2, 192], strides = [1, 1]} : vector<2x256xf32> to vector<2x192xf32>
    %199 = arith.negf %198 : vector<2x192xf32>
    %200 = math.exp %199 : vector<2x192xf32>
    %cst_40 = arith.constant 1.000000e+00 : f32
    %201 = vector.broadcast %cst_40 : f32 to vector<2x192xf32>
    %202 = arith.addf %201, %200 : vector<2x192xf32>
    %203 = arith.divf %201, %202 : vector<2x192xf32>
    %204 = vector.extract_strided_slice %203 {offsets = [0, 0], sizes = [2, 64], strides = [1, 1]} : vector<2x192xf32> to vector<2x64xf32>
    %205 = vector.extract_strided_slice %203 {offsets = [0, 64], sizes = [2, 64], strides = [1, 1]} : vector<2x192xf32> to vector<2x64xf32>
    %206 = vector.extract_strided_slice %203 {offsets = [0, 128], sizes = [2, 64], strides = [1, 1]} : vector<2x192xf32> to vector<2x64xf32>
    %207 = vector.extract_strided_slice %197 {offsets = [0, 192], sizes = [2, 64], strides = [1, 1]} : vector<2x256xf32> to vector<2x64xf32>
    %208 = math.tanh %207 : vector<2x64xf32>
    %209 = arith.mulf %205, %192 : vector<2x64xf32>
    %210 = arith.mulf %204, %208 : vector<2x64xf32>
    %211 = arith.addf %209, %210 : vector<2x64xf32>
    %212 = math.tanh %211 : vector<2x64xf32>
    %213 = arith.mulf %206, %212 : vector<2x64xf32>
    %214 = vector.extract_strided_slice %174 {offsets = [4, 0], sizes = [2, 256], strides = [1, 1]} : vector<16x256xf32> to vector<2x256xf32>
    %cst_41 = arith.constant dense<0.000000e+00> : vector<2x256xf32>
    %215 = tpu.matmul %213, %175, %cst_41 {dimension_numbers = #tpu.dot_dimension_numbers<[1], [0], [0], [1], [0, 0, 1, 1], [], []>} : vector<2x64xf32>, vector<64x256xf32>, vector<2x256xf32> -> vector<2x256xf32>
    %216 = arith.addf %214, %215 : vector<2x256xf32>
    %217 = vector.extract_strided_slice %216 {offsets = [0, 0], sizes = [2, 192], strides = [1, 1]} : vector<2x256xf32> to vector<2x192xf32>
    %218 = arith.negf %217 : vector<2x192xf32>
    %219 = math.exp %218 : vector<2x192xf32>
    %cst_42 = arith.constant 1.000000e+00 : f32
    %220 = vector.broadcast %cst_42 : f32 to vector<2x192xf32>
    %221 = arith.addf %220, %219 : vector<2x192xf32>
    %222 = arith.divf %220, %221 : vector<2x192xf32>
    %223 = vector.extract_strided_slice %222 {offsets = [0, 0], sizes = [2, 64], strides = [1, 1]} : vector<2x192xf32> to vector<2x64xf32>
    %224 = vector.extract_strided_slice %222 {offsets = [0, 64], sizes = [2, 64], strides = [1, 1]} : vector<2x192xf32> to vector<2x64xf32>
    %225 = vector.extract_strided_slice %222 {offsets = [0, 128], sizes = [2, 64], strides = [1, 1]} : vector<2x192xf32> to vector<2x64xf32>
    %226 = vector.extract_strided_slice %216 {offsets = [0, 192], sizes = [2, 64], strides = [1, 1]} : vector<2x256xf32> to vector<2x64xf32>
    %227 = math.tanh %226 : vector<2x64xf32>
    %228 = arith.mulf %224, %211 : vector<2x64xf32>
    %229 = arith.mulf %223, %227 : vector<2x64xf32>
    %230 = arith.addf %228, %229 : vector<2x64xf32>
    %231 = math.tanh %230 : vector<2x64xf32>
    %232 = arith.mulf %225, %231 : vector<2x64xf32>
    %233 = vector.extract_strided_slice %174 {offsets = [6, 0], sizes = [2, 256], strides = [1, 1]} : vector<16x256xf32> to vector<2x256xf32>
    %cst_43 = arith.constant dense<0.000000e+00> : vector<2x256xf32>
    %234 = tpu.matmul %232, %175, %cst_43 {dimension_numbers = #tpu.dot_dimension_numbers<[1], [0], [0], [1], [0, 0, 1, 1], [], []>} : vector<2x64xf32>, vector<64x256xf32>, vector<2x256xf32> -> vector<2x256xf32>
    %235 = arith.addf %233, %234 : vector<2x256xf32>
    %236 = vector.extract_strided_slice %235 {offsets = [0, 0], sizes = [2, 192], strides = [1, 1]} : vector<2x256xf32> to vector<2x192xf32>
    %237 = arith.negf %236 : vector<2x192xf32>
    %238 = math.exp %237 : vector<2x192xf32>
    %cst_44 = arith.constant 1.000000e+00 : f32
    %239 = vector.broadcast %cst_44 : f32 to vector<2x192xf32>
    %240 = arith.addf %239, %238 : vector<2x192xf32>
    %241 = arith.divf %239, %240 : vector<2x192xf32>
    %242 = vector.extract_strided_slice %241 {offsets = [0, 0], sizes = [2, 64], strides = [1, 1]} : vector<2x192xf32> to vector<2x64xf32>
    %243 = vector.extract_strided_slice %241 {offsets = [0, 64], sizes = [2, 64], strides = [1, 1]} : vector<2x192xf32> to vector<2x64xf32>
    %244 = vector.extract_strided_slice %241 {offsets = [0, 128], sizes = [2, 64], strides = [1, 1]} : vector<2x192xf32> to vector<2x64xf32>
    %245 = vector.extract_strided_slice %235 {offsets = [0, 192], sizes = [2, 64], strides = [1, 1]} : vector<2x256xf32> to vector<2x64xf32>
    %246 = math.tanh %245 : vector<2x64xf32>
    %247 = arith.mulf %243, %230 : vector<2x64xf32>
    %248 = arith.mulf %242, %246 : vector<2x64xf32>
    %249 = arith.addf %247, %248 : vector<2x64xf32>
    %250 = math.tanh %249 : vector<2x64xf32>
    %251 = arith.mulf %244, %250 : vector<2x64xf32>
    %252 = vector.extract_strided_slice %174 {offsets = [8, 0], sizes = [2, 256], strides = [1, 1]} : vector<16x256xf32> to vector<2x256xf32>
    %cst_45 = arith.constant dense<0.000000e+00> : vector<2x256xf32>
    %253 = tpu.matmul %251, %175, %cst_45 {dimension_numbers = #tpu.dot_dimension_numbers<[1], [0], [0], [1], [0, 0, 1, 1], [], []>} : vector<2x64xf32>, vector<64x256xf32>, vector<2x256xf32> -> vector<2x256xf32>
    %254 = arith.addf %252, %253 : vector<2x256xf32>
    %255 = vector.extract_strided_slice %254 {offsets = [0, 0], sizes = [2, 192], strides = [1, 1]} : vector<2x256xf32> to vector<2x192xf32>
    %256 = arith.negf %255 : vector<2x192xf32>
    %257 = math.exp %256 : vector<2x192xf32>
    %cst_46 = arith.constant 1.000000e+00 : f32
    %258 = vector.broadcast %cst_46 : f32 to vector<2x192xf32>
    %259 = arith.addf %258, %257 : vector<2x192xf32>
    %260 = arith.divf %258, %259 : vector<2x192xf32>
    %261 = vector.extract_strided_slice %260 {offsets = [0, 0], sizes = [2, 64], strides = [1, 1]} : vector<2x192xf32> to vector<2x64xf32>
    %262 = vector.extract_strided_slice %260 {offsets = [0, 64], sizes = [2, 64], strides = [1, 1]} : vector<2x192xf32> to vector<2x64xf32>
    %263 = vector.extract_strided_slice %260 {offsets = [0, 128], sizes = [2, 64], strides = [1, 1]} : vector<2x192xf32> to vector<2x64xf32>
    %264 = vector.extract_strided_slice %254 {offsets = [0, 192], sizes = [2, 64], strides = [1, 1]} : vector<2x256xf32> to vector<2x64xf32>
    %265 = math.tanh %264 : vector<2x64xf32>
    %266 = arith.mulf %262, %249 : vector<2x64xf32>
    %267 = arith.mulf %261, %265 : vector<2x64xf32>
    %268 = arith.addf %266, %267 : vector<2x64xf32>
    %269 = math.tanh %268 : vector<2x64xf32>
    %270 = arith.mulf %263, %269 : vector<2x64xf32>
    %271 = vector.extract_strided_slice %174 {offsets = [10, 0], sizes = [2, 256], strides = [1, 1]} : vector<16x256xf32> to vector<2x256xf32>
    %cst_47 = arith.constant dense<0.000000e+00> : vector<2x256xf32>
    %272 = tpu.matmul %270, %175, %cst_47 {dimension_numbers = #tpu.dot_dimension_numbers<[1], [0], [0], [1], [0, 0, 1, 1], [], []>} : vector<2x64xf32>, vector<64x256xf32>, vector<2x256xf32> -> vector<2x256xf32>
    %273 = arith.addf %271, %272 : vector<2x256xf32>
    %274 = vector.extract_strided_slice %273 {offsets = [0, 0], sizes = [2, 192], strides = [1, 1]} : vector<2x256xf32> to vector<2x192xf32>
    %275 = arith.negf %274 : vector<2x192xf32>
    %276 = math.exp %275 : vector<2x192xf32>
    %cst_48 = arith.constant 1.000000e+00 : f32
    %277 = vector.broadcast %cst_48 : f32 to vector<2x192xf32>
    %278 = arith.addf %277, %276 : vector<2x192xf32>
    %279 = arith.divf %277, %278 : vector<2x192xf32>
    %280 = vector.extract_strided_slice %279 {offsets = [0, 0], sizes = [2, 64], strides = [1, 1]} : vector<2x192xf32> to vector<2x64xf32>
    %281 = vector.extract_strided_slice %279 {offsets = [0, 64], sizes = [2, 64], strides = [1, 1]} : vector<2x192xf32> to vector<2x64xf32>
    %282 = vector.extract_strided_slice %279 {offsets = [0, 128], sizes = [2, 64], strides = [1, 1]} : vector<2x192xf32> to vector<2x64xf32>
    %283 = vector.extract_strided_slice %273 {offsets = [0, 192], sizes = [2, 64], strides = [1, 1]} : vector<2x256xf32> to vector<2x64xf32>
    %284 = math.tanh %283 : vector<2x64xf32>
    %285 = arith.mulf %281, %268 : vector<2x64xf32>
    %286 = arith.mulf %280, %284 : vector<2x64xf32>
    %287 = arith.addf %285, %286 : vector<2x64xf32>
    %288 = math.tanh %287 : vector<2x64xf32>
    %289 = arith.mulf %282, %288 : vector<2x64xf32>
    %290 = vector.extract_strided_slice %174 {offsets = [12, 0], sizes = [2, 256], strides = [1, 1]} : vector<16x256xf32> to vector<2x256xf32>
    %cst_49 = arith.constant dense<0.000000e+00> : vector<2x256xf32>
    %291 = tpu.matmul %289, %175, %cst_49 {dimension_numbers = #tpu.dot_dimension_numbers<[1], [0], [0], [1], [0, 0, 1, 1], [], []>} : vector<2x64xf32>, vector<64x256xf32>, vector<2x256xf32> -> vector<2x256xf32>
    %292 = arith.addf %290, %291 : vector<2x256xf32>
    %293 = vector.extract_strided_slice %292 {offsets = [0, 0], sizes = [2, 192], strides = [1, 1]} : vector<2x256xf32> to vector<2x192xf32>
    %294 = arith.negf %293 : vector<2x192xf32>
    %295 = math.exp %294 : vector<2x192xf32>
    %cst_50 = arith.constant 1.000000e+00 : f32
    %296 = vector.broadcast %cst_50 : f32 to vector<2x192xf32>
    %297 = arith.addf %296, %295 : vector<2x192xf32>
    %298 = arith.divf %296, %297 : vector<2x192xf32>
    %299 = vector.extract_strided_slice %298 {offsets = [0, 0], sizes = [2, 64], strides = [1, 1]} : vector<2x192xf32> to vector<2x64xf32>
    %300 = vector.extract_strided_slice %298 {offsets = [0, 64], sizes = [2, 64], strides = [1, 1]} : vector<2x192xf32> to vector<2x64xf32>
    %301 = vector.extract_strided_slice %298 {offsets = [0, 128], sizes = [2, 64], strides = [1, 1]} : vector<2x192xf32> to vector<2x64xf32>
    %302 = vector.extract_strided_slice %292 {offsets = [0, 192], sizes = [2, 64], strides = [1, 1]} : vector<2x256xf32> to vector<2x64xf32>
    %303 = math.tanh %302 : vector<2x64xf32>
    %304 = arith.mulf %300, %287 : vector<2x64xf32>
    %305 = arith.mulf %299, %303 : vector<2x64xf32>
    %306 = arith.addf %304, %305 : vector<2x64xf32>
    %307 = math.tanh %306 : vector<2x64xf32>
    %308 = arith.mulf %301, %307 : vector<2x64xf32>
    %309 = vector.extract_strided_slice %174 {offsets = [14, 0], sizes = [2, 256], strides = [1, 1]} : vector<16x256xf32> to vector<2x256xf32>
    %cst_51 = arith.constant dense<0.000000e+00> : vector<2x256xf32>
    %310 = tpu.matmul %308, %175, %cst_51 {dimension_numbers = #tpu.dot_dimension_numbers<[1], [0], [0], [1], [0, 0, 1, 1], [], []>} : vector<2x64xf32>, vector<64x256xf32>, vector<2x256xf32> -> vector<2x256xf32>
    %311 = arith.addf %309, %310 : vector<2x256xf32>
    %312 = vector.extract_strided_slice %311 {offsets = [0, 0], sizes = [2, 192], strides = [1, 1]} : vector<2x256xf32> to vector<2x192xf32>
    %313 = arith.negf %312 : vector<2x192xf32>
    %314 = math.exp %313 : vector<2x192xf32>
    %cst_52 = arith.constant 1.000000e+00 : f32
    %315 = vector.broadcast %cst_52 : f32 to vector<2x192xf32>
    %316 = arith.addf %315, %314 : vector<2x192xf32>
    %317 = arith.divf %315, %316 : vector<2x192xf32>
    %318 = vector.extract_strided_slice %317 {offsets = [0, 0], sizes = [2, 64], strides = [1, 1]} : vector<2x192xf32> to vector<2x64xf32>
    %319 = vector.extract_strided_slice %317 {offsets = [0, 64], sizes = [2, 64], strides = [1, 1]} : vector<2x192xf32> to vector<2x64xf32>
    %320 = vector.extract_strided_slice %317 {offsets = [0, 128], sizes = [2, 64], strides = [1, 1]} : vector<2x192xf32> to vector<2x64xf32>
    %321 = vector.extract_strided_slice %311 {offsets = [0, 192], sizes = [2, 64], strides = [1, 1]} : vector<2x256xf32> to vector<2x64xf32>
    %322 = math.tanh %321 : vector<2x64xf32>
    %323 = arith.mulf %319, %306 : vector<2x64xf32>
    %324 = arith.mulf %318, %322 : vector<2x64xf32>
    %325 = arith.addf %323, %324 : vector<2x64xf32>
    %326 = math.tanh %325 : vector<2x64xf32>
    %327 = arith.mulf %320, %326 : vector<2x64xf32>
    %328 = tpu.concatenate %194, %213, %232, %251, %270, %289, %308, %327 in 0 : vector<2x64xf32>, vector<2x64xf32>, vector<2x64xf32>, vector<2x64xf32>, vector<2x64xf32>, vector<2x64xf32>, vector<2x64xf32>, vector<2x64xf32> -> vector<16x64xf32>
    %329 = arith.addf %328, %169 : vector<16x64xf32>
    %330 = vector.extract_strided_slice %329 {offsets = [0, 0], sizes = [1, 64], strides = [1, 1]} : vector<16x64xf32> to vector<1x64xf32>
    %331 = vector.extract_strided_slice %329 {offsets = [2, 0], sizes = [1, 64], strides = [1, 1]} : vector<16x64xf32> to vector<1x64xf32>
    %332 = vector.extract_strided_slice %329 {offsets = [4, 0], sizes = [1, 64], strides = [1, 1]} : vector<16x64xf32> to vector<1x64xf32>
    %333 = vector.extract_strided_slice %329 {offsets = [6, 0], sizes = [1, 64], strides = [1, 1]} : vector<16x64xf32> to vector<1x64xf32>
    %334 = vector.extract_strided_slice %329 {offsets = [8, 0], sizes = [1, 64], strides = [1, 1]} : vector<16x64xf32> to vector<1x64xf32>
    %335 = vector.extract_strided_slice %329 {offsets = [10, 0], sizes = [1, 64], strides = [1, 1]} : vector<16x64xf32> to vector<1x64xf32>
    %336 = vector.extract_strided_slice %329 {offsets = [12, 0], sizes = [1, 64], strides = [1, 1]} : vector<16x64xf32> to vector<1x64xf32>
    %337 = vector.extract_strided_slice %329 {offsets = [14, 0], sizes = [1, 64], strides = [1, 1]} : vector<16x64xf32> to vector<1x64xf32>
    %338 = vector.extract_strided_slice %329 {offsets = [1, 0], sizes = [1, 64], strides = [1, 1]} : vector<16x64xf32> to vector<1x64xf32>
    %339 = vector.extract_strided_slice %329 {offsets = [3, 0], sizes = [1, 64], strides = [1, 1]} : vector<16x64xf32> to vector<1x64xf32>
    %340 = vector.extract_strided_slice %329 {offsets = [5, 0], sizes = [1, 64], strides = [1, 1]} : vector<16x64xf32> to vector<1x64xf32>
    %341 = vector.extract_strided_slice %329 {offsets = [7, 0], sizes = [1, 64], strides = [1, 1]} : vector<16x64xf32> to vector<1x64xf32>
    %342 = vector.extract_strided_slice %329 {offsets = [9, 0], sizes = [1, 64], strides = [1, 1]} : vector<16x64xf32> to vector<1x64xf32>
    %343 = vector.extract_strided_slice %329 {offsets = [11, 0], sizes = [1, 64], strides = [1, 1]} : vector<16x64xf32> to vector<1x64xf32>
    %344 = vector.extract_strided_slice %329 {offsets = [13, 0], sizes = [1, 64], strides = [1, 1]} : vector<16x64xf32> to vector<1x64xf32>
    %345 = vector.extract_strided_slice %329 {offsets = [15, 0], sizes = [1, 64], strides = [1, 1]} : vector<16x64xf32> to vector<1x64xf32>
    %346 = tpu.concatenate %330, %331, %332, %333, %334, %335, %336, %337, %338, %339, %340, %341, %342, %343, %344, %345 in 0 : vector<1x64xf32>, vector<1x64xf32>, vector<1x64xf32>, vector<1x64xf32>, vector<1x64xf32>, vector<1x64xf32>, vector<1x64xf32>, vector<1x64xf32>, vector<1x64xf32>, vector<1x64xf32>, vector<1x64xf32>, vector<1x64xf32>, vector<1x64xf32>, vector<1x64xf32>, vector<1x64xf32>, vector<1x64xf32> -> vector<16x64xf32>
    %347 = vector.extract_strided_slice %346 {offsets = [0, 0], sizes = [8, 64], strides = [1, 1]} : vector<16x64xf32> to vector<8x64xf32>
    %c0_53 = arith.constant 0 : index
    %c0_54 = arith.constant 0 : index
    %c0_55 = arith.constant 0 : index
    %348 = vector.load %arg16[%c0_53, %c0_54, %c0_55] : memref<2x8x64xf32, #tpu.memory_space<vmem>>, vector<1x8x64xf32>
    %349 = vector.shape_cast %348 : vector<1x8x64xf32> to vector<8x64xf32>
    %cst_56 = arith.constant dense<0.000000e+00> : vector<8x8xf32>
    %350 = tpu.matmul %347, %349, %cst_56 {dimension_numbers = #tpu.dot_dimension_numbers<[1], [1], [0], [0], [0, 0, 1, 0], [], []>} : vector<8x64xf32>, vector<8x64xf32>, vector<8x8xf32> -> vector<8x8xf32>
    %cst_57 = arith.constant dense<0xFF800000> : vector<8xf32>
    %351 = vector.multi_reduction <maximumf>, %350, %cst_57 [1] : vector<8x8xf32> to vector<8xf32>
    %cst_58 = arith.constant 0xFF800000 : f32
    %352 = vector.broadcast %cst_58 : f32 to vector<8xf32>
    %353 = arith.maximumf %352, %351 : vector<8xf32>
    %354 = vector.shape_cast %353 : vector<8xf32> to vector<8x1xf32>
    %355 = vector.broadcast %354 : vector<8x1xf32> to vector<8x8xf32>
    %356 = arith.subf %350, %355 : vector<8x8xf32>
    %357 = math.exp %356 : vector<8x8xf32>
    %cst_59 = arith.constant dense<0.000000e+00> : vector<8xf32>
    %358 = vector.multi_reduction <add>, %357, %cst_59 [1] : vector<8x8xf32> to vector<8xf32>
    %359 = vector.shape_cast %358 : vector<8xf32> to vector<8x1xf32>
    %360 = vector.broadcast %359 : vector<8x1xf32> to vector<8x8xf32>
    %361 = arith.divf %357, %360 : vector<8x8xf32>
    %c0_60 = arith.constant 0 : index
    %c0_61 = arith.constant 0 : index
    %c0_62 = arith.constant 0 : index
    %362 = vector.load %arg20[%c0_60, %c0_61, %c0_62] : memref<2x8x8xf32, #tpu.memory_space<vmem>>, vector<1x8x8xf32>
    %363 = vector.shape_cast %362 : vector<1x8x8xf32> to vector<8x8xf32>
    %364 = vector.shape_cast %361 : vector<8x8xf32> to vector<1x8x8xf32>
    tpu.vector_store %arg20[%c0_60, %c0_61, %c0_62], %364 {strides = array<i32>} : memref<2x8x8xf32, #tpu.memory_space<vmem>>, vector<1x8x8xf32>,
    %cst_63 = arith.constant dense<0.000000e+00> : vector<8x64xf32>
    %365 = tpu.matmul %361, %349, %cst_63 {dimension_numbers = #tpu.dot_dimension_numbers<[1], [0], [0], [1], [0, 0, 1, 1], [], []>} : vector<8x8xf32>, vector<8x64xf32>, vector<8x64xf32> -> vector<8x64xf32>
    %366 = vector.extract_strided_slice %346 {offsets = [8, 0], sizes = [8, 64], strides = [1, 1]} : vector<16x64xf32> to vector<8x64xf32>
    %c1 = arith.constant 1 : index
    %c0_64 = arith.constant 0 : index
    %c0_65 = arith.constant 0 : index
    %367 = vector.load %arg16[%c1, %c0_64, %c0_65] : memref<2x8x64xf32, #tpu.memory_space<vmem>>, vector<1x8x64xf32>
    %368 = vector.shape_cast %367 : vector<1x8x64xf32> to vector<8x64xf32>
    %cst_66 = arith.constant dense<0.000000e+00> : vector<8x8xf32>
    %369 = tpu.matmul %366, %368, %cst_66 {dimension_numbers = #tpu.dot_dimension_numbers<[1], [1], [0], [0], [0, 0, 1, 0], [], []>} : vector<8x64xf32>, vector<8x64xf32>, vector<8x8xf32> -> vector<8x8xf32>
    %cst_67 = arith.constant dense<0xFF800000> : vector<8xf32>
    %370 = vector.multi_reduction <maximumf>, %369, %cst_67 [1] : vector<8x8xf32> to vector<8xf32>
    %cst_68 = arith.constant 0xFF800000 : f32
    %371 = vector.broadcast %cst_68 : f32 to vector<8xf32>
    %372 = arith.maximumf %371, %370 : vector<8xf32>
    %373 = vector.shape_cast %372 : vector<8xf32> to vector<8x1xf32>
    %374 = vector.broadcast %373 : vector<8x1xf32> to vector<8x8xf32>
    %375 = arith.subf %369, %374 : vector<8x8xf32>
    %376 = math.exp %375 : vector<8x8xf32>
    %cst_69 = arith.constant dense<0.000000e+00> : vector<8xf32>
    %377 = vector.multi_reduction <add>, %376, %cst_69 [1] : vector<8x8xf32> to vector<8xf32>
    %378 = vector.shape_cast %377 : vector<8xf32> to vector<8x1xf32>
    %379 = vector.broadcast %378 : vector<8x1xf32> to vector<8x8xf32>
    %380 = arith.divf %376, %379 : vector<8x8xf32>
    %c1_70 = arith.constant 1 : index
    %c0_71 = arith.constant 0 : index
    %c0_72 = arith.constant 0 : index
    %381 = vector.load %arg20[%c1_70, %c0_71, %c0_72] : memref<2x8x8xf32, #tpu.memory_space<vmem>>, vector<1x8x8xf32>
    %382 = vector.shape_cast %381 : vector<1x8x8xf32> to vector<8x8xf32>
    %383 = vector.shape_cast %380 : vector<8x8xf32> to vector<1x8x8xf32>
    tpu.vector_store %arg20[%c1_70, %c0_71, %c0_72], %383 {strides = array<i32>} : memref<2x8x8xf32, #tpu.memory_space<vmem>>, vector<1x8x8xf32>,
    %cst_73 = arith.constant dense<0.000000e+00> : vector<8x64xf32>
    %384 = tpu.matmul %380, %368, %cst_73 {dimension_numbers = #tpu.dot_dimension_numbers<[1], [0], [0], [1], [0, 0, 1, 1], [], []>} : vector<8x8xf32>, vector<8x64xf32>, vector<8x64xf32> -> vector<8x64xf32>
    %385 = tpu.concatenate %365, %384 in 0 : vector<8x64xf32>, vector<8x64xf32> -> vector<16x64xf32>
    %c0_74 = arith.constant 0 : index
    %c0_75 = arith.constant 0 : index
    %386 = vector.load %arg11[%c0_74, %c0_75] : memref<64x64xf32, #tpu.memory_space<vmem>>, vector<64x64xf32>
    %cst_76 = arith.constant dense<0.000000e+00> : vector<16x64xf32>
    %387 = tpu.matmul %385, %386, %cst_76 {dimension_numbers = #tpu.dot_dimension_numbers<[1], [0], [0], [1], [0, 0, 1, 1], [], []>} : vector<16x64xf32>, vector<64x64xf32>, vector<16x64xf32> -> vector<16x64xf32>
    %c0_77 = arith.constant 0 : index
    %c0_78 = arith.constant 0 : index
    %388 = vector.load %arg12[%c0_77, %c0_78] : memref<64x64xf32, #tpu.memory_space<vmem>>, vector<64x64xf32>
    %cst_79 = arith.constant dense<0.000000e+00> : vector<16x64xf32>
    %389 = tpu.matmul %346, %388, %cst_79 {dimension_numbers = #tpu.dot_dimension_numbers<[1], [0], [0], [1], [0, 0, 1, 1], [], []>} : vector<16x64xf32>, vector<64x64xf32>, vector<16x64xf32> -> vector<16x64xf32>
    %390 = arith.addf %387, %389 : vector<16x64xf32>
    %c0_80 = arith.constant 0 : index
    %c0_81 = arith.constant 0 : index
    %391 = vector.load %arg13[%c0_80, %c0_81] : memref<1x64xf32, #tpu.memory_space<vmem>>, vector<1x64xf32>
    %392 = vector.broadcast %391 : vector<1x64xf32> to vector<16x64xf32>
    %393 = arith.addf %390, %392 : vector<16x64xf32>
    %394 = math.tanh %393 : vector<16x64xf32>
    %c0_82 = arith.constant 0 : index
    %c0_83 = arith.constant 0 : index
    %395 = vector.load %arg14[%c0_82, %c0_83] : memref<64x128xf32, #tpu.memory_space<vmem>>, vector<64x128xf32>
    %cst_84 = arith.constant dense<0.000000e+00> : vector<16x128xf32>
    %396 = tpu.matmul %394, %395, %cst_84 {dimension_numbers = #tpu.dot_dimension_numbers<[1], [0], [0], [1], [0, 0, 1, 1], [], []>} : vector<16x64xf32>, vector<64x128xf32>, vector<16x128xf32> -> vector<16x128xf32>
    %c0_85 = arith.constant 0 : index
    %c0_86 = arith.constant 0 : index
    %397 = vector.load %arg15[%c0_85, %c0_86] : memref<1x128xf32, #tpu.memory_space<vmem>>, vector<1x128xf32>
    %398 = vector.broadcast %397 : vector<1x128xf32> to vector<16x128xf32>
    %399 = arith.addf %396, %398 : vector<16x128xf32>
    %c0_87 = arith.constant 0 : index
    %c0_88 = arith.constant 0 : index
    %400 = vector.load %arg17[%c0_87, %c0_88] : memref<16x128xf32, #tpu.memory_space<vmem>>, vector<16x128xf32>
    tpu.vector_store %arg17[%c0_87, %c0_88], %399 {strides = array<i32>} : memref<16x128xf32, #tpu.memory_space<vmem>>, vector<16x128xf32>,
    %c0_89 = arith.constant 0 : index
    %c0_90 = arith.constant 0 : index
    %401 = vector.load %arg18[%c0_89, %c0_90] : memref<2x64xf32, #tpu.memory_space<vmem>>, vector<2x64xf32>
    tpu.vector_store %arg18[%c0_89, %c0_90], %327 {strides = array<i32>} : memref<2x64xf32, #tpu.memory_space<vmem>>, vector<2x64xf32>,
    %c0_91 = arith.constant 0 : index
    %c0_92 = arith.constant 0 : index
    %402 = vector.load %arg19[%c0_91, %c0_92] : memref<2x64xf32, #tpu.memory_space<vmem>>, vector<2x64xf32>
    tpu.vector_store %arg19[%c0_91, %c0_92], %325 {strides = array<i32>} : memref<2x64xf32, #tpu.memory_space<vmem>>, vector<2x64xf32>,
    return
  }
  func.func @transform_0(%arg0: i32) -> (i32, i32) {
    %c0_i32 = arith.constant 0 : i32
    %c0_i32_0 = arith.constant 0 : i32
    %c0_i32_1 = arith.constant 0 : i32
    return %c0_i32, %c0_i32_0 : i32, i32
  }
  func.func @transform_1(%arg0: i32) -> (i32, i32) {
    %c0_i32 = arith.constant 0 : i32
    %c0_i32_0 = arith.constant 0 : i32
    %c0_i32_1 = arith.constant 0 : i32
    return %c0_i32, %c0_i32_0 : i32, i32
  }
  func.func @transform_2(%arg0: i32) -> (i32, i32) {
    %c0_i32 = arith.constant 0 : i32
    %c0_i32_0 = arith.constant 0 : i32
    %c0_i32_1 = arith.constant 0 : i32
    return %c0_i32, %c0_i32_0 : i32, i32
  }
  func.func @transform_3(%arg0: i32) -> (i32, i32) {
    %c0_i32 = arith.constant 0 : i32
    %c0_i32_0 = arith.constant 0 : i32
    %c0_i32_1 = arith.constant 0 : i32
    return %c0_i32, %c0_i32_0 : i32, i32
  }
  func.func @transform_4(%arg0: i32) -> (i32, i32) {
    %c0_i32 = arith.constant 0 : i32
    %c0_i32_0 = arith.constant 0 : i32
    %c0_i32_1 = arith.constant 0 : i32
    return %c0_i32, %c0_i32_0 : i32, i32
  }
  func.func @transform_5(%arg0: i32) -> (i32, i32) {
    %c0_i32 = arith.constant 0 : i32
    %c0_i32_0 = arith.constant 0 : i32
    %c0_i32_1 = arith.constant 0 : i32
    return %c0_i32, %c0_i32_0 : i32, i32
  }
  func.func @transform_6(%arg0: i32) -> (i32, i32) {
    %c0_i32 = arith.constant 0 : i32
    %c0_i32_0 = arith.constant 0 : i32
    %c0_i32_1 = arith.constant 0 : i32
    return %c0_i32, %c0_i32_0 : i32, i32
  }
  func.func @transform_7(%arg0: i32) -> (i32, i32) {
    %c0_i32 = arith.constant 0 : i32
    %c0_i32_0 = arith.constant 0 : i32
    %c0_i32_1 = arith.constant 0 : i32
    return %c0_i32, %c0_i32_0 : i32, i32
  }
  func.func @transform_8(%arg0: i32) -> (i32, i32) {
    %c0_i32 = arith.constant 0 : i32
    %c0_i32_0 = arith.constant 0 : i32
    %c0_i32_1 = arith.constant 0 : i32
    return %c0_i32, %c0_i32_0 : i32, i32
  }
  func.func @transform_9(%arg0: i32) -> (i32, i32) {
    %c0_i32 = arith.constant 0 : i32
    %c0_i32_0 = arith.constant 0 : i32
    %c0_i32_1 = arith.constant 0 : i32
    return %c0_i32, %c0_i32_0 : i32, i32
  }
  func.func @transform_10(%arg0: i32) -> (i32, i32) {
    %c0_i32 = arith.constant 0 : i32
    %c0_i32_0 = arith.constant 0 : i32
    %c0_i32_1 = arith.constant 0 : i32
    return %c0_i32, %c0_i32_0 : i32, i32
  }
  func.func @transform_11(%arg0: i32) -> (i32, i32) {
    %c0_i32 = arith.constant 0 : i32
    %c0_i32_0 = arith.constant 0 : i32
    %c0_i32_1 = arith.constant 0 : i32
    return %c0_i32, %c0_i32_0 : i32, i32
  }
  func.func @transform_12(%arg0: i32) -> (i32, i32) {
    %c0_i32 = arith.constant 0 : i32
    %c0_i32_0 = arith.constant 0 : i32
    %c0_i32_1 = arith.constant 0 : i32
    return %c0_i32, %c0_i32_0 : i32, i32
  }
  func.func @transform_13(%arg0: i32) -> (i32, i32) {
    %c0_i32 = arith.constant 0 : i32
    %c0_i32_0 = arith.constant 0 : i32
    %c0_i32_1 = arith.constant 0 : i32
    return %c0_i32, %c0_i32_0 : i32, i32
  }
  func.func @transform_14(%arg0: i32) -> (i32, i32) {
    %c0_i32 = arith.constant 0 : i32
    %c0_i32_0 = arith.constant 0 : i32
    %c0_i32_1 = arith.constant 0 : i32
    return %c0_i32, %c0_i32_0 : i32, i32
  }
  func.func @transform_15(%arg0: i32) -> (i32, i32, i32) {
    %c0_i32 = arith.constant 0 : i32
    %c0_i32_0 = arith.constant 0 : i32
    %c0_i32_1 = arith.constant 0 : i32
    %c0_i32_2 = arith.constant 0 : i32
    return %c0_i32, %c0_i32_0, %c0_i32_1 : i32, i32, i32
  }
  func.func @transform_16(%arg0: i32) -> (i32, i32) {
    %c0_i32 = arith.constant 0 : i32
    %c0_i32_0 = arith.constant 0 : i32
    %c0_i32_1 = arith.constant 0 : i32
    return %c0_i32, %c0_i32_0 : i32, i32
  }
  func.func @transform_17(%arg0: i32) -> (i32, i32) {
    %c0_i32 = arith.constant 0 : i32
    %c0_i32_0 = arith.constant 0 : i32
    %c0_i32_1 = arith.constant 0 : i32
    return %c0_i32, %c0_i32_0 : i32, i32
  }
  func.func @transform_18(%arg0: i32) -> (i32, i32) {
    %c0_i32 = arith.constant 0 : i32
    %c0_i32_0 = arith.constant 0 : i32
    %c0_i32_1 = arith.constant 0 : i32
    return %c0_i32, %c0_i32_0 : i32, i32
  }
  func.func @transform_19(%arg0: i32) -> (i32, i32, i32) {
    %c0_i32 = arith.constant 0 : i32
    %c0_i32_0 = arith.constant 0 : i32
    %c0_i32_1 = arith.constant 0 : i32
    %c0_i32_2 = arith.constant 0 : i32
    return %c0_i32, %c0_i32_0, %c0_i32_1 : i32, i32, i32
  }
}

</mosaic_0001>

<llo_original>
// kernel: lstm_decoder_forward.1
$region0: #{lstm_decoder_forward.1}
  #allocation0 [shape = 'u32[]', space=smem, size = 0x4, offset = 0x4, fixed_abs, tag = 'smem constant byte address 0x4 - core index']
  #allocation1 [shape = 'u32[144,128]{1,0:T(1,128)}', space=vmem, size = 0x12000, scoped, tag = 'internal scratch']
  %s0 = inlined_call_operand.vmem [shape: s32[16,1], index: 0, kind: input, shape index: {}]
  %s1 = inlined_call_operand.vmem [shape: f32[64,64], index: 1, kind: input, shape index: {}]
  %s2 = inlined_call_operand.vmem [shape: f32[2,64], index: 2, kind: input, shape index: {}]
  %s3 = inlined_call_operand.vmem [shape: f32[2,64], index: 3, kind: input, shape index: {}]
  %s4 = inlined_call_operand.vmem [shape: f32[64,256], index: 4, kind: input, shape index: {}]
  %s5 = inlined_call_operand.vmem [shape: f32[64,256], index: 5, kind: input, shape index: {}]
  %s6 = inlined_call_operand.vmem [shape: f32[1,256], index: 6, kind: input, shape index: {}]
  %s7 = inlined_call_operand.vmem [shape: f32[64,256], index: 7, kind: input, shape index: {}]
  %s8 = inlined_call_operand.hbm [shape: f32[64,256], index: 8, kind: input, shape index: {}]
  %s9 = inlined_call_operand.vmem [shape: f32[1,256], index: 9, kind: input, shape index: {}]
  %s10 = inlined_call_operand.hbm [shape: f32[64,64], index: 10, kind: input, shape index: {}]
  %s11 = inlined_call_operand.hbm [shape: f32[64,64], index: 11, kind: input, shape index: {}]
  %s12 = inlined_call_operand.vmem [shape: f32[1,64], index: 12, kind: input, shape index: {}]
  %s13 = inlined_call_operand.vmem [shape: f32[64,128], index: 13, kind: input, shape index: {}]
  %s14 = inlined_call_operand.vmem [shape: f32[1,128], index: 14, kind: input, shape index: {}]
  %s15 = inlined_call_operand.vmem [shape: f32[2,8,64], index: 15, kind: input, shape index: {}]
  %s16 = inlined_call_operand.hbm [shape: f32[16,128], index: 16, kind: output, shape index: {0}]
  %s17 = inlined_call_operand.hbm [shape: f32[2,64], index: 17, kind: output, shape index: {1}]
  %s18 = inlined_call_operand.hbm [shape: f32[2,64], index: 18, kind: output, shape index: {2}]
  %s19 = inlined_call_operand.hbm [shape: f32[2,8,8], index: 19, kind: output, shape index: {3}]
  %20 = xla_tuple %s16, %s17, %s18, %s19
  %s21 = sld [smem:[#allocation0]]
  $region110: #{lstm_decoder_forward.1} parent=0
    _
  %s23 = ssub.s32 1, %s21
  %s24 = scalar_select 0, %s23, %s21
  $region1: #{lstm_decoder_forward.1} parent=0
    #allocation2 [shape = 'u8[65536]{0}', space=vmem, size = 0x10000, scoped, tag = 'input window, operand 8, single buffered']
    #allocation3 [shape = 's32[1]{0}', space=sflag, size = 0x4, scoped, tag = 'scoped memory for lstm_decoder_forward.1']
    #allocation4 [shape = 's32[1]{0}', space=sflag, size = 0x4, scoped, tag = 'scoped memory for lstm_decoder_forward.1']
    #allocation5 [shape = 'u8[32768]{0}', space=vmem, size = 0x8000, scoped, tag = 'input window, operand 10, single buffered']
    #allocation6 [shape = 's32[1]{0}', space=sflag, size = 0x4, scoped, tag = 'scoped memory for lstm_decoder_forward.1']
    #allocation7 [shape = 'u8[32768]{0}', space=vmem, size = 0x8000, scoped, tag = 'input window, operand 11, single buffered']
    #allocation8 [shape = 'u8[8192]{0}', space=vmem, size = 0x2000, scoped, tag = 'output window, operand 0, single buffered']
    #allocation9 [shape = 'u8[1024]{0}', space=vmem, size = 0x400, scoped, tag = 'output window, operand 1, single buffered']
    #allocation10 [shape = 's32[1]{0}', space=sflag, size = 0x4, scoped, tag = 'scoped memory for lstm_decoder_forward.1']
    #allocation11 [shape = 'u8[1024]{0}', space=vmem, size = 0x400, scoped, tag = 'output window, operand 2, single buffered']
    #allocation12 [shape = 'u8[8192]{0}', space=vmem, size = 0x2000, scoped, tag = 'output window, operand 3, single buffered']
    #allocation13 [shape = 's32[1]{0}', space=sflag, size = 0x4, scoped, tag = 'scoped memory for lstm_decoder_forward.1']
    %25 = vsyncpa [#allocation3], 0
    %26 = vsyncpa [#allocation6], 0
    %27 = vsyncpa [#allocation4], 0
    %28 = vsyncpa [#allocation10], 0
    %29 = vsyncpa [#allocation13], 0
    // Predicated region
    $region2: #{lstm_decoder_forward.1} parent=1 // pred_check
      _
    $region3: #{lstm_decoder_forward.1} parent=1 // pred_check_branch
      %31 = sbr.rel (0) target = $region5
    $region4: #{lstm_decoder_forward.1} parent=1 // pred_region
      _
    $region5: #{lstm_decoder_forward.1} parent=1 // pred_fallthru
      _
    // Predicated region
    $region6: #{lstm_decoder_forward.1} parent=1 // pred_check
      _
    $region7: #{lstm_decoder_forward.1} parent=1 // pred_check_branch
      %33 = sbr.rel (0) target = $region9
    $region8: #{lstm_decoder_forward.1} parent=1 // pred_region
      _
    $region9: #{lstm_decoder_forward.1} parent=1 // pred_fallthru
      _
    // Predicated region
    $region10: #{lstm_decoder_forward.1} parent=1 // pred_check
      _
    $region11: #{lstm_decoder_forward.1} parent=1 // pred_check_branch
      %35 = sbr.rel (0) target = $region13
    $region12: #{lstm_decoder_forward.1} parent=1 // pred_region
      _
    $region13: #{lstm_decoder_forward.1} parent=1 // pred_fallthru
      _
    // Predicated region
    $region14: #{lstm_decoder_forward.1} parent=1 // pred_check
      _
    $region15: #{lstm_decoder_forward.1} parent=1 // pred_check_branch
      %37 = sbr.rel (0) target = $region17
    $region16: #{lstm_decoder_forward.1} parent=1 // pred_region
      _
    $region17: #{lstm_decoder_forward.1} parent=1 // pred_fallthru
      _
    // Predicated region
    $region18: #{lstm_decoder_forward.1} parent=1 // pred_check
      _
    $region19: #{lstm_decoder_forward.1} parent=1 // pred_check_branch
      %39 = sbr.rel (0) target = $region21
    $region20: #{lstm_decoder_forward.1} parent=1 // pred_region
      _
    $region21: #{lstm_decoder_forward.1} parent=1 // pred_fallthru
      _
    // Predicated region
    $region22: #{lstm_decoder_forward.1} parent=1 // pred_check
      _
    $region23: #{lstm_decoder_forward.1} parent=1 // pred_check_branch
      %41 = sbr.rel (0) target = $region25
    $region24: #{lstm_decoder_forward.1} parent=1 // pred_region
      _
    $region25: #{lstm_decoder_forward.1} parent=1 // pred_fallthru
      _
    // Predicated region
    $region26: #{lstm_decoder_forward.1} parent=1 // pred_check
      _
    $region27: #{lstm_decoder_forward.1} parent=1 // pred_check_branch
      %43 = sbr.rel (0) target = $region29
    $region28: #{lstm_decoder_forward.1} parent=1 // pred_region
      _
    $region29: #{lstm_decoder_forward.1} parent=1 // pred_fallthru
      _
    // Predicated region
    $region30: #{lstm_decoder_forward.1} parent=1 // pred_check
      _
    $region31: #{lstm_decoder_forward.1} parent=1 // pred_check_branch
      %45 = sbr.rel (0) target = $region33
    $region32: #{lstm_decoder_forward.1} parent=1 // pred_region
      _
    $region33: #{lstm_decoder_forward.1} parent=1 // pred_fallthru
      _
    // Predicated region
    $region34: #{lstm_decoder_forward.1} parent=1 // pred_check
      _
    $region35: #{lstm_decoder_forward.1} parent=1 // pred_check_branch
      %47 = sbr.rel (0) target = $region37
    $region36: #{lstm_decoder_forward.1} parent=1 // pred_region
      %s49 = ssub.s32 2048, 2048
      %50 = vsyncadd [#allocation3], %s49
      %s51 = sshll.u32 [#allocation2], 4
      %s52 = int_to_ptr.vmem [resolvable:$true] %s51
      %57 = dma.hbm_to_vmem [thread:$0]  %s8, 2048, %s52, [#allocation3], 256, 256, 16
    $region37: #{lstm_decoder_forward.1} parent=1 // pred_fallthru
      _
    // Predicated region
    $region38: #{lstm_decoder_forward.1} parent=1 // pred_check
      _
    $region39: #{lstm_decoder_forward.1} parent=1 // pred_check_branch
      %59 = sbr.rel (0) target = $region41
    $region40: #{lstm_decoder_forward.1} parent=1 // pred_region
      _
    $region41: #{lstm_decoder_forward.1} parent=1 // pred_fallthru
      _
    // Predicated region
    $region42: #{lstm_decoder_forward.1} parent=1 // pred_check
      _
    $region43: #{lstm_decoder_forward.1} parent=1 // pred_check_branch
      %61 = sbr.rel (0) target = $region45
    $region44: #{lstm_decoder_forward.1} parent=1 // pred_region
      %s63 = ssub.s32 1024, 1024
      %64 = vsyncadd [#allocation6], %s63
      %s65 = sshll.u32 [#allocation5], 4
      %s66 = int_to_ptr.vmem [resolvable:$true] %s65
      %71 = dma.hbm_to_vmem [thread:$0]  %s10, 1024, %s66, [#allocation6], 128, 128, 8
    $region45: #{lstm_decoder_forward.1} parent=1 // pred_fallthru
      _
    // Predicated region
    $region46: #{lstm_decoder_forward.1} parent=1 // pred_check
      _
    $region47: #{lstm_decoder_forward.1} parent=1 // pred_check_branch
      %73 = sbr.rel (0) target = $region49
    $region48: #{lstm_decoder_forward.1} parent=1 // pred_region
      %s75 = ssub.s32 1024, 1024
      %76 = vsyncadd [#allocation6], %s75
      %s77 = sshll.u32 [#allocation7], 4
      %s78 = int_to_ptr.vmem [resolvable:$true] %s77
      %83 = dma.hbm_to_vmem [thread:$0]  %s11, 1024, %s78, [#allocation6], 128, 128, 8
    $region49: #{lstm_decoder_forward.1} parent=1 // pred_fallthru
      _
    // Predicated region
    $region50: #{lstm_decoder_forward.1} parent=1 // pred_check
      _
    $region51: #{lstm_decoder_forward.1} parent=1 // pred_check_branch
      %85 = sbr.rel (0) target = $region53
    $region52: #{lstm_decoder_forward.1} parent=1 // pred_region
      _
    $region53: #{lstm_decoder_forward.1} parent=1 // pred_fallthru
      _
    // Predicated region
    $region54: #{lstm_decoder_forward.1} parent=1 // pred_check
      _
    $region55: #{lstm_decoder_forward.1} parent=1 // pred_check_branch
      %87 = sbr.rel (0) target = $region57
    $region56: #{lstm_decoder_forward.1} parent=1 // pred_region
      _
    $region57: #{lstm_decoder_forward.1} parent=1 // pred_fallthru
      _
    // Predicated region
    $region58: #{lstm_decoder_forward.1} parent=1 // pred_check
      _
    $region59: #{lstm_decoder_forward.1} parent=1 // pred_check_branch
      %89 = sbr.rel (0) target = $region61
    $region60: #{lstm_decoder_forward.1} parent=1 // pred_region
      _
    $region61: #{lstm_decoder_forward.1} parent=1 // pred_fallthru
      _
    // Predicated region
    $region62: #{lstm_decoder_forward.1} parent=1 // pred_check
      _
    $region63: #{lstm_decoder_forward.1} parent=1 // pred_check_branch
      %91 = sbr.rel (0) target = $region65
    $region64: #{lstm_decoder_forward.1} parent=1 // pred_region
      _
    $region65: #{lstm_decoder_forward.1} parent=1 // pred_fallthru
      _
    // Predicated region
    $region66: #{lstm_decoder_forward.1} parent=1 // pred_check
      _
    $region67: #{lstm_decoder_forward.1} parent=1 // pred_check_branch
      %93 = sbr.rel (0) target = $region69
    $region68: #{lstm_decoder_forward.1} parent=1 // pred_region
      %94 = dma.done [#allocation3], 2048
    $region69: #{lstm_decoder_forward.1} parent=1 // pred_fallthru
      _
    // Predicated region
    $region70: #{lstm_decoder_forward.1} parent=1 // pred_check
      _
    $region71: #{lstm_decoder_forward.1} parent=1 // pred_check_branch
      %96 = sbr.rel (0) target = $region73
    $region72: #{lstm_decoder_forward.1} parent=1 // pred_region
      %97 = dma.done [#allocation6], 1024
    $region73: #{lstm_decoder_forward.1} parent=1 // pred_fallthru
      _
    // Predicated region
    $region74: #{lstm_decoder_forward.1} parent=1 // pred_check
      _
    $region75: #{lstm_decoder_forward.1} parent=1 // pred_check_branch
      %99 = sbr.rel (0) target = $region77
    $region76: #{lstm_decoder_forward.1} parent=1 // pred_region
      %100 = dma.done [#allocation6], 1024
    $region77: #{lstm_decoder_forward.1} parent=1 // pred_fallthru
      _
    %v101 = vld [vmem:[%s0] sm:$0xff]
    %v102 = vld [vmem:[%s0 + $0x8] sm:$0xff]
    %v103 = vlaneseq
    %v104 = vand.u32 %v103, 127
    %105 = vset.pattern.permute.xlu0 0
    %106 = vperm.xlu0 %105, %v101
    %v107 = vpop.permute.xlu0 %106
    %108 = vset.pattern.permute.xlu0 0
    %109 = vperm.xlu0 %108, %v102
    %v110 = vpop.permute.xlu0 %109
    %vm111 = vcmp.eq.s32.totalorder %v104, %v107
    %vm112 = vcmp.eq.s32.totalorder %v104, %v110
    %v113 = vsel %vm111, 1, 0
    %v114 = vsel %vm112, 1, 0
    %v115 = vcvt.s32.f32 %v113
    %v116 = vcvt.s32.f32 %v114
    %v117 = vld [vmem:[%s1] sm:$0xff]
    %v118 = vld [vmem:[%s1 + $0x8] sm:$0xff]
    %v119 = vld [vmem:[%s1 + $0x10] sm:$0xff]
    %v120 = vld [vmem:[%s1 + $0x18] sm:$0xff]
    %v121 = vld [vmem:[%s1 + $0x20] sm:$0xff]
    %v122 = vld [vmem:[%s1 + $0x28] sm:$0xff]
    %v123 = vld [vmem:[%s1 + $0x30] sm:$0xff]
    %v124 = vld [vmem:[%s1 + $0x38] sm:$0xff]
    %vm125 = vcmask 523264
    %v127 = vsel %vm125, %v115, 0
    %v130 = vsel %vm125, %v116, 0
    %132 = vmatprep.subr.mxu0 0.0
    %133 = vmatpush1.msra.mxu0 0.0
    %134 = vmatprep.subr.mxu0 0.0
    %135 = vmatpush1.msra.mxu0 0.0
    %136 = vmatprep.subr.mxu0 0.0
    %137 = vmatpush1.msra.mxu0 0.0
    %138 = vmatprep.subr.mxu0 0.0
    %139 = vmatpush1.msra.mxu0 0.0
    %140 = vmatprep.subr.mxu0 0.0
    %141 = vmatpush1.msra.mxu0 0.0
    %142 = vmatprep.subr.mxu0 0.0
    %143 = vmatpush1.msra.mxu0 0.0
    %144 = vmatprep.subr.mxu0 0.0
    %145 = vmatpush1.msra.mxu0 0.0
    %146 = vmatprep.subr.mxu0 0.0
    %147 = vmatpush1.msra.mxu0 0.0
    %148 = vmatprep.subr.mxu0 0.0
    %149 = vmatpush1.msra.mxu0 %v124
    %150 = vmatprep.subr.mxu0 0.0
    %151 = vmatpush1.msra.mxu0 %v123
    %152 = vmatprep.subr.mxu0 0.0
    %153 = vmatpush1.msra.mxu0 %v122
    %154 = vmatprep.subr.mxu0 0.0
    %155 = vmatpush1.msra.mxu0 %v121
    %156 = vmatprep.subr.mxu0 0.0
    %157 = vmatpush1.msra.mxu0 %v120
    %158 = vmatprep.subr.mxu0 0.0
    %159 = vmatpush1.msra.mxu0 %v119
    %160 = vmatprep.subr.mxu0 0.0
    %161 = vmatpush1.msra.mxu0 %v118
    %162 = vmatprep.subr.mxu0 0.0
    %163 = vmatpush1.msra.mxu0 %v117
    %164 = vmatprep.subr.mxu0 0.0
    %165 = vmatpush2.msra.mxu0 0.0
    %166 = vmatprep.subr.mxu0 0.0
    %167 = vmatpush2.msra.mxu0 0.0
    %168 = vmatprep.subr.mxu0 0.0
    %169 = vmatpush2.msra.mxu0 0.0
    %170 = vmatprep.subr.mxu0 0.0
    %171 = vmatpush2.msra.mxu0 0.0
    %172 = vmatprep.subr.mxu0 0.0
    %173 = vmatpush2.msra.mxu0 0.0
    %174 = vmatprep.subr.mxu0 0.0
    %175 = vmatpush2.msra.mxu0 0.0
    %176 = vmatprep.subr.mxu0 0.0
    %177 = vmatpush2.msra.mxu0 0.0
    %178 = vmatprep.subr.mxu0 0.0
    %179 = vmatpush2.msra.mxu0 0.0
    %180 = vmatprep.subr.mxu0 0.0
    %181 = vmatpush2.msra.mxu0 0.0
    %182 = vmatprep.subr.mxu0 0.0
    %183 = vmatpush2.msra.mxu0 0.0
    %184 = vmatprep.subr.mxu0 0.0
    %185 = vmatpush2.msra.mxu0 0.0
    %186 = vmatprep.subr.mxu0 0.0
    %187 = vmatpush2.msra.mxu0 0.0
    %188 = vmatprep.subr.mxu0 0.0
    %189 = vmatpush2.msra.mxu0 0.0
    %190 = vmatprep.subr.mxu0 0.0
    %191 = vmatpush2.msra.mxu0 0.0
    %192 = vmatprep.subr.mxu0 0.0
    %193 = vmatpush2.msra.mxu0 0.0
    %194 = vmatprep.subr.mxu0 0.0
    %195 = vmatpush2.msra.mxu0 0.0
    %196 = vmatprep.mubr.f32.mxu0 0.0
    %197 = vmatmul.mubr.f32.gmra.mxu0 %v127
    %v198 = vpop.f32.mrf.mxu0
    %v199 = vadd.f32 0.0, %v198
    %v200 = vpop.f32.mrf.mxu0
    %201 = vmatprep.mubr.f32.mxu0 0.0
    %202 = vmatmul.mubr.f32.gmra.mxu0 %v130
    %v203 = vpop.f32.mrf.mxu0
    %v204 = vadd.f32 0.0, %v203
    %v205 = vpop.f32.mrf.mxu0
    %206 = vdwg.mxu0
    %v207 = vld [vmem:[%s2] sm:$0x3]
    %v208 = vld [vmem:[%s3] sm:$0x3]
    %v209 = vld [vmem:[%s4] sm:$0xff]
    %v210 = vld [vmem:[%s4 + $0x8] sm:$0xff]
    %v211 = vld [vmem:[%s4 + $0x10] sm:$0xff]
    %v212 = vld [vmem:[%s4 + $0x18] sm:$0xff]
    %v213 = vld [vmem:[%s4 + $0x20] sm:$0xff]
    %v214 = vld [vmem:[%s4 + $0x28] sm:$0xff]
    %v215 = vld [vmem:[%s4 + $0x30] sm:$0xff]
    %v216 = vld [vmem:[%s4 + $0x38] sm:$0xff]
    %v217 = vld [vmem:[%s4 + $0x40] sm:$0xff]
    %v218 = vld [vmem:[%s4 + $0x48] sm:$0xff]
    %v219 = vld [vmem:[%s4 + $0x50] sm:$0xff]
    %v220 = vld [vmem:[%s4 + $0x58] sm:$0xff]
    %v221 = vld [vmem:[%s4 + $0x60] sm:$0xff]
    %v222 = vld [vmem:[%s4 + $0x68] sm:$0xff]
    %v223 = vld [vmem:[%s4 + $0x70] sm:$0xff]
    %v224 = vld [vmem:[%s4 + $0x78] sm:$0xff]
    %v225 = vld [vmem:[%s6] sm:$0x3]
    %v227 = vlaneseq
    %v228 = vshrl.u32 %v227, 7
    %v229 = vsub.s32 0, %v228
    %v230 = vrot.slane %v225, %v229
    %v231 = vlaneseq
    %v232 = vshrl.u32 %v231, 7
    %v233 = vsub.s32 1, %v232
    %v234 = vrot.slane %v225, %v233
    %v238 = vsel %vm125, %v199, 0
    %v241 = vsel %vm125, %v204, 0
    %243 = vmatprep.subr.mxu0 0.0
    %244 = vmatpush1.msra.mxu0 0.0
    %245 = vmatprep.subr.mxu0 0.0
    %246 = vmatpush1.msra.mxu0 0.0
    %247 = vmatprep.subr.mxu0 0.0
    %248 = vmatpush1.msra.mxu0 0.0
    %249 = vmatprep.subr.mxu0 0.0
    %250 = vmatpush1.msra.mxu0 0.0
    %251 = vmatprep.subr.mxu0 0.0
    %252 = vmatpush1.msra.mxu0 0.0
    %253 = vmatprep.subr.mxu0 0.0
    %254 = vmatpush1.msra.mxu0 0.0
    %255 = vmatprep.subr.mxu0 0.0
    %256 = vmatpush1.msra.mxu0 0.0
    %257 = vmatprep.subr.mxu0 0.0
    %258 = vmatpush1.msra.mxu0 0.0
    %259 = vmatprep.subr.mxu0 %v224
    %260 = vmatpush1.msra.mxu0 %v223
    %261 = vmatprep.subr.mxu0 %v222
    %262 = vmatpush1.msra.mxu0 %v221
    %263 = vmatprep.subr.mxu0 %v220
    %264 = vmatpush1.msra.mxu0 %v219
    %265 = vmatprep.subr.mxu0 %v218
    %266 = vmatpush1.msra.mxu0 %v217
    %267 = vmatprep.subr.mxu0 %v216
    %268 = vmatpush1.msra.mxu0 %v215
    %269 = vmatprep.subr.mxu0 %v214
    %270 = vmatpush1.msra.mxu0 %v213
    %271 = vmatprep.subr.mxu0 %v212
    %272 = vmatpush1.msra.mxu0 %v211
    %273 = vmatprep.subr.mxu0 %v210
    %274 = vmatpush1.msra.mxu0 %v209
    %275 = vmatprep.subr.mxu0 0.0
    %276 = vmatpush2.msra.mxu0 0.0
    %277 = vmatprep.subr.mxu0 0.0
    %278 = vmatpush2.msra.mxu0 0.0
    %279 = vmatprep.subr.mxu0 0.0
    %280 = vmatpush2.msra.mxu0 0.0
    %281 = vmatprep.subr.mxu0 0.0
    %282 = vmatpush2.msra.mxu0 0.0
    %283 = vmatprep.subr.mxu0 0.0
    %284 = vmatpush2.msra.mxu0 0.0
    %285 = vmatprep.subr.mxu0 0.0
    %286 = vmatpush2.msra.mxu0 0.0
    %287 = vmatprep.subr.mxu0 0.0
    %288 = vmatpush2.msra.mxu0 0.0
    %289 = vmatprep.subr.mxu0 0.0
    %290 = vmatpush2.msra.mxu0 0.0
    %291 = vmatprep.subr.mxu0 0.0
    %292 = vmatpush2.msra.mxu0 0.0
    %293 = vmatprep.subr.mxu0 0.0
    %294 = vmatpush2.msra.mxu0 0.0
    %295 = vmatprep.subr.mxu0 0.0
    %296 = vmatpush2.msra.mxu0 0.0
    %297 = vmatprep.subr.mxu0 0.0
    %298 = vmatpush2.msra.mxu0 0.0
    %299 = vmatprep.subr.mxu0 0.0
    %300 = vmatpush2.msra.mxu0 0.0
    %301 = vmatprep.subr.mxu0 0.0
    %302 = vmatpush2.msra.mxu0 0.0
    %303 = vmatprep.subr.mxu0 0.0
    %304 = vmatpush2.msra.mxu0 0.0
    %305 = vmatprep.subr.mxu0 0.0
    %306 = vmatpush2.msra.mxu0 0.0
    %307 = vmatprep.mubr.f32.mxu0 0.0
    %308 = vmatmul.mubr.f32.gmra.mxu0 %v238
    %v309 = vpop.f32.mrf.mxu0
    %v310 = vadd.f32 %v230, %v309
    %v311 = vpop.f32.mrf.mxu0
    %v312 = vadd.f32 %v234, %v311
    %313 = vmatprep.mubr.f32.mxu0 0.0
    %314 = vmatmul.mubr.f32.gmra.mxu0 %v241
    %v315 = vpop.f32.mrf.mxu0
    %v316 = vadd.f32 %v230, %v315
    %v317 = vpop.f32.mrf.mxu0
    %v318 = vadd.f32 %v234, %v317
    %319 = vdwg.mxu0
    %v320 = vld [vmem:[%s5] sm:$0xff]
    %v321 = vld [vmem:[%s5 + $0x8] sm:$0xff]
    %v322 = vld [vmem:[%s5 + $0x10] sm:$0xff]
    %v323 = vld [vmem:[%s5 + $0x18] sm:$0xff]
    %v324 = vld [vmem:[%s5 + $0x20] sm:$0xff]
    %v325 = vld [vmem:[%s5 + $0x28] sm:$0xff]
    %v326 = vld [vmem:[%s5 + $0x30] sm:$0xff]
    %v327 = vld [vmem:[%s5 + $0x38] sm:$0xff]
    %v328 = vld [vmem:[%s5 + $0x40] sm:$0xff]
    %v329 = vld [vmem:[%s5 + $0x48] sm:$0xff]
    %v330 = vld [vmem:[%s5 + $0x50] sm:$0xff]
    %v331 = vld [vmem:[%s5 + $0x58] sm:$0xff]
    %v332 = vld [vmem:[%s5 + $0x60] sm:$0xff]
    %v333 = vld [vmem:[%s5 + $0x68] sm:$0xff]
    %v334 = vld [vmem:[%s5 + $0x70] sm:$0xff]
    %v335 = vld [vmem:[%s5 + $0x78] sm:$0xff]
    %v337 = vsel %vm125, %v207, 0
    %339 = vmatprep.subr.mxu0 0.0
    %340 = vmatpush1.msra.mxu0 0.0
    %341 = vmatprep.subr.mxu0 0.0
    %342 = vmatpush1.msra.mxu0 0.0
    %343 = vmatprep.subr.mxu0 0.0
    %344 = vmatpush1.msra.mxu0 0.0
    %345 = vmatprep.subr.mxu0 0.0
    %346 = vmatpush1.msra.mxu0 0.0
    %347 = vmatprep.subr.mxu0 0.0
    %348 = vmatpush1.msra.mxu0 0.0
    %349 = vmatprep.subr.mxu0 0.0
    %350 = vmatpush1.msra.mxu0 0.0
    %351 = vmatprep.subr.mxu0 0.0
    %352 = vmatpush1.msra.mxu0 0.0
    %353 = vmatprep.subr.mxu0 0.0
    %354 = vmatpush1.msra.mxu0 0.0
    %355 = vmatprep.subr.mxu0 %v335
    %356 = vmatpush1.msra.mxu0 %v334
    %357 = vmatprep.subr.mxu0 %v333
    %358 = vmatpush1.msra.mxu0 %v332
    %359 = vmatprep.subr.mxu0 %v331
    %360 = vmatpush1.msra.mxu0 %v330
    %361 = vmatprep.subr.mxu0 %v329
    %362 = vmatpush1.msra.mxu0 %v328
    %363 = vmatprep.subr.mxu0 %v327
    %364 = vmatpush1.msra.mxu0 %v326
    %365 = vmatprep.subr.mxu0 %v325
    %366 = vmatpush1.msra.mxu0 %v324
    %367 = vmatprep.subr.mxu0 %v323
    %368 = vmatpush1.msra.mxu0 %v322
    %369 = vmatprep.subr.mxu0 %v321
    %370 = vmatpush1.msra.mxu0 %v320
    %371 = vmatprep.subr.mxu0 0.0
    %372 = vmatpush2.msra.mxu0 0.0
    %373 = vmatprep.subr.mxu0 0.0
    %374 = vmatpush2.msra.mxu0 0.0
    %375 = vmatprep.subr.mxu0 0.0
    %376 = vmatpush2.msra.mxu0 0.0
    %377 = vmatprep.subr.mxu0 0.0
    %378 = vmatpush2.msra.mxu0 0.0
    %379 = vmatprep.subr.mxu0 0.0
    %380 = vmatpush2.msra.mxu0 0.0
    %381 = vmatprep.subr.mxu0 0.0
    %382 = vmatpush2.msra.mxu0 0.0
    %383 = vmatprep.subr.mxu0 0.0
    %384 = vmatpush2.msra.mxu0 0.0
    %385 = vmatprep.subr.mxu0 0.0
    %386 = vmatpush2.msra.mxu0 0.0
    %387 = vmatprep.subr.mxu0 0.0
    %388 = vmatpush2.msra.mxu0 0.0
    %389 = vmatprep.subr.mxu0 0.0
    %390 = vmatpush2.msra.mxu0 0.0
    %391 = vmatprep.subr.mxu0 0.0
    %392 = vmatpush2.msra.mxu0 0.0
    %393 = vmatprep.subr.mxu0 0.0
    %394 = vmatpush2.msra.mxu0 0.0
    %395 = vmatprep.subr.mxu0 0.0
    %396 = vmatpush2.msra.mxu0 0.0
    %397 = vmatprep.subr.mxu0 0.0
    %398 = vmatpush2.msra.mxu0 0.0
    %399 = vmatprep.subr.mxu0 0.0
    %400 = vmatpush2.msra.mxu0 0.0
    %401 = vmatprep.subr.mxu0 0.0
    %402 = vmatpush2.msra.mxu0 0.0
    %403 = vmatprep.mubr.f32.mxu0 0.0
    %404 = vmatmul.mubr.f32.gmra.mxu0 %v337
    %v405 = vpop.f32.mrf.mxu0
    %v406 = vadd.f32 0.0, %v405
    %v407 = vpop.f32.mrf.mxu0
    %v408 = vadd.f32 0.0, %v407
    %409 = vdwg.mxu0
    %v410 = vadd.f32 %v310, %v406
    %v411 = vadd.f32 %v312, %v408
    %v412 = vxor.u32 %v410, 2147483648
    %v413 = vxor.u32 %v411, 2147483648
    %v414 = vmul.f32 %v412, 1.442695
    %v415 = vpow.pop %v414
    %v416 = vmul.f32 %v413, 1.442695
    %v417 = vpow.pop %v416
    %v418 = vadd.f32 %v415, 1.0
    %v419 = vadd.f32 %v417, 1.0
    %v420 = vrcp.pop %v418
    %v421 = vmul.f32 1.0, %v420
    %v422 = vrcp.pop %v419
    %v423 = vmul.f32 1.0, %v422
    %v424 = vtanh.pop %v411
    %426 = vrot.lane.b32.xlu0 %v208, 64
    %v427 = vpop.permute.xlu0 %426
    %v429 = vmul.f32 %v421, %v427
    %431 = vrot.lane.b32.xlu0 %v424, 64
    %v432 = vpop.permute.xlu0 %431
    %v434 = vmul.f32 %v421, %v432
    %436 = vrot.lane.b32.xlu0 %v434, 64
    %v437 = vpop.permute.xlu0 %436
    %v439 = vadd.f32 %v429, %v437
    %v440 = vtanh.pop %v439
    %442 = vrot.lane.b32.xlu0 %v440, 64
    %v443 = vpop.permute.xlu0 %442
    %v445 = vmul.f32 %v423, %v443
    %v447 = vsel %vm125, %v445, 0
    %449 = vmatprep.subr.mxu0 0.0
    %450 = vmatpush1.msra.mxu0 0.0
    %451 = vmatprep.subr.mxu0 0.0
    %452 = vmatpush1.msra.mxu0 0.0
    %453 = vmatprep.subr.mxu0 0.0
    %454 = vmatpush1.msra.mxu0 0.0
    %455 = vmatprep.subr.mxu0 0.0
    %456 = vmatpush1.msra.mxu0 0.0
    %457 = vmatprep.subr.mxu0 0.0
    %458 = vmatpush1.msra.mxu0 0.0
    %459 = vmatprep.subr.mxu0 0.0
    %460 = vmatpush1.msra.mxu0 0.0
    %461 = vmatprep.subr.mxu0 0.0
    %462 = vmatpush1.msra.mxu0 0.0
    %463 = vmatprep.subr.mxu0 0.0
    %464 = vmatpush1.msra.mxu0 0.0
    %465 = vmatprep.subr.mxu0 %v335
    %466 = vmatpush1.msra.mxu0 %v334
    %467 = vmatprep.subr.mxu0 %v333
    %468 = vmatpush1.msra.mxu0 %v332
    %469 = vmatprep.subr.mxu0 %v331
    %470 = vmatpush1.msra.mxu0 %v330
    %471 = vmatprep.subr.mxu0 %v329
    %472 = vmatpush1.msra.mxu0 %v328
    %473 = vmatprep.subr.mxu0 %v327
    %474 = vmatpush1.msra.mxu0 %v326
    %475 = vmatprep.subr.mxu0 %v325
    %476 = vmatpush1.msra.mxu0 %v324
    %477 = vmatprep.subr.mxu0 %v323
    %478 = vmatpush1.msra.mxu0 %v322
    %479 = vmatprep.subr.mxu0 %v321
    %480 = vmatpush1.msra.mxu0 %v320
    %481 = vmatprep.subr.mxu0 0.0
    %482 = vmatpush2.msra.mxu0 0.0
    %483 = vmatprep.subr.mxu0 0.0
    %484 = vmatpush2.msra.mxu0 0.0
    %485 = vmatprep.subr.mxu0 0.0
    %486 = vmatpush2.msra.mxu0 0.0
    %487 = vmatprep.subr.mxu0 0.0
    %488 = vmatpush2.msra.mxu0 0.0
    %489 = vmatprep.subr.mxu0 0.0
    %490 = vmatpush2.msra.mxu0 0.0
    %491 = vmatprep.subr.mxu0 0.0
    %492 = vmatpush2.msra.mxu0 0.0
    %493 = vmatprep.subr.mxu0 0.0
    %494 = vmatpush2.msra.mxu0 0.0
    %495 = vmatprep.subr.mxu0 0.0
    %496 = vmatpush2.msra.mxu0 0.0
    %497 = vmatprep.subr.mxu0 0.0
    %498 = vmatpush2.msra.mxu0 0.0
    %499 = vmatprep.subr.mxu0 0.0
    %500 = vmatpush2.msra.mxu0 0.0
    %501 = vmatprep.subr.mxu0 0.0
    %502 = vmatpush2.msra.mxu0 0.0
    %503 = vmatprep.subr.mxu0 0.0
    %504 = vmatpush2.msra.mxu0 0.0
    %505 = vmatprep.subr.mxu0 0.0
    %506 = vmatpush2.msra.mxu0 0.0
    %507 = vmatprep.subr.mxu0 0.0
    %508 = vmatpush2.msra.mxu0 0.0
    %509 = vmatprep.subr.mxu0 0.0
    %510 = vmatpush2.msra.mxu0 0.0
    %511 = vmatprep.subr.mxu0 0.0
    %512 = vmatpush2.msra.mxu0 0.0
    %513 = vmatprep.mubr.f32.mxu0 0.0
    %514 = vmatmul.mubr.f32.gmra.mxu0 %v447
    %v515 = vpop.f32.mrf.mxu0
    %v516 = vadd.f32 0.0, %v515
    %v517 = vpop.f32.mrf.mxu0
    %v518 = vadd.f32 0.0, %v517
    %519 = vdwg.mxu0
    %v522 = vrot.slane %v516, 6
    %v523 = vrot.slane %v518, 6
    %v526 = vadd.f32 %v310, %v522
    %v527 = vadd.f32 %v312, %v523
    %v528 = vxor.u32 %v526, 2147483648
    %v529 = vxor.u32 %v527, 2147483648
    %v530 = vmul.f32 %v528, 1.442695
    %v531 = vpow.pop %v530
    %v532 = vmul.f32 %v529, 1.442695
    %v533 = vpow.pop %v532
    %v534 = vadd.f32 %v531, 1.0
    %v535 = vadd.f32 %v533, 1.0
    %v536 = vrcp.pop %v534
    %v537 = vmul.f32 1.0, %v536
    %v538 = vrcp.pop %v535
    %v539 = vmul.f32 1.0, %v538
    %v540 = vtanh.pop %v527
    %v542 = vrot.slane %v439, 6
    %v544 = vmul.f32 %v537, %v542
    %546 = vrot.lane.b32.xlu0 %v540, 64
    %v547 = vpop.permute.xlu0 %546
    %v549 = vmul.f32 %v537, %v547
    %551 = vrot.lane.b32.xlu0 %v549, 64
    %v552 = vpop.permute.xlu0 %551
    %v554 = vadd.f32 %v544, %v552
    %v555 = vtanh.pop %v554
    %557 = vrot.lane.b32.xlu0 %v555, 64
    %v558 = vpop.permute.xlu0 %557
    %v560 = vmul.f32 %v539, %v558
    %v562 = vrot.slane %v560, 2
    %v563 = vsel %vm125, %v562, 0
    %565 = vmatprep.subr.mxu0 0.0
    %566 = vmatpush1.msra.mxu0 0.0
    %567 = vmatprep.subr.mxu0 0.0
    %568 = vmatpush1.msra.mxu0 0.0
    %569 = vmatprep.subr.mxu0 0.0
    %570 = vmatpush1.msra.mxu0 0.0
    %571 = vmatprep.subr.mxu0 0.0
    %572 = vmatpush1.msra.mxu0 0.0
    %573 = vmatprep.subr.mxu0 0.0
    %574 = vmatpush1.msra.mxu0 0.0
    %575 = vmatprep.subr.mxu0 0.0
    %576 = vmatpush1.msra.mxu0 0.0
    %577 = vmatprep.subr.mxu0 0.0
    %578 = vmatpush1.msra.mxu0 0.0
    %579 = vmatprep.subr.mxu0 0.0
    %580 = vmatpush1.msra.mxu0 0.0
    %581 = vmatprep.subr.mxu0 %v335
    %582 = vmatpush1.msra.mxu0 %v334
    %583 = vmatprep.subr.mxu0 %v333
    %584 = vmatpush1.msra.mxu0 %v332
    %585 = vmatprep.subr.mxu0 %v331
    %586 = vmatpush1.msra.mxu0 %v330
    %587 = vmatprep.subr.mxu0 %v329
    %588 = vmatpush1.msra.mxu0 %v328
    %589 = vmatprep.subr.mxu0 %v327
    %590 = vmatpush1.msra.mxu0 %v326
    %591 = vmatprep.subr.mxu0 %v325
    %592 = vmatpush1.msra.mxu0 %v324
    %593 = vmatprep.subr.mxu0 %v323
    %594 = vmatpush1.msra.mxu0 %v322
    %595 = vmatprep.subr.mxu0 %v321
    %596 = vmatpush1.msra.mxu0 %v320
    %597 = vmatprep.subr.mxu0 0.0
    %598 = vmatpush2.msra.mxu0 0.0
    %599 = vmatprep.subr.mxu0 0.0
    %600 = vmatpush2.msra.mxu0 0.0
    %601 = vmatprep.subr.mxu0 0.0
    %602 = vmatpush2.msra.mxu0 0.0
    %603 = vmatprep.subr.mxu0 0.0
    %604 = vmatpush2.msra.mxu0 0.0
    %605 = vmatprep.subr.mxu0 0.0
    %606 = vmatpush2.msra.mxu0 0.0
    %607 = vmatprep.subr.mxu0 0.0
    %608 = vmatpush2.msra.mxu0 0.0
    %609 = vmatprep.subr.mxu0 0.0
    %610 = vmatpush2.msra.mxu0 0.0
    %611 = vmatprep.subr.mxu0 0.0
    %612 = vmatpush2.msra.mxu0 0.0
    %613 = vmatprep.subr.mxu0 0.0
    %614 = vmatpush2.msra.mxu0 0.0
    %615 = vmatprep.subr.mxu0 0.0
    %616 = vmatpush2.msra.mxu0 0.0
    %617 = vmatprep.subr.mxu0 0.0
    %618 = vmatpush2.msra.mxu0 0.0
    %619 = vmatprep.subr.mxu0 0.0
    %620 = vmatpush2.msra.mxu0 0.0
    %621 = vmatprep.subr.mxu0 0.0
    %622 = vmatpush2.msra.mxu0 0.0
    %623 = vmatprep.subr.mxu0 0.0
    %624 = vmatpush2.msra.mxu0 0.0
    %625 = vmatprep.subr.mxu0 0.0
    %626 = vmatpush2.msra.mxu0 0.0
    %627 = vmatprep.subr.mxu0 0.0
    %628 = vmatpush2.msra.mxu0 0.0
    %629 = vmatprep.mubr.f32.mxu0 0.0
    %630 = vmatmul.mubr.f32.gmra.mxu0 %v563
    %v631 = vpop.f32.mrf.mxu0
    %v632 = vadd.f32 0.0, %v631
    %v633 = vpop.f32.mrf.mxu0
    %v634 = vadd.f32 0.0, %v633
    %635 = vdwg.mxu0
    %v638 = vrot.slane %v632, 4
    %v639 = vrot.slane %v634, 4
    %v642 = vadd.f32 %v310, %v638
    %v643 = vadd.f32 %v312, %v639
    %v644 = vxor.u32 %v642, 2147483648
    %v645 = vxor.u32 %v643, 2147483648
    %v646 = vmul.f32 %v644, 1.442695
    %v647 = vpow.pop %v646
    %v648 = vmul.f32 %v645, 1.442695
    %v649 = vpow.pop %v648
    %v650 = vadd.f32 %v647, 1.0
    %v651 = vadd.f32 %v649, 1.0
    %v652 = vrcp.pop %v650
    %v653 = vmul.f32 1.0, %v652
    %v654 = vrcp.pop %v651
    %v655 = vmul.f32 1.0, %v654
    %v656 = vtanh.pop %v643
    %v658 = vrot.slane %v554, 6
    %v660 = vmul.f32 %v653, %v658
    %662 = vrot.lane.b32.xlu0 %v656, 64
    %v663 = vpop.permute.xlu0 %662
    %v665 = vmul.f32 %v653, %v663
    %667 = vrot.lane.b32.xlu0 %v665, 64
    %v668 = vpop.permute.xlu0 %667
    %v670 = vadd.f32 %v660, %v668
    %v671 = vtanh.pop %v670
    %673 = vrot.lane.b32.xlu0 %v671, 64
    %v674 = vpop.permute.xlu0 %673
    %v676 = vmul.f32 %v655, %v674
    %v678 = vrot.slane %v676, 4
    %v679 = vsel %vm125, %v678, 0
    %681 = vmatprep.subr.mxu0 0.0
    %682 = vmatpush1.msra.mxu0 0.0
    %683 = vmatprep.subr.mxu0 0.0
    %684 = vmatpush1.msra.mxu0 0.0
    %685 = vmatprep.subr.mxu0 0.0
    %686 = vmatpush1.msra.mxu0 0.0
    %687 = vmatprep.subr.mxu0 0.0
    %688 = vmatpush1.msra.mxu0 0.0
    %689 = vmatprep.subr.mxu0 0.0
    %690 = vmatpush1.msra.mxu0 0.0
    %691 = vmatprep.subr.mxu0 0.0
    %692 = vmatpush1.msra.mxu0 0.0
    %693 = vmatprep.subr.mxu0 0.0
    %694 = vmatpush1.msra.mxu0 0.0
    %695 = vmatprep.subr.mxu0 0.0
    %696 = vmatpush1.msra.mxu0 0.0
    %697 = vmatprep.subr.mxu0 %v335
    %698 = vmatpush1.msra.mxu0 %v334
    %699 = vmatprep.subr.mxu0 %v333
    %700 = vmatpush1.msra.mxu0 %v332
    %701 = vmatprep.subr.mxu0 %v331
    %702 = vmatpush1.msra.mxu0 %v330
    %703 = vmatprep.subr.mxu0 %v329
    %704 = vmatpush1.msra.mxu0 %v328
    %705 = vmatprep.subr.mxu0 %v327
    %706 = vmatpush1.msra.mxu0 %v326
    %707 = vmatprep.subr.mxu0 %v325
    %708 = vmatpush1.msra.mxu0 %v324
    %709 = vmatprep.subr.mxu0 %v323
    %710 = vmatpush1.msra.mxu0 %v322
    %711 = vmatprep.subr.mxu0 %v321
    %712 = vmatpush1.msra.mxu0 %v320
    %713 = vmatprep.subr.mxu0 0.0
    %714 = vmatpush2.msra.mxu0 0.0
    %715 = vmatprep.subr.mxu0 0.0
    %716 = vmatpush2.msra.mxu0 0.0
    %717 = vmatprep.subr.mxu0 0.0
    %718 = vmatpush2.msra.mxu0 0.0
    %719 = vmatprep.subr.mxu0 0.0
    %720 = vmatpush2.msra.mxu0 0.0
    %721 = vmatprep.subr.mxu0 0.0
    %722 = vmatpush2.msra.mxu0 0.0
    %723 = vmatprep.subr.mxu0 0.0
    %724 = vmatpush2.msra.mxu0 0.0
    %725 = vmatprep.subr.mxu0 0.0
    %726 = vmatpush2.msra.mxu0 0.0
    %727 = vmatprep.subr.mxu0 0.0
    %728 = vmatpush2.msra.mxu0 0.0
    %729 = vmatprep.subr.mxu0 0.0
    %730 = vmatpush2.msra.mxu0 0.0
    %731 = vmatprep.subr.mxu0 0.0
    %732 = vmatpush2.msra.mxu0 0.0
    %733 = vmatprep.subr.mxu0 0.0
    %734 = vmatpush2.msra.mxu0 0.0
    %735 = vmatprep.subr.mxu0 0.0
    %736 = vmatpush2.msra.mxu0 0.0
    %737 = vmatprep.subr.mxu0 0.0
    %738 = vmatpush2.msra.mxu0 0.0
    %739 = vmatprep.subr.mxu0 0.0
    %740 = vmatpush2.msra.mxu0 0.0
    %741 = vmatprep.subr.mxu0 0.0
    %742 = vmatpush2.msra.mxu0 0.0
    %743 = vmatprep.subr.mxu0 0.0
    %744 = vmatpush2.msra.mxu0 0.0
    %745 = vmatprep.mubr.f32.mxu0 0.0
    %746 = vmatmul.mubr.f32.gmra.mxu0 %v679
    %v747 = vpop.f32.mrf.mxu0
    %v748 = vadd.f32 0.0, %v747
    %v749 = vpop.f32.mrf.mxu0
    %v750 = vadd.f32 0.0, %v749
    %751 = vdwg.mxu0
    %v754 = vrot.slane %v748, 2
    %v755 = vrot.slane %v750, 2
    %v758 = vadd.f32 %v310, %v754
    %v759 = vadd.f32 %v312, %v755
    %v760 = vxor.u32 %v758, 2147483648
    %v761 = vxor.u32 %v759, 2147483648
    %v762 = vmul.f32 %v760, 1.442695
    %v763 = vpow.pop %v762
    %v764 = vmul.f32 %v761, 1.442695
    %v765 = vpow.pop %v764
    %v766 = vadd.f32 %v763, 1.0
    %v767 = vadd.f32 %v765, 1.0
    %v768 = vrcp.pop %v766
    %v769 = vmul.f32 1.0, %v768
    %v770 = vrcp.pop %v767
    %v771 = vmul.f32 1.0, %v770
    %v772 = vtanh.pop %v759
    %v774 = vrot.slane %v670, 6
    %v776 = vmul.f32 %v769, %v774
    %778 = vrot.lane.b32.xlu0 %v772, 64
    %v779 = vpop.permute.xlu0 %778
    %v781 = vmul.f32 %v769, %v779
    %783 = vrot.lane.b32.xlu0 %v781, 64
    %v784 = vpop.permute.xlu0 %783
    %v786 = vadd.f32 %v776, %v784
    %v787 = vtanh.pop %v786
    %789 = vrot.lane.b32.xlu0 %v787, 64
    %v790 = vpop.permute.xlu0 %789
    %v792 = vmul.f32 %v771, %v790
    %v794 = vrot.slane %v792, 6
    %v795 = vsel %vm125, %v794, 0
    %797 = vmatprep.subr.mxu0 0.0
    %798 = vmatpush1.msra.mxu0 0.0
    %799 = vmatprep.subr.mxu0 0.0
    %800 = vmatpush1.msra.mxu0 0.0
    %801 = vmatprep.subr.mxu0 0.0
    %802 = vmatpush1.msra.mxu0 0.0
    %803 = vmatprep.subr.mxu0 0.0
    %804 = vmatpush1.msra.mxu0 0.0
    %805 = vmatprep.subr.mxu0 0.0
    %806 = vmatpush1.msra.mxu0 0.0
    %807 = vmatprep.subr.mxu0 0.0
    %808 = vmatpush1.msra.mxu0 0.0
    %809 = vmatprep.subr.mxu0 0.0
    %810 = vmatpush1.msra.mxu0 0.0
    %811 = vmatprep.subr.mxu0 0.0
    %812 = vmatpush1.msra.mxu0 0.0
    %813 = vmatprep.subr.mxu0 %v335
    %814 = vmatpush1.msra.mxu0 %v334
    %815 = vmatprep.subr.mxu0 %v333
    %816 = vmatpush1.msra.mxu0 %v332
    %817 = vmatprep.subr.mxu0 %v331
    %818 = vmatpush1.msra.mxu0 %v330
    %819 = vmatprep.subr.mxu0 %v329
    %820 = vmatpush1.msra.mxu0 %v328
    %821 = vmatprep.subr.mxu0 %v327
    %822 = vmatpush1.msra.mxu0 %v326
    %823 = vmatprep.subr.mxu0 %v325
    %824 = vmatpush1.msra.mxu0 %v324
    %825 = vmatprep.subr.mxu0 %v323
    %826 = vmatpush1.msra.mxu0 %v322
    %827 = vmatprep.subr.mxu0 %v321
    %828 = vmatpush1.msra.mxu0 %v320
    %829 = vmatprep.subr.mxu0 0.0
    %830 = vmatpush2.msra.mxu0 0.0
    %831 = vmatprep.subr.mxu0 0.0
    %832 = vmatpush2.msra.mxu0 0.0
    %833 = vmatprep.subr.mxu0 0.0
    %834 = vmatpush2.msra.mxu0 0.0
    %835 = vmatprep.subr.mxu0 0.0
    %836 = vmatpush2.msra.mxu0 0.0
    %837 = vmatprep.subr.mxu0 0.0
    %838 = vmatpush2.msra.mxu0 0.0
    %839 = vmatprep.subr.mxu0 0.0
    %840 = vmatpush2.msra.mxu0 0.0
    %841 = vmatprep.subr.mxu0 0.0
    %842 = vmatpush2.msra.mxu0 0.0
    %843 = vmatprep.subr.mxu0 0.0
    %844 = vmatpush2.msra.mxu0 0.0
    %845 = vmatprep.subr.mxu0 0.0
    %846 = vmatpush2.msra.mxu0 0.0
    %847 = vmatprep.subr.mxu0 0.0
    %848 = vmatpush2.msra.mxu0 0.0
    %849 = vmatprep.subr.mxu0 0.0
    %850 = vmatpush2.msra.mxu0 0.0
    %851 = vmatprep.subr.mxu0 0.0
    %852 = vmatpush2.msra.mxu0 0.0
    %853 = vmatprep.subr.mxu0 0.0
    %854 = vmatpush2.msra.mxu0 0.0
    %855 = vmatprep.subr.mxu0 0.0
    %856 = vmatpush2.msra.mxu0 0.0
    %857 = vmatprep.subr.mxu0 0.0
    %858 = vmatpush2.msra.mxu0 0.0
    %859 = vmatprep.subr.mxu0 0.0
    %860 = vmatpush2.msra.mxu0 0.0
    %861 = vmatprep.mubr.f32.mxu0 0.0
    %862 = vmatmul.mubr.f32.gmra.mxu0 %v795
    %v863 = vpop.f32.mrf.mxu0
    %v864 = vadd.f32 0.0, %v863
    %v865 = vpop.f32.mrf.mxu0
    %v866 = vadd.f32 0.0, %v865
    %867 = vdwg.mxu0
    %v868 = vadd.f32 %v316, %v864
    %v869 = vadd.f32 %v318, %v866
    %v870 = vxor.u32 %v868, 2147483648
    %v871 = vxor.u32 %v869, 2147483648
    %v872 = vmul.f32 %v870, 1.442695
    %v873 = vpow.pop %v872
    %v874 = vmul.f32 %v871, 1.442695
    %v875 = vpow.pop %v874
    %v876 = vadd.f32 %v873, 1.0
    %v877 = vadd.f32 %v875, 1.0
    %v878 = vrcp.pop %v876
    %v879 = vmul.f32 1.0, %v878
    %v880 = vrcp.pop %v877
    %v881 = vmul.f32 1.0, %v880
    %v882 = vtanh.pop %v869
    %v884 = vrot.slane %v786, 6
    %v886 = vmul.f32 %v879, %v884
    %888 = vrot.lane.b32.xlu0 %v882, 64
    %v889 = vpop.permute.xlu0 %888
    %v891 = vmul.f32 %v879, %v889
    %893 = vrot.lane.b32.xlu0 %v891, 64
    %v894 = vpop.permute.xlu0 %893
    %v896 = vadd.f32 %v886, %v894
    %v897 = vtanh.pop %v896
    %899 = vrot.lane.b32.xlu0 %v897, 64
    %v900 = vpop.permute.xlu0 %899
    %v902 = vmul.f32 %v881, %v900
    %v904 = vsel %vm125, %v902, 0
    %906 = vmatprep.subr.mxu0 0.0
    %907 = vmatpush1.msra.mxu0 0.0
    %908 = vmatprep.subr.mxu0 0.0
    %909 = vmatpush1.msra.mxu0 0.0
    %910 = vmatprep.subr.mxu0 0.0
    %911 = vmatpush1.msra.mxu0 0.0
    %912 = vmatprep.subr.mxu0 0.0
    %913 = vmatpush1.msra.mxu0 0.0
    %914 = vmatprep.subr.mxu0 0.0
    %915 = vmatpush1.msra.mxu0 0.0
    %916 = vmatprep.subr.mxu0 0.0
    %917 = vmatpush1.msra.mxu0 0.0
    %918 = vmatprep.subr.mxu0 0.0
    %919 = vmatpush1.msra.mxu0 0.0
    %920 = vmatprep.subr.mxu0 0.0
    %921 = vmatpush1.msra.mxu0 0.0
    %922 = vmatprep.subr.mxu0 %v335
    %923 = vmatpush1.msra.mxu0 %v334
    %924 = vmatprep.subr.mxu0 %v333
    %925 = vmatpush1.msra.mxu0 %v332
    %926 = vmatprep.subr.mxu0 %v331
    %927 = vmatpush1.msra.mxu0 %v330
    %928 = vmatprep.subr.mxu0 %v329
    %929 = vmatpush1.msra.mxu0 %v328
    %930 = vmatprep.subr.mxu0 %v327
    %931 = vmatpush1.msra.mxu0 %v326
    %932 = vmatprep.subr.mxu0 %v325
    %933 = vmatpush1.msra.mxu0 %v324
    %934 = vmatprep.subr.mxu0 %v323
    %935 = vmatpush1.msra.mxu0 %v322
    %936 = vmatprep.subr.mxu0 %v321
    %937 = vmatpush1.msra.mxu0 %v320
    %938 = vmatprep.subr.mxu0 0.0
    %939 = vmatpush2.msra.mxu0 0.0
    %940 = vmatprep.subr.mxu0 0.0
    %941 = vmatpush2.msra.mxu0 0.0
    %942 = vmatprep.subr.mxu0 0.0
    %943 = vmatpush2.msra.mxu0 0.0
    %944 = vmatprep.subr.mxu0 0.0
    %945 = vmatpush2.msra.mxu0 0.0
    %946 = vmatprep.subr.mxu0 0.0
    %947 = vmatpush2.msra.mxu0 0.0
    %948 = vmatprep.subr.mxu0 0.0
    %949 = vmatpush2.msra.mxu0 0.0
    %950 = vmatprep.subr.mxu0 0.0
    %951 = vmatpush2.msra.mxu0 0.0
    %952 = vmatprep.subr.mxu0 0.0
    %953 = vmatpush2.msra.mxu0 0.0
    %954 = vmatprep.subr.mxu0 0.0
    %955 = vmatpush2.msra.mxu0 0.0
    %956 = vmatprep.subr.mxu0 0.0
    %957 = vmatpush2.msra.mxu0 0.0
    %958 = vmatprep.subr.mxu0 0.0
    %959 = vmatpush2.msra.mxu0 0.0
    %960 = vmatprep.subr.mxu0 0.0
    %961 = vmatpush2.msra.mxu0 0.0
    %962 = vmatprep.subr.mxu0 0.0
    %963 = vmatpush2.msra.mxu0 0.0
    %964 = vmatprep.subr.mxu0 0.0
    %965 = vmatpush2.msra.mxu0 0.0
    %966 = vmatprep.subr.mxu0 0.0
    %967 = vmatpush2.msra.mxu0 0.0
    %968 = vmatprep.subr.mxu0 0.0
    %969 = vmatpush2.msra.mxu0 0.0
    %970 = vmatprep.mubr.f32.mxu0 0.0
    %971 = vmatmul.mubr.f32.gmra.mxu0 %v904
    %v972 = vpop.f32.mrf.mxu0
    %v973 = vadd.f32 0.0, %v972
    %v974 = vpop.f32.mrf.mxu0
    %v975 = vadd.f32 0.0, %v974
    %976 = vdwg.mxu0
    %v979 = vrot.slane %v973, 6
    %v980 = vrot.slane %v975, 6
    %v983 = vadd.f32 %v316, %v979
    %v984 = vadd.f32 %v318, %v980
    %v985 = vxor.u32 %v983, 2147483648
    %v986 = vxor.u32 %v984, 2147483648
    %v987 = vmul.f32 %v985, 1.442695
    %v988 = vpow.pop %v987
    %v989 = vmul.f32 %v986, 1.442695
    %v990 = vpow.pop %v989
    %v991 = vadd.f32 %v988, 1.0
    %v992 = vadd.f32 %v990, 1.0
    %v993 = vrcp.pop %v991
    %v994 = vmul.f32 1.0, %v993
    %v995 = vrcp.pop %v992
    %v996 = vmul.f32 1.0, %v995
    %v997 = vtanh.pop %v984
    %v999 = vrot.slane %v896, 6
    %v1001 = vmul.f32 %v994, %v999
    %1003 = vrot.lane.b32.xlu0 %v997, 64
    %v1004 = vpop.permute.xlu0 %1003
    %v1006 = vmul.f32 %v994, %v1004
    %1008 = vrot.lane.b32.xlu0 %v1006, 64
    %v1009 = vpop.permute.xlu0 %1008
    %v1011 = vadd.f32 %v1001, %v1009
    %v1012 = vtanh.pop %v1011
    %1014 = vrot.lane.b32.xlu0 %v1012, 64
    %v1015 = vpop.permute.xlu0 %1014
    %v1017 = vmul.f32 %v996, %v1015
    %v1019 = vrot.slane %v1017, 2
    %v1020 = vsel %vm125, %v1019, 0
    %1022 = vmatprep.subr.mxu0 0.0
    %1023 = vmatpush1.msra.mxu0 0.0
    %1024 = vmatprep.subr.mxu0 0.0
    %1025 = vmatpush1.msra.mxu0 0.0
    %1026 = vmatprep.subr.mxu0 0.0
    %1027 = vmatpush1.msra.mxu0 0.0
    %1028 = vmatprep.subr.mxu0 0.0
    %1029 = vmatpush1.msra.mxu0 0.0
    %1030 = vmatprep.subr.mxu0 0.0
    %1031 = vmatpush1.msra.mxu0 0.0
    %1032 = vmatprep.subr.mxu0 0.0
    %1033 = vmatpush1.msra.mxu0 0.0
    %1034 = vmatprep.subr.mxu0 0.0
    %1035 = vmatpush1.msra.mxu0 0.0
    %1036 = vmatprep.subr.mxu0 0.0
    %1037 = vmatpush1.msra.mxu0 0.0
    %1038 = vmatprep.subr.mxu0 %v335
    %1039 = vmatpush1.msra.mxu0 %v334
    %1040 = vmatprep.subr.mxu0 %v333
    %1041 = vmatpush1.msra.mxu0 %v332
    %1042 = vmatprep.subr.mxu0 %v331
    %1043 = vmatpush1.msra.mxu0 %v330
    %1044 = vmatprep.subr.mxu0 %v329
    %1045 = vmatpush1.msra.mxu0 %v328
    %1046 = vmatprep.subr.mxu0 %v327
    %1047 = vmatpush1.msra.mxu0 %v326
    %1048 = vmatprep.subr.mxu0 %v325
    %1049 = vmatpush1.msra.mxu0 %v324
    %1050 = vmatprep.subr.mxu0 %v323
    %1051 = vmatpush1.msra.mxu0 %v322
    %1052 = vmatprep.subr.mxu0 %v321
    %1053 = vmatpush1.msra.mxu0 %v320
    %1054 = vmatprep.subr.mxu0 0.0
    %1055 = vmatpush2.msra.mxu0 0.0
    %1056 = vmatprep.subr.mxu0 0.0
    %1057 = vmatpush2.msra.mxu0 0.0
    %1058 = vmatprep.subr.mxu0 0.0
    %1059 = vmatpush2.msra.mxu0 0.0
    %1060 = vmatprep.subr.mxu0 0.0
    %1061 = vmatpush2.msra.mxu0 0.0
    %1062 = vmatprep.subr.mxu0 0.0
    %1063 = vmatpush2.msra.mxu0 0.0
    %1064 = vmatprep.subr.mxu0 0.0
    %1065 = vmatpush2.msra.mxu0 0.0
    %1066 = vmatprep.subr.mxu0 0.0
    %1067 = vmatpush2.msra.mxu0 0.0
    %1068 = vmatprep.subr.mxu0 0.0
    %1069 = vmatpush2.msra.mxu0 0.0
    %1070 = vmatprep.subr.mxu0 0.0
    %1071 = vmatpush2.msra.mxu0 0.0
    %1072 = vmatprep.subr.mxu0 0.0
    %1073 = vmatpush2.msra.mxu0 0.0
    %1074 = vmatprep.subr.mxu0 0.0
    %1075 = vmatpush2.msra.mxu0 0.0
    %1076 = vmatprep.subr.mxu0 0.0
    %1077 = vmatpush2.msra.mxu0 0.0
    %1078 = vmatprep.subr.mxu0 0.0
    %1079 = vmatpush2.msra.mxu0 0.0
    %1080 = vmatprep.subr.mxu0 0.0
    %1081 = vmatpush2.msra.mxu0 0.0
    %1082 = vmatprep.subr.mxu0 0.0
    %1083 = vmatpush2.msra.mxu0 0.0
    %1084 = vmatprep.subr.mxu0 0.0
    %1085 = vmatpush2.msra.mxu0 0.0
    %1086 = vmatprep.mubr.f32.mxu0 0.0
    %1087 = vmatmul.mubr.f32.gmra.mxu0 %v1020
    %v1088 = vpop.f32.mrf.mxu0
    %v1089 = vadd.f32 0.0, %v1088
    %v1090 = vpop.f32.mrf.mxu0
    %v1091 = vadd.f32 0.0, %v1090
    %1092 = vdwg.mxu0
    %v1095 = vrot.slane %v1089, 4
    %v1096 = vrot.slane %v1091, 4
    %v1099 = vadd.f32 %v316, %v1095
    %v1100 = vadd.f32 %v318, %v1096
    %v1101 = vxor.u32 %v1099, 2147483648
    %v1102 = vxor.u32 %v1100, 2147483648
    %v1103 = vmul.f32 %v1101, 1.442695
    %v1104 = vpow.pop %v1103
    %v1105 = vmul.f32 %v1102, 1.442695
    %v1106 = vpow.pop %v1105
    %v1107 = vadd.f32 %v1104, 1.0
    %v1108 = vadd.f32 %v1106, 1.0
    %v1109 = vrcp.pop %v1107
    %v1110 = vmul.f32 1.0, %v1109
    %v1111 = vrcp.pop %v1108
    %v1112 = vmul.f32 1.0, %v1111
    %v1113 = vtanh.pop %v1100
    %v1115 = vrot.slane %v1011, 6
    %v1117 = vmul.f32 %v1110, %v1115
    %1119 = vrot.lane.b32.xlu0 %v1113, 64
    %v1120 = vpop.permute.xlu0 %1119
    %v1122 = vmul.f32 %v1110, %v1120
    %1124 = vrot.lane.b32.xlu0 %v1122, 64
    %v1125 = vpop.permute.xlu0 %1124
    %v1127 = vadd.f32 %v1117, %v1125
    %v1128 = vtanh.pop %v1127
    %1130 = vrot.lane.b32.xlu0 %v1128, 64
    %v1131 = vpop.permute.xlu0 %1130
    %v1133 = vmul.f32 %v1112, %v1131
    %v1135 = vrot.slane %v1133, 4
    %v1136 = vsel %vm125, %v1135, 0
    %1138 = vmatprep.subr.mxu0 0.0
    %1139 = vmatpush1.msra.mxu0 0.0
    %1140 = vmatprep.subr.mxu0 0.0
    %1141 = vmatpush1.msra.mxu0 0.0
    %1142 = vmatprep.subr.mxu0 0.0
    %1143 = vmatpush1.msra.mxu0 0.0
    %1144 = vmatprep.subr.mxu0 0.0
    %1145 = vmatpush1.msra.mxu0 0.0
    %1146 = vmatprep.subr.mxu0 0.0
    %1147 = vmatpush1.msra.mxu0 0.0
    %1148 = vmatprep.subr.mxu0 0.0
    %1149 = vmatpush1.msra.mxu0 0.0
    %1150 = vmatprep.subr.mxu0 0.0
    %1151 = vmatpush1.msra.mxu0 0.0
    %1152 = vmatprep.subr.mxu0 0.0
    %1153 = vmatpush1.msra.mxu0 0.0
    %1154 = vmatprep.subr.mxu0 %v335
    %1155 = vmatpush1.msra.mxu0 %v334
    %1156 = vmatprep.subr.mxu0 %v333
    %1157 = vmatpush1.msra.mxu0 %v332
    %1158 = vmatprep.subr.mxu0 %v331
    %1159 = vmatpush1.msra.mxu0 %v330
    %1160 = vmatprep.subr.mxu0 %v329
    %1161 = vmatpush1.msra.mxu0 %v328
    %1162 = vmatprep.subr.mxu0 %v327
    %1163 = vmatpush1.msra.mxu0 %v326
    %1164 = vmatprep.subr.mxu0 %v325
    %1165 = vmatpush1.msra.mxu0 %v324
    %1166 = vmatprep.subr.mxu0 %v323
    %1167 = vmatpush1.msra.mxu0 %v322
    %1168 = vmatprep.subr.mxu0 %v321
    %1169 = vmatpush1.msra.mxu0 %v320
    %1170 = vmatprep.subr.mxu0 0.0
    %1171 = vmatpush2.msra.mxu0 0.0
    %1172 = vmatprep.subr.mxu0 0.0
    %1173 = vmatpush2.msra.mxu0 0.0
    %1174 = vmatprep.subr.mxu0 0.0
    %1175 = vmatpush2.msra.mxu0 0.0
    %1176 = vmatprep.subr.mxu0 0.0
    %1177 = vmatpush2.msra.mxu0 0.0
    %1178 = vmatprep.subr.mxu0 0.0
    %1179 = vmatpush2.msra.mxu0 0.0
    %1180 = vmatprep.subr.mxu0 0.0
    %1181 = vmatpush2.msra.mxu0 0.0
    %1182 = vmatprep.subr.mxu0 0.0
    %1183 = vmatpush2.msra.mxu0 0.0
    %1184 = vmatprep.subr.mxu0 0.0
    %1185 = vmatpush2.msra.mxu0 0.0
    %1186 = vmatprep.subr.mxu0 0.0
    %1187 = vmatpush2.msra.mxu0 0.0
    %1188 = vmatprep.subr.mxu0 0.0
    %1189 = vmatpush2.msra.mxu0 0.0
    %1190 = vmatprep.subr.mxu0 0.0
    %1191 = vmatpush2.msra.mxu0 0.0
    %1192 = vmatprep.subr.mxu0 0.0
    %1193 = vmatpush2.msra.mxu0 0.0
    %1194 = vmatprep.subr.mxu0 0.0
    %1195 = vmatpush2.msra.mxu0 0.0
    %1196 = vmatprep.subr.mxu0 0.0
    %1197 = vmatpush2.msra.mxu0 0.0
    %1198 = vmatprep.subr.mxu0 0.0
    %1199 = vmatpush2.msra.mxu0 0.0
    %1200 = vmatprep.subr.mxu0 0.0
    %1201 = vmatpush2.msra.mxu0 0.0
    %1202 = vmatprep.mubr.f32.mxu0 0.0
    %1203 = vmatmul.mubr.f32.gmra.mxu0 %v1136
    %v1204 = vpop.f32.mrf.mxu0
    %v1205 = vadd.f32 0.0, %v1204
    %v1206 = vpop.f32.mrf.mxu0
    %v1207 = vadd.f32 0.0, %v1206
    %1208 = vdwg.mxu0
    %v1211 = vrot.slane %v1205, 2
    %v1212 = vrot.slane %v1207, 2
    %v1215 = vadd.f32 %v316, %v1211
    %v1216 = vadd.f32 %v318, %v1212
    %v1217 = vxor.u32 %v1215, 2147483648
    %v1218 = vxor.u32 %v1216, 2147483648
    %v1219 = vmul.f32 %v1217, 1.442695
    %v1220 = vpow.pop %v1219
    %v1221 = vmul.f32 %v1218, 1.442695
    %v1222 = vpow.pop %v1221
    %v1223 = vadd.f32 %v1220, 1.0
    %v1224 = vadd.f32 %v1222, 1.0
    %v1225 = vrcp.pop %v1223
    %v1226 = vmul.f32 1.0, %v1225
    %v1227 = vrcp.pop %v1224
    %v1228 = vmul.f32 1.0, %v1227
    %v1229 = vtanh.pop %v1216
    %v1231 = vrot.slane %v1127, 6
    %v1233 = vmul.f32 %v1226, %v1231
    %1235 = vrot.lane.b32.xlu0 %v1229, 64
    %v1236 = vpop.permute.xlu0 %1235
    %v1238 = vmul.f32 %v1226, %v1236
    %1240 = vrot.lane.b32.xlu0 %v1238, 64
    %v1241 = vpop.permute.xlu0 %1240
    %v1243 = vadd.f32 %v1233, %v1241
    %v1244 = vtanh.pop %v1243
    %1246 = vrot.lane.b32.xlu0 %v1244, 64
    %v1247 = vpop.permute.xlu0 %1246
    %v1249 = vmul.f32 %v1228, %v1247
    %vm1250 = vcmask 1041408
    %v1251 = vsel %vm1250, %v445, %v560
    %vm1252 = vcmask 1043456
    %v1253 = vsel %vm1252, %v1251, %v676
    %vm1254 = vcmask 1045504
    %v1255 = vsel %vm1254, %v1253, %v792
    %v1256 = vsel %vm1250, %v902, %v1017
    %v1257 = vsel %vm1252, %v1256, %v1133
    %v1258 = vsel %vm1254, %v1257, %v1249
    %v1259 = vadd.f32 %v1255, %v199
    %v1260 = vadd.f32 %v1258, %v204
    %v1261 = vld [vmem:[%s7] sm:$0xff]
    %v1262 = vld [vmem:[%s7 + $0x8] sm:$0xff]
    %v1263 = vld [vmem:[%s7 + $0x10] sm:$0xff]
    %v1264 = vld [vmem:[%s7 + $0x18] sm:$0xff]
    %v1265 = vld [vmem:[%s7 + $0x20] sm:$0xff]
    %v1266 = vld [vmem:[%s7 + $0x28] sm:$0xff]
    %v1267 = vld [vmem:[%s7 + $0x30] sm:$0xff]
    %v1268 = vld [vmem:[%s7 + $0x38] sm:$0xff]
    %v1269 = vld [vmem:[%s7 + $0x40] sm:$0xff]
    %v1270 = vld [vmem:[%s7 + $0x48] sm:$0xff]
    %v1271 = vld [vmem:[%s7 + $0x50] sm:$0xff]
    %v1272 = vld [vmem:[%s7 + $0x58] sm:$0xff]
    %v1273 = vld [vmem:[%s7 + $0x60] sm:$0xff]
    %v1274 = vld [vmem:[%s7 + $0x68] sm:$0xff]
    %v1275 = vld [vmem:[%s7 + $0x70] sm:$0xff]
    %v1276 = vld [vmem:[%s7 + $0x78] sm:$0xff]
    %v1277 = vld [vmem:[%s9] sm:$0x3]
    %v1279 = vlaneseq
    %v1280 = vshrl.u32 %v1279, 7
    %v1281 = vsub.s32 0, %v1280
    %v1282 = vrot.slane %v1277, %v1281
    %v1283 = vlaneseq
    %v1284 = vshrl.u32 %v1283, 7
    %v1285 = vsub.s32 1, %v1284
    %v1286 = vrot.slane %v1277, %v1285
    %v1290 = vsel %vm125, %v1259, 0
    %v1293 = vsel %vm125, %v1260, 0
    %1295 = vmatprep.subr.mxu0 0.0
    %1296 = vmatpush1.msra.mxu0 0.0
    %1297 = vmatprep.subr.mxu0 0.0
    %1298 = vmatpush1.msra.mxu0 0.0
    %1299 = vmatprep.subr.mxu0 0.0
    %1300 = vmatpush1.msra.mxu0 0.0
    %1301 = vmatprep.subr.mxu0 0.0
    %1302 = vmatpush1.msra.mxu0 0.0
    %1303 = vmatprep.subr.mxu0 0.0
    %1304 = vmatpush1.msra.mxu0 0.0
    %1305 = vmatprep.subr.mxu0 0.0
    %1306 = vmatpush1.msra.mxu0 0.0
    %1307 = vmatprep.subr.mxu0 0.0
    %1308 = vmatpush1.msra.mxu0 0.0
    %1309 = vmatprep.subr.mxu0 0.0
    %1310 = vmatpush1.msra.mxu0 0.0
    %1311 = vmatprep.subr.mxu0 %v1276
    %1312 = vmatpush1.msra.mxu0 %v1275
    %1313 = vmatprep.subr.mxu0 %v1274
    %1314 = vmatpush1.msra.mxu0 %v1273
    %1315 = vmatprep.subr.mxu0 %v1272
    %1316 = vmatpush1.msra.mxu0 %v1271
    %1317 = vmatprep.subr.mxu0 %v1270
    %1318 = vmatpush1.msra.mxu0 %v1269
    %1319 = vmatprep.subr.mxu0 %v1268
    %1320 = vmatpush1.msra.mxu0 %v1267
    %1321 = vmatprep.subr.mxu0 %v1266
    %1322 = vmatpush1.msra.mxu0 %v1265
    %1323 = vmatprep.subr.mxu0 %v1264
    %1324 = vmatpush1.msra.mxu0 %v1263
    %1325 = vmatprep.subr.mxu0 %v1262
    %1326 = vmatpush1.msra.mxu0 %v1261
    %1327 = vmatprep.subr.mxu0 0.0
    %1328 = vmatpush2.msra.mxu0 0.0
    %1329 = vmatprep.subr.mxu0 0.0
    %1330 = vmatpush2.msra.mxu0 0.0
    %1331 = vmatprep.subr.mxu0 0.0
    %1332 = vmatpush2.msra.mxu0 0.0
    %1333 = vmatprep.subr.mxu0 0.0
    %1334 = vmatpush2.msra.mxu0 0.0
    %1335 = vmatprep.subr.mxu0 0.0
    %1336 = vmatpush2.msra.mxu0 0.0
    %1337 = vmatprep.subr.mxu0 0.0
    %1338 = vmatpush2.msra.mxu0 0.0
    %1339 = vmatprep.subr.mxu0 0.0
    %1340 = vmatpush2.msra.mxu0 0.0
    %1341 = vmatprep.subr.mxu0 0.0
    %1342 = vmatpush2.msra.mxu0 0.0
    %1343 = vmatprep.subr.mxu0 0.0
    %1344 = vmatpush2.msra.mxu0 0.0
    %1345 = vmatprep.subr.mxu0 0.0
    %1346 = vmatpush2.msra.mxu0 0.0
    %1347 = vmatprep.subr.mxu0 0.0
    %1348 = vmatpush2.msra.mxu0 0.0
    %1349 = vmatprep.subr.mxu0 0.0
    %1350 = vmatpush2.msra.mxu0 0.0
    %1351 = vmatprep.subr.mxu0 0.0
    %1352 = vmatpush2.msra.mxu0 0.0
    %1353 = vmatprep.subr.mxu0 0.0
    %1354 = vmatpush2.msra.mxu0 0.0
    %1355 = vmatprep.subr.mxu0 0.0
    %1356 = vmatpush2.msra.mxu0 0.0
    %1357 = vmatprep.subr.mxu0 0.0
    %1358 = vmatpush2.msra.mxu0 0.0
    %1359 = vmatprep.mubr.f32.mxu0 0.0
    %1360 = vmatmul.mubr.f32.gmra.mxu0 %v1290
    %v1361 = vpop.f32.mrf.mxu0
    %v1362 = vadd.f32 %v1282, %v1361
    %v1363 = vpop.f32.mrf.mxu0
    %v1364 = vadd.f32 %v1286, %v1363
    %1365 = vmatprep.mubr.f32.mxu0 0.0
    %1366 = vmatmul.mubr.f32.gmra.mxu0 %v1293
    %v1367 = vpop.f32.mrf.mxu0
    %v1368 = vadd.f32 %v1282, %v1367
    %v1369 = vpop.f32.mrf.mxu0
    %v1370 = vadd.f32 %v1286, %v1369
    %1371 = vdwg.mxu0
    %v1372 = vld [vmem:[#allocation2] sm:$0xff]
    %v1373 = vld [vmem:[#allocation2 + $0x8] sm:$0xff]
    %v1374 = vld [vmem:[#allocation2 + $0x10] sm:$0xff]
    %v1375 = vld [vmem:[#allocation2 + $0x18] sm:$0xff]
    %v1376 = vld [vmem:[#allocation2 + $0x20] sm:$0xff]
    %v1377 = vld [vmem:[#allocation2 + $0x28] sm:$0xff]
    %v1378 = vld [vmem:[#allocation2 + $0x30] sm:$0xff]
    %v1379 = vld [vmem:[#allocation2 + $0x38] sm:$0xff]
    %v1380 = vld [vmem:[#allocation2 + $0x40] sm:$0xff]
    %v1381 = vld [vmem:[#allocation2 + $0x48] sm:$0xff]
    %v1382 = vld [vmem:[#allocation2 + $0x50] sm:$0xff]
    %v1383 = vld [vmem:[#allocation2 + $0x58] sm:$0xff]
    %v1384 = vld [vmem:[#allocation2 + $0x60] sm:$0xff]
    %v1385 = vld [vmem:[#allocation2 + $0x68] sm:$0xff]
    %v1386 = vld [vmem:[#allocation2 + $0x70] sm:$0xff]
    %v1387 = vld [vmem:[#allocation2 + $0x78] sm:$0xff]
    %v1389 = vrot.slane %v1249, 6
    %v1390 = vsel %vm125, %v1389, 0
    %1392 = vmatprep.subr.mxu0 0.0
    %1393 = vmatpush1.msra.mxu0 0.0
    %1394 = vmatprep.subr.mxu0 0.0
    %1395 = vmatpush1.msra.mxu0 0.0
    %1396 = vmatprep.subr.mxu0 0.0
    %1397 = vmatpush1.msra.mxu0 0.0
    %1398 = vmatprep.subr.mxu0 0.0
    %1399 = vmatpush1.msra.mxu0 0.0
    %1400 = vmatprep.subr.mxu0 0.0
    %1401 = vmatpush1.msra.mxu0 0.0
    %1402 = vmatprep.subr.mxu0 0.0
    %1403 = vmatpush1.msra.mxu0 0.0
    %1404 = vmatprep.subr.mxu0 0.0
    %1405 = vmatpush1.msra.mxu0 0.0
    %1406 = vmatprep.subr.mxu0 0.0
    %1407 = vmatpush1.msra.mxu0 0.0
    %1408 = vmatprep.subr.mxu0 %v1387
    %1409 = vmatpush1.msra.mxu0 %v1386
    %1410 = vmatprep.subr.mxu0 %v1385
    %1411 = vmatpush1.msra.mxu0 %v1384
    %1412 = vmatprep.subr.mxu0 %v1383
    %1413 = vmatpush1.msra.mxu0 %v1382
    %1414 = vmatprep.subr.mxu0 %v1381
    %1415 = vmatpush1.msra.mxu0 %v1380
    %1416 = vmatprep.subr.mxu0 %v1379
    %1417 = vmatpush1.msra.mxu0 %v1378
    %1418 = vmatprep.subr.mxu0 %v1377
    %1419 = vmatpush1.msra.mxu0 %v1376
    %1420 = vmatprep.subr.mxu0 %v1375
    %1421 = vmatpush1.msra.mxu0 %v1374
    %1422 = vmatprep.subr.mxu0 %v1373
    %1423 = vmatpush1.msra.mxu0 %v1372
    %1424 = vmatprep.subr.mxu0 0.0
    %1425 = vmatpush2.msra.mxu0 0.0
    %1426 = vmatprep.subr.mxu0 0.0
    %1427 = vmatpush2.msra.mxu0 0.0
    %1428 = vmatprep.subr.mxu0 0.0
    %1429 = vmatpush2.msra.mxu0 0.0
    %1430 = vmatprep.subr.mxu0 0.0
    %1431 = vmatpush2.msra.mxu0 0.0
    %1432 = vmatprep.subr.mxu0 0.0
    %1433 = vmatpush2.msra.mxu0 0.0
    %1434 = vmatprep.subr.mxu0 0.0
    %1435 = vmatpush2.msra.mxu0 0.0
    %1436 = vmatprep.subr.mxu0 0.0
    %1437 = vmatpush2.msra.mxu0 0.0
    %1438 = vmatprep.subr.mxu0 0.0
    %1439 = vmatpush2.msra.mxu0 0.0
    %1440 = vmatprep.subr.mxu0 0.0
    %1441 = vmatpush2.msra.mxu0 0.0
    %1442 = vmatprep.subr.mxu0 0.0
    %1443 = vmatpush2.msra.mxu0 0.0
    %1444 = vmatprep.subr.mxu0 0.0
    %1445 = vmatpush2.msra.mxu0 0.0
    %1446 = vmatprep.subr.mxu0 0.0
    %1447 = vmatpush2.msra.mxu0 0.0
    %1448 = vmatprep.subr.mxu0 0.0
    %1449 = vmatpush2.msra.mxu0 0.0
    %1450 = vmatprep.subr.mxu0 0.0
    %1451 = vmatpush2.msra.mxu0 0.0
    %1452 = vmatprep.subr.mxu0 0.0
    %1453 = vmatpush2.msra.mxu0 0.0
    %1454 = vmatprep.subr.mxu0 0.0
    %1455 = vmatpush2.msra.mxu0 0.0
    %1456 = vmatprep.mubr.f32.mxu0 0.0
    %1457 = vmatmul.mubr.f32.gmra.mxu0 %v1390
    %v1458 = vpop.f32.mrf.mxu0
    %v1459 = vadd.f32 0.0, %v1458
    %v1460 = vpop.f32.mrf.mxu0
    %v1461 = vadd.f32 0.0, %v1460
    %1462 = vdwg.mxu0
    %v1463 = vadd.f32 %v1362, %v1459
    %v1464 = vadd.f32 %v1364, %v1461
    %v1465 = vxor.u32 %v1463, 2147483648
    %v1466 = vxor.u32 %v1464, 2147483648
    %v1467 = vmul.f32 %v1465, 1.442695
    %v1468 = vpow.pop %v1467
    %v1469 = vmul.f32 %v1466, 1.442695
    %v1470 = vpow.pop %v1469
    %v1471 = vadd.f32 %v1468, 1.0
    %v1472 = vadd.f32 %v1470, 1.0
    %v1473 = vrcp.pop %v1471
    %v1474 = vmul.f32 1.0, %v1473
    %v1475 = vrcp.pop %v1472
    %v1476 = vmul.f32 1.0, %v1475
    %v1477 = vtanh.pop %v1464
    %v1479 = vrot.slane %v1243, 6
    %v1481 = vmul.f32 %v1474, %v1479
    %1483 = vrot.lane.b32.xlu0 %v1477, 64
    %v1484 = vpop.permute.xlu0 %1483
    %v1486 = vmul.f32 %v1474, %v1484
    %1488 = vrot.lane.b32.xlu0 %v1486, 64
    %v1489 = vpop.permute.xlu0 %1488
    %v1491 = vadd.f32 %v1481, %v1489
    %v1492 = vtanh.pop %v1491
    %1494 = vrot.lane.b32.xlu0 %v1492, 64
    %v1495 = vpop.permute.xlu0 %1494
    %v1497 = vmul.f32 %v1476, %v1495
    %v1499 = vsel %vm125, %v1497, 0
    %1501 = vmatprep.subr.mxu0 0.0
    %1502 = vmatpush1.msra.mxu0 0.0
    %1503 = vmatprep.subr.mxu0 0.0
    %1504 = vmatpush1.msra.mxu0 0.0
    %1505 = vmatprep.subr.mxu0 0.0
    %1506 = vmatpush1.msra.mxu0 0.0
    %1507 = vmatprep.subr.mxu0 0.0
    %1508 = vmatpush1.msra.mxu0 0.0
    %1509 = vmatprep.subr.mxu0 0.0
    %1510 = vmatpush1.msra.mxu0 0.0
    %1511 = vmatprep.subr.mxu0 0.0
    %1512 = vmatpush1.msra.mxu0 0.0
    %1513 = vmatprep.subr.mxu0 0.0
    %1514 = vmatpush1.msra.mxu0 0.0
    %1515 = vmatprep.subr.mxu0 0.0
    %1516 = vmatpush1.msra.mxu0 0.0
    %1517 = vmatprep.subr.mxu0 %v1387
    %1518 = vmatpush1.msra.mxu0 %v1386
    %1519 = vmatprep.subr.mxu0 %v1385
    %1520 = vmatpush1.msra.mxu0 %v1384
    %1521 = vmatprep.subr.mxu0 %v1383
    %1522 = vmatpush1.msra.mxu0 %v1382
    %1523 = vmatprep.subr.mxu0 %v1381
    %1524 = vmatpush1.msra.mxu0 %v1380
    %1525 = vmatprep.subr.mxu0 %v1379
    %1526 = vmatpush1.msra.mxu0 %v1378
    %1527 = vmatprep.subr.mxu0 %v1377
    %1528 = vmatpush1.msra.mxu0 %v1376
    %1529 = vmatprep.subr.mxu0 %v1375
    %1530 = vmatpush1.msra.mxu0 %v1374
    %1531 = vmatprep.subr.mxu0 %v1373
    %1532 = vmatpush1.msra.mxu0 %v1372
    %1533 = vmatprep.subr.mxu0 0.0
    %1534 = vmatpush2.msra.mxu0 0.0
    %1535 = vmatprep.subr.mxu0 0.0
    %1536 = vmatpush2.msra.mxu0 0.0
    %1537 = vmatprep.subr.mxu0 0.0
    %1538 = vmatpush2.msra.mxu0 0.0
    %1539 = vmatprep.subr.mxu0 0.0
    %1540 = vmatpush2.msra.mxu0 0.0
    %1541 = vmatprep.subr.mxu0 0.0
    %1542 = vmatpush2.msra.mxu0 0.0
    %1543 = vmatprep.subr.mxu0 0.0
    %1544 = vmatpush2.msra.mxu0 0.0
    %1545 = vmatprep.subr.mxu0 0.0
    %1546 = vmatpush2.msra.mxu0 0.0
    %1547 = vmatprep.subr.mxu0 0.0
    %1548 = vmatpush2.msra.mxu0 0.0
    %1549 = vmatprep.subr.mxu0 0.0
    %1550 = vmatpush2.msra.mxu0 0.0
    %1551 = vmatprep.subr.mxu0 0.0
    %1552 = vmatpush2.msra.mxu0 0.0
    %1553 = vmatprep.subr.mxu0 0.0
    %1554 = vmatpush2.msra.mxu0 0.0
    %1555 = vmatprep.subr.mxu0 0.0
    %1556 = vmatpush2.msra.mxu0 0.0
    %1557 = vmatprep.subr.mxu0 0.0
    %1558 = vmatpush2.msra.mxu0 0.0
    %1559 = vmatprep.subr.mxu0 0.0
    %1560 = vmatpush2.msra.mxu0 0.0
    %1561 = vmatprep.subr.mxu0 0.0
    %1562 = vmatpush2.msra.mxu0 0.0
    %1563 = vmatprep.subr.mxu0 0.0
    %1564 = vmatpush2.msra.mxu0 0.0
    %1565 = vmatprep.mubr.f32.mxu0 0.0
    %1566 = vmatmul.mubr.f32.gmra.mxu0 %v1499
    %v1567 = vpop.f32.mrf.mxu0
    %v1568 = vadd.f32 0.0, %v1567
    %v1569 = vpop.f32.mrf.mxu0
    %v1570 = vadd.f32 0.0, %v1569
    %1571 = vdwg.mxu0
    %v1574 = vrot.slane %v1568, 6
    %v1575 = vrot.slane %v1570, 6
    %v1578 = vadd.f32 %v1362, %v1574
    %v1579 = vadd.f32 %v1364, %v1575
    %v1580 = vxor.u32 %v1578, 2147483648
    %v1581 = vxor.u32 %v1579, 2147483648
    %v1582 = vmul.f32 %v1580, 1.442695
    %v1583 = vpow.pop %v1582
    %v1584 = vmul.f32 %v1581, 1.442695
    %v1585 = vpow.pop %v1584
    %v1586 = vadd.f32 %v1583, 1.0
    %v1587 = vadd.f32 %v1585, 1.0
    %v1588 = vrcp.pop %v1586
    %v1589 = vmul.f32 1.0, %v1588
    %v1590 = vrcp.pop %v1587
    %v1591 = vmul.f32 1.0, %v1590
    %v1592 = vtanh.pop %v1579
    %v1594 = vrot.slane %v1491, 6
    %v1596 = vmul.f32 %v1589, %v1594
    %1598 = vrot.lane.b32.xlu0 %v1592, 64
    %v1599 = vpop.permute.xlu0 %1598
    %v1601 = vmul.f32 %v1589, %v1599
    %1603 = vrot.lane.b32.xlu0 %v1601, 64
    %v1604 = vpop.permute.xlu0 %1603
    %v1606 = vadd.f32 %v1596, %v1604
    %v1607 = vtanh.pop %v1606
    %1609 = vrot.lane.b32.xlu0 %v1607, 64
    %v1610 = vpop.permute.xlu0 %1609
    %v1612 = vmul.f32 %v1591, %v1610
    %v1614 = vrot.slane %v1612, 2
    %v1615 = vsel %vm125, %v1614, 0
    %1617 = vmatprep.subr.mxu0 0.0
    %1618 = vmatpush1.msra.mxu0 0.0
    %1619 = vmatprep.subr.mxu0 0.0
    %1620 = vmatpush1.msra.mxu0 0.0
    %1621 = vmatprep.subr.mxu0 0.0
    %1622 = vmatpush1.msra.mxu0 0.0
    %1623 = vmatprep.subr.mxu0 0.0
    %1624 = vmatpush1.msra.mxu0 0.0
    %1625 = vmatprep.subr.mxu0 0.0
    %1626 = vmatpush1.msra.mxu0 0.0
    %1627 = vmatprep.subr.mxu0 0.0
    %1628 = vmatpush1.msra.mxu0 0.0
    %1629 = vmatprep.subr.mxu0 0.0
    %1630 = vmatpush1.msra.mxu0 0.0
    %1631 = vmatprep.subr.mxu0 0.0
    %1632 = vmatpush1.msra.mxu0 0.0
    %1633 = vmatprep.subr.mxu0 %v1387
    %1634 = vmatpush1.msra.mxu0 %v1386
    %1635 = vmatprep.subr.mxu0 %v1385
    %1636 = vmatpush1.msra.mxu0 %v1384
    %1637 = vmatprep.subr.mxu0 %v1383
    %1638 = vmatpush1.msra.mxu0 %v1382
    %1639 = vmatprep.subr.mxu0 %v1381
    %1640 = vmatpush1.msra.mxu0 %v1380
    %1641 = vmatprep.subr.mxu0 %v1379
    %1642 = vmatpush1.msra.mxu0 %v1378
    %1643 = vmatprep.subr.mxu0 %v1377
    %1644 = vmatpush1.msra.mxu0 %v1376
    %1645 = vmatprep.subr.mxu0 %v1375
    %1646 = vmatpush1.msra.mxu0 %v1374
    %1647 = vmatprep.subr.mxu0 %v1373
    %1648 = vmatpush1.msra.mxu0 %v1372
    %1649 = vmatprep.subr.mxu0 0.0
    %1650 = vmatpush2.msra.mxu0 0.0
    %1651 = vmatprep.subr.mxu0 0.0
    %1652 = vmatpush2.msra.mxu0 0.0
    %1653 = vmatprep.subr.mxu0 0.0
    %1654 = vmatpush2.msra.mxu0 0.0
    %1655 = vmatprep.subr.mxu0 0.0
    %1656 = vmatpush2.msra.mxu0 0.0
    %1657 = vmatprep.subr.mxu0 0.0
    %1658 = vmatpush2.msra.mxu0 0.0
    %1659 = vmatprep.subr.mxu0 0.0
    %1660 = vmatpush2.msra.mxu0 0.0
    %1661 = vmatprep.subr.mxu0 0.0
    %1662 = vmatpush2.msra.mxu0 0.0
    %1663 = vmatprep.subr.mxu0 0.0
    %1664 = vmatpush2.msra.mxu0 0.0
    %1665 = vmatprep.subr.mxu0 0.0
    %1666 = vmatpush2.msra.mxu0 0.0
    %1667 = vmatprep.subr.mxu0 0.0
    %1668 = vmatpush2.msra.mxu0 0.0
    %1669 = vmatprep.subr.mxu0 0.0
    %1670 = vmatpush2.msra.mxu0 0.0
    %1671 = vmatprep.subr.mxu0 0.0
    %1672 = vmatpush2.msra.mxu0 0.0
    %1673 = vmatprep.subr.mxu0 0.0
    %1674 = vmatpush2.msra.mxu0 0.0
    %1675 = vmatprep.subr.mxu0 0.0
    %1676 = vmatpush2.msra.mxu0 0.0
    %1677 = vmatprep.subr.mxu0 0.0
    %1678 = vmatpush2.msra.mxu0 0.0
    %1679 = vmatprep.subr.mxu0 0.0
    %1680 = vmatpush2.msra.mxu0 0.0
    %1681 = vmatprep.mubr.f32.mxu0 0.0
    %1682 = vmatmul.mubr.f32.gmra.mxu0 %v1615
    %v1683 = vpop.f32.mrf.mxu0
    %v1684 = vadd.f32 0.0, %v1683
    %v1685 = vpop.f32.mrf.mxu0
    %v1686 = vadd.f32 0.0, %v1685
    %1687 = vdwg.mxu0
    %v1690 = vrot.slane %v1684, 4
    %v1691 = vrot.slane %v1686, 4
    %v1694 = vadd.f32 %v1362, %v1690
    %v1695 = vadd.f32 %v1364, %v1691
    %v1696 = vxor.u32 %v1694, 2147483648
    %v1697 = vxor.u32 %v1695, 2147483648
    %v1698 = vmul.f32 %v1696, 1.442695
    %v1699 = vpow.pop %v1698
    %v1700 = vmul.f32 %v1697, 1.442695
    %v1701 = vpow.pop %v1700
    %v1702 = vadd.f32 %v1699, 1.0
    %v1703 = vadd.f32 %v1701, 1.0
    %v1704 = vrcp.pop %v1702
    %v1705 = vmul.f32 1.0, %v1704
    %v1706 = vrcp.pop %v1703
    %v1707 = vmul.f32 1.0, %v1706
    %v1708 = vtanh.pop %v1695
    %v1710 = vrot.slane %v1606, 6
    %v1712 = vmul.f32 %v1705, %v1710
    %1714 = vrot.lane.b32.xlu0 %v1708, 64
    %v1715 = vpop.permute.xlu0 %1714
    %v1717 = vmul.f32 %v1705, %v1715
    %1719 = vrot.lane.b32.xlu0 %v1717, 64
    %v1720 = vpop.permute.xlu0 %1719
    %v1722 = vadd.f32 %v1712, %v1720
    %v1723 = vtanh.pop %v1722
    %1725 = vrot.lane.b32.xlu0 %v1723, 64
    %v1726 = vpop.permute.xlu0 %1725
    %v1728 = vmul.f32 %v1707, %v1726
    %v1730 = vrot.slane %v1728, 4
    %v1731 = vsel %vm125, %v1730, 0
    %1733 = vmatprep.subr.mxu0 0.0
    %1734 = vmatpush1.msra.mxu0 0.0
    %1735 = vmatprep.subr.mxu0 0.0
    %1736 = vmatpush1.msra.mxu0 0.0
    %1737 = vmatprep.subr.mxu0 0.0
    %1738 = vmatpush1.msra.mxu0 0.0
    %1739 = vmatprep.subr.mxu0 0.0
    %1740 = vmatpush1.msra.mxu0 0.0
    %1741 = vmatprep.subr.mxu0 0.0
    %1742 = vmatpush1.msra.mxu0 0.0
    %1743 = vmatprep.subr.mxu0 0.0
    %1744 = vmatpush1.msra.mxu0 0.0
    %1745 = vmatprep.subr.mxu0 0.0
    %1746 = vmatpush1.msra.mxu0 0.0
    %1747 = vmatprep.subr.mxu0 0.0
    %1748 = vmatpush1.msra.mxu0 0.0
    %1749 = vmatprep.subr.mxu0 %v1387
    %1750 = vmatpush1.msra.mxu0 %v1386
    %1751 = vmatprep.subr.mxu0 %v1385
    %1752 = vmatpush1.msra.mxu0 %v1384
    %1753 = vmatprep.subr.mxu0 %v1383
    %1754 = vmatpush1.msra.mxu0 %v1382
    %1755 = vmatprep.subr.mxu0 %v1381
    %1756 = vmatpush1.msra.mxu0 %v1380
    %1757 = vmatprep.subr.mxu0 %v1379
    %1758 = vmatpush1.msra.mxu0 %v1378
    %1759 = vmatprep.subr.mxu0 %v1377
    %1760 = vmatpush1.msra.mxu0 %v1376
    %1761 = vmatprep.subr.mxu0 %v1375
    %1762 = vmatpush1.msra.mxu0 %v1374
    %1763 = vmatprep.subr.mxu0 %v1373
    %1764 = vmatpush1.msra.mxu0 %v1372
    %1765 = vmatprep.subr.mxu0 0.0
    %1766 = vmatpush2.msra.mxu0 0.0
    %1767 = vmatprep.subr.mxu0 0.0
    %1768 = vmatpush2.msra.mxu0 0.0
    %1769 = vmatprep.subr.mxu0 0.0
    %1770 = vmatpush2.msra.mxu0 0.0
    %1771 = vmatprep.subr.mxu0 0.0
    %1772 = vmatpush2.msra.mxu0 0.0
    %1773 = vmatprep.subr.mxu0 0.0
    %1774 = vmatpush2.msra.mxu0 0.0
    %1775 = vmatprep.subr.mxu0 0.0
    %1776 = vmatpush2.msra.mxu0 0.0
    %1777 = vmatprep.subr.mxu0 0.0
    %1778 = vmatpush2.msra.mxu0 0.0
    %1779 = vmatprep.subr.mxu0 0.0
    %1780 = vmatpush2.msra.mxu0 0.0
    %1781 = vmatprep.subr.mxu0 0.0
    %1782 = vmatpush2.msra.mxu0 0.0
    %1783 = vmatprep.subr.mxu0 0.0
    %1784 = vmatpush2.msra.mxu0 0.0
    %1785 = vmatprep.subr.mxu0 0.0
    %1786 = vmatpush2.msra.mxu0 0.0
    %1787 = vmatprep.subr.mxu0 0.0
    %1788 = vmatpush2.msra.mxu0 0.0
    %1789 = vmatprep.subr.mxu0 0.0
    %1790 = vmatpush2.msra.mxu0 0.0
    %1791 = vmatprep.subr.mxu0 0.0
    %1792 = vmatpush2.msra.mxu0 0.0
    %1793 = vmatprep.subr.mxu0 0.0
    %1794 = vmatpush2.msra.mxu0 0.0
    %1795 = vmatprep.subr.mxu0 0.0
    %1796 = vmatpush2.msra.mxu0 0.0
    %1797 = vmatprep.mubr.f32.mxu0 0.0
    %1798 = vmatmul.mubr.f32.gmra.mxu0 %v1731
    %v1799 = vpop.f32.mrf.mxu0
    %v1800 = vadd.f32 0.0, %v1799
    %v1801 = vpop.f32.mrf.mxu0
    %v1802 = vadd.f32 0.0, %v1801
    %1803 = vdwg.mxu0
    %v1806 = vrot.slane %v1800, 2
    %v1807 = vrot.slane %v1802, 2
    %v1810 = vadd.f32 %v1362, %v1806
    %v1811 = vadd.f32 %v1364, %v1807
    %v1812 = vxor.u32 %v1810, 2147483648
    %v1813 = vxor.u32 %v1811, 2147483648
    %v1814 = vmul.f32 %v1812, 1.442695
    %v1815 = vpow.pop %v1814
    %v1816 = vmul.f32 %v1813, 1.442695
    %v1817 = vpow.pop %v1816
    %v1818 = vadd.f32 %v1815, 1.0
    %v1819 = vadd.f32 %v1817, 1.0
    %v1820 = vrcp.pop %v1818
    %v1821 = vmul.f32 1.0, %v1820
    %v1822 = vrcp.pop %v1819
    %v1823 = vmul.f32 1.0, %v1822
    %v1824 = vtanh.pop %v1811
    %v1826 = vrot.slane %v1722, 6
    %v1828 = vmul.f32 %v1821, %v1826
    %1830 = vrot.lane.b32.xlu0 %v1824, 64
    %v1831 = vpop.permute.xlu0 %1830
    %v1833 = vmul.f32 %v1821, %v1831
    %1835 = vrot.lane.b32.xlu0 %v1833, 64
    %v1836 = vpop.permute.xlu0 %1835
    %v1838 = vadd.f32 %v1828, %v1836
    %v1839 = vtanh.pop %v1838
    %1841 = vrot.lane.b32.xlu0 %v1839, 64
    %v1842 = vpop.permute.xlu0 %1841
    %v1844 = vmul.f32 %v1823, %v1842
    %v1846 = vrot.slane %v1844, 6
    %v1847 = vsel %vm125, %v1846, 0
    %1849 = vmatprep.subr.mxu0 0.0
    %1850 = vmatpush1.msra.mxu0 0.0
    %1851 = vmatprep.subr.mxu0 0.0
    %1852 = vmatpush1.msra.mxu0 0.0
    %1853 = vmatprep.subr.mxu0 0.0
    %1854 = vmatpush1.msra.mxu0 0.0
    %1855 = vmatprep.subr.mxu0 0.0
    %1856 = vmatpush1.msra.mxu0 0.0
    %1857 = vmatprep.subr.mxu0 0.0
    %1858 = vmatpush1.msra.mxu0 0.0
    %1859 = vmatprep.subr.mxu0 0.0
    %1860 = vmatpush1.msra.mxu0 0.0
    %1861 = vmatprep.subr.mxu0 0.0
    %1862 = vmatpush1.msra.mxu0 0.0
    %1863 = vmatprep.subr.mxu0 0.0
    %1864 = vmatpush1.msra.mxu0 0.0
    %1865 = vmatprep.subr.mxu0 %v1387
    %1866 = vmatpush1.msra.mxu0 %v1386
    %1867 = vmatprep.subr.mxu0 %v1385
    %1868 = vmatpush1.msra.mxu0 %v1384
    %1869 = vmatprep.subr.mxu0 %v1383
    %1870 = vmatpush1.msra.mxu0 %v1382
    %1871 = vmatprep.subr.mxu0 %v1381
    %1872 = vmatpush1.msra.mxu0 %v1380
    %1873 = vmatprep.subr.mxu0 %v1379
    %1874 = vmatpush1.msra.mxu0 %v1378
    %1875 = vmatprep.subr.mxu0 %v1377
    %1876 = vmatpush1.msra.mxu0 %v1376
    %1877 = vmatprep.subr.mxu0 %v1375
    %1878 = vmatpush1.msra.mxu0 %v1374
    %1879 = vmatprep.subr.mxu0 %v1373
    %1880 = vmatpush1.msra.mxu0 %v1372
    %1881 = vmatprep.subr.mxu0 0.0
    %1882 = vmatpush2.msra.mxu0 0.0
    %1883 = vmatprep.subr.mxu0 0.0
    %1884 = vmatpush2.msra.mxu0 0.0
    %1885 = vmatprep.subr.mxu0 0.0
    %1886 = vmatpush2.msra.mxu0 0.0
    %1887 = vmatprep.subr.mxu0 0.0
    %1888 = vmatpush2.msra.mxu0 0.0
    %1889 = vmatprep.subr.mxu0 0.0
    %1890 = vmatpush2.msra.mxu0 0.0
    %1891 = vmatprep.subr.mxu0 0.0
    %1892 = vmatpush2.msra.mxu0 0.0
    %1893 = vmatprep.subr.mxu0 0.0
    %1894 = vmatpush2.msra.mxu0 0.0
    %1895 = vmatprep.subr.mxu0 0.0
    %1896 = vmatpush2.msra.mxu0 0.0
    %1897 = vmatprep.subr.mxu0 0.0
    %1898 = vmatpush2.msra.mxu0 0.0
    %1899 = vmatprep.subr.mxu0 0.0
    %1900 = vmatpush2.msra.mxu0 0.0
    %1901 = vmatprep.subr.mxu0 0.0
    %1902 = vmatpush2.msra.mxu0 0.0
    %1903 = vmatprep.subr.mxu0 0.0
    %1904 = vmatpush2.msra.mxu0 0.0
    %1905 = vmatprep.subr.mxu0 0.0
    %1906 = vmatpush2.msra.mxu0 0.0
    %1907 = vmatprep.subr.mxu0 0.0
    %1908 = vmatpush2.msra.mxu0 0.0
    %1909 = vmatprep.subr.mxu0 0.0
    %1910 = vmatpush2.msra.mxu0 0.0
    %1911 = vmatprep.subr.mxu0 0.0
    %1912 = vmatpush2.msra.mxu0 0.0
    %1913 = vmatprep.mubr.f32.mxu0 0.0
    %1914 = vmatmul.mubr.f32.gmra.mxu0 %v1847
    %v1915 = vpop.f32.mrf.mxu0
    %v1916 = vadd.f32 0.0, %v1915
    %v1917 = vpop.f32.mrf.mxu0
    %v1918 = vadd.f32 0.0, %v1917
    %1919 = vdwg.mxu0
    %v1920 = vadd.f32 %v1368, %v1916
    %v1921 = vadd.f32 %v1370, %v1918
    %v1922 = vxor.u32 %v1920, 2147483648
    %v1923 = vxor.u32 %v1921, 2147483648
    %v1924 = vmul.f32 %v1922, 1.442695
    %v1925 = vpow.pop %v1924
    %v1926 = vmul.f32 %v1923, 1.442695
    %v1927 = vpow.pop %v1926
    %v1928 = vadd.f32 %v1925, 1.0
    %v1929 = vadd.f32 %v1927, 1.0
    %v1930 = vrcp.pop %v1928
    %v1931 = vmul.f32 1.0, %v1930
    %v1932 = vrcp.pop %v1929
    %v1933 = vmul.f32 1.0, %v1932
    %v1934 = vtanh.pop %v1921
    %v1936 = vrot.slane %v1838, 6
    %v1938 = vmul.f32 %v1931, %v1936
    %1940 = vrot.lane.b32.xlu0 %v1934, 64
    %v1941 = vpop.permute.xlu0 %1940
    %v1943 = vmul.f32 %v1931, %v1941
    %1945 = vrot.lane.b32.xlu0 %v1943, 64
    %v1946 = vpop.permute.xlu0 %1945
    %v1948 = vadd.f32 %v1938, %v1946
    %v1949 = vtanh.pop %v1948
    %1951 = vrot.lane.b32.xlu0 %v1949, 64
    %v1952 = vpop.permute.xlu0 %1951
    %v1954 = vmul.f32 %v1933, %v1952
    %v1956 = vsel %vm125, %v1954, 0
    %1958 = vmatprep.subr.mxu0 0.0
    %1959 = vmatpush1.msra.mxu0 0.0
    %1960 = vmatprep.subr.mxu0 0.0
    %1961 = vmatpush1.msra.mxu0 0.0
    %1962 = vmatprep.subr.mxu0 0.0
    %1963 = vmatpush1.msra.mxu0 0.0
    %1964 = vmatprep.subr.mxu0 0.0
    %1965 = vmatpush1.msra.mxu0 0.0
    %1966 = vmatprep.subr.mxu0 0.0
    %1967 = vmatpush1.msra.mxu0 0.0
    %1968 = vmatprep.subr.mxu0 0.0
    %1969 = vmatpush1.msra.mxu0 0.0
    %1970 = vmatprep.subr.mxu0 0.0
    %1971 = vmatpush1.msra.mxu0 0.0
    %1972 = vmatprep.subr.mxu0 0.0
    %1973 = vmatpush1.msra.mxu0 0.0
    %1974 = vmatprep.subr.mxu0 %v1387
    %1975 = vmatpush1.msra.mxu0 %v1386
    %1976 = vmatprep.subr.mxu0 %v1385
    %1977 = vmatpush1.msra.mxu0 %v1384
    %1978 = vmatprep.subr.mxu0 %v1383
    %1979 = vmatpush1.msra.mxu0 %v1382
    %1980 = vmatprep.subr.mxu0 %v1381
    %1981 = vmatpush1.msra.mxu0 %v1380
    %1982 = vmatprep.subr.mxu0 %v1379
    %1983 = vmatpush1.msra.mxu0 %v1378
    %1984 = vmatprep.subr.mxu0 %v1377
    %1985 = vmatpush1.msra.mxu0 %v1376
    %1986 = vmatprep.subr.mxu0 %v1375
    %1987 = vmatpush1.msra.mxu0 %v1374
    %1988 = vmatprep.subr.mxu0 %v1373
    %1989 = vmatpush1.msra.mxu0 %v1372
    %1990 = vmatprep.subr.mxu0 0.0
    %1991 = vmatpush2.msra.mxu0 0.0
    %1992 = vmatprep.subr.mxu0 0.0
    %1993 = vmatpush2.msra.mxu0 0.0
    %1994 = vmatprep.subr.mxu0 0.0
    %1995 = vmatpush2.msra.mxu0 0.0
    %1996 = vmatprep.subr.mxu0 0.0
    %1997 = vmatpush2.msra.mxu0 0.0
    %1998 = vmatprep.subr.mxu0 0.0
    %1999 = vmatpush2.msra.mxu0 0.0
    %2000 = vmatprep.subr.mxu0 0.0
    %2001 = vmatpush2.msra.mxu0 0.0
    %2002 = vmatprep.subr.mxu0 0.0
    %2003 = vmatpush2.msra.mxu0 0.0
    %2004 = vmatprep.subr.mxu0 0.0
    %2005 = vmatpush2.msra.mxu0 0.0
    %2006 = vmatprep.subr.mxu0 0.0
    %2007 = vmatpush2.msra.mxu0 0.0
    %2008 = vmatprep.subr.mxu0 0.0
    %2009 = vmatpush2.msra.mxu0 0.0
    %2010 = vmatprep.subr.mxu0 0.0
    %2011 = vmatpush2.msra.mxu0 0.0
    %2012 = vmatprep.subr.mxu0 0.0
    %2013 = vmatpush2.msra.mxu0 0.0
    %2014 = vmatprep.subr.mxu0 0.0
    %2015 = vmatpush2.msra.mxu0 0.0
    %2016 = vmatprep.subr.mxu0 0.0
    %2017 = vmatpush2.msra.mxu0 0.0
    %2018 = vmatprep.subr.mxu0 0.0
    %2019 = vmatpush2.msra.mxu0 0.0
    %2020 = vmatprep.subr.mxu0 0.0
    %2021 = vmatpush2.msra.mxu0 0.0
    %2022 = vmatprep.mubr.f32.mxu0 0.0
    %2023 = vmatmul.mubr.f32.gmra.mxu0 %v1956
    %v2024 = vpop.f32.mrf.mxu0
    %v2025 = vadd.f32 0.0, %v2024
    %v2026 = vpop.f32.mrf.mxu0
    %v2027 = vadd.f32 0.0, %v2026
    %2028 = vdwg.mxu0
    %v2031 = vrot.slane %v2025, 6
    %v2032 = vrot.slane %v2027, 6
    %v2035 = vadd.f32 %v1368, %v2031
    %v2036 = vadd.f32 %v1370, %v2032
    %v2037 = vxor.u32 %v2035, 2147483648
    %v2038 = vxor.u32 %v2036, 2147483648
    %v2039 = vmul.f32 %v2037, 1.442695
    %v2040 = vpow.pop %v2039
    %v2041 = vmul.f32 %v2038, 1.442695
    %v2042 = vpow.pop %v2041
    %v2043 = vadd.f32 %v2040, 1.0
    %v2044 = vadd.f32 %v2042, 1.0
    %v2045 = vrcp.pop %v2043
    %v2046 = vmul.f32 1.0, %v2045
    %v2047 = vrcp.pop %v2044
    %v2048 = vmul.f32 1.0, %v2047
    %v2049 = vtanh.pop %v2036
    %v2051 = vrot.slane %v1948, 6
    %v2053 = vmul.f32 %v2046, %v2051
    %2055 = vrot.lane.b32.xlu0 %v2049, 64
    %v2056 = vpop.permute.xlu0 %2055
    %v2058 = vmul.f32 %v2046, %v2056
    %2060 = vrot.lane.b32.xlu0 %v2058, 64
    %v2061 = vpop.permute.xlu0 %2060
    %v2063 = vadd.f32 %v2053, %v2061
    %v2064 = vtanh.pop %v2063
    %2066 = vrot.lane.b32.xlu0 %v2064, 64
    %v2067 = vpop.permute.xlu0 %2066
    %v2069 = vmul.f32 %v2048, %v2067
    %v2071 = vrot.slane %v2069, 2
    %v2072 = vsel %vm125, %v2071, 0
    %2074 = vmatprep.subr.mxu0 0.0
    %2075 = vmatpush1.msra.mxu0 0.0
    %2076 = vmatprep.subr.mxu0 0.0
    %2077 = vmatpush1.msra.mxu0 0.0
    %2078 = vmatprep.subr.mxu0 0.0
    %2079 = vmatpush1.msra.mxu0 0.0
    %2080 = vmatprep.subr.mxu0 0.0
    %2081 = vmatpush1.msra.mxu0 0.0
    %2082 = vmatprep.subr.mxu0 0.0
    %2083 = vmatpush1.msra.mxu0 0.0
    %2084 = vmatprep.subr.mxu0 0.0
    %2085 = vmatpush1.msra.mxu0 0.0
    %2086 = vmatprep.subr.mxu0 0.0
    %2087 = vmatpush1.msra.mxu0 0.0
    %2088 = vmatprep.subr.mxu0 0.0
    %2089 = vmatpush1.msra.mxu0 0.0
    %2090 = vmatprep.subr.mxu0 %v1387
    %2091 = vmatpush1.msra.mxu0 %v1386
    %2092 = vmatprep.subr.mxu0 %v1385
    %2093 = vmatpush1.msra.mxu0 %v1384
    %2094 = vmatprep.subr.mxu0 %v1383
    %2095 = vmatpush1.msra.mxu0 %v1382
    %2096 = vmatprep.subr.mxu0 %v1381
    %2097 = vmatpush1.msra.mxu0 %v1380
    %2098 = vmatprep.subr.mxu0 %v1379
    %2099 = vmatpush1.msra.mxu0 %v1378
    %2100 = vmatprep.subr.mxu0 %v1377
    %2101 = vmatpush1.msra.mxu0 %v1376
    %2102 = vmatprep.subr.mxu0 %v1375
    %2103 = vmatpush1.msra.mxu0 %v1374
    %2104 = vmatprep.subr.mxu0 %v1373
    %2105 = vmatpush1.msra.mxu0 %v1372
    %2106 = vmatprep.subr.mxu0 0.0
    %2107 = vmatpush2.msra.mxu0 0.0
    %2108 = vmatprep.subr.mxu0 0.0
    %2109 = vmatpush2.msra.mxu0 0.0
    %2110 = vmatprep.subr.mxu0 0.0
    %2111 = vmatpush2.msra.mxu0 0.0
    %2112 = vmatprep.subr.mxu0 0.0
    %2113 = vmatpush2.msra.mxu0 0.0
    %2114 = vmatprep.subr.mxu0 0.0
    %2115 = vmatpush2.msra.mxu0 0.0
    %2116 = vmatprep.subr.mxu0 0.0
    %2117 = vmatpush2.msra.mxu0 0.0
    %2118 = vmatprep.subr.mxu0 0.0
    %2119 = vmatpush2.msra.mxu0 0.0
    %2120 = vmatprep.subr.mxu0 0.0
    %2121 = vmatpush2.msra.mxu0 0.0
    %2122 = vmatprep.subr.mxu0 0.0
    %2123 = vmatpush2.msra.mxu0 0.0
    %2124 = vmatprep.subr.mxu0 0.0
    %2125 = vmatpush2.msra.mxu0 0.0
    %2126 = vmatprep.subr.mxu0 0.0
    %2127 = vmatpush2.msra.mxu0 0.0
    %2128 = vmatprep.subr.mxu0 0.0
    %2129 = vmatpush2.msra.mxu0 0.0
    %2130 = vmatprep.subr.mxu0 0.0
    %2131 = vmatpush2.msra.mxu0 0.0
    %2132 = vmatprep.subr.mxu0 0.0
    %2133 = vmatpush2.msra.mxu0 0.0
    %2134 = vmatprep.subr.mxu0 0.0
    %2135 = vmatpush2.msra.mxu0 0.0
    %2136 = vmatprep.subr.mxu0 0.0
    %2137 = vmatpush2.msra.mxu0 0.0
    %2138 = vmatprep.mubr.f32.mxu0 0.0
    %2139 = vmatmul.mubr.f32.gmra.mxu0 %v2072
    %v2140 = vpop.f32.mrf.mxu0
    %v2141 = vadd.f32 0.0, %v2140
    %v2142 = vpop.f32.mrf.mxu0
    %v2143 = vadd.f32 0.0, %v2142
    %2144 = vdwg.mxu0
    %v2147 = vrot.slane %v2141, 4
    %v2148 = vrot.slane %v2143, 4
    %v2151 = vadd.f32 %v1368, %v2147
    %v2152 = vadd.f32 %v1370, %v2148
    %v2153 = vxor.u32 %v2151, 2147483648
    %v2154 = vxor.u32 %v2152, 2147483648
    %v2155 = vmul.f32 %v2153, 1.442695
    %v2156 = vpow.pop %v2155
    %v2157 = vmul.f32 %v2154, 1.442695
    %v2158 = vpow.pop %v2157
    %v2159 = vadd.f32 %v2156, 1.0
    %v2160 = vadd.f32 %v2158, 1.0
    %v2161 = vrcp.pop %v2159
    %v2162 = vmul.f32 1.0, %v2161
    %v2163 = vrcp.pop %v2160
    %v2164 = vmul.f32 1.0, %v2163
    %v2165 = vtanh.pop %v2152
    %v2167 = vrot.slane %v2063, 6
    %v2169 = vmul.f32 %v2162, %v2167
    %2171 = vrot.lane.b32.xlu0 %v2165, 64
    %v2172 = vpop.permute.xlu0 %2171
    %v2174 = vmul.f32 %v2162, %v2172
    %2176 = vrot.lane.b32.xlu0 %v2174, 64
    %v2177 = vpop.permute.xlu0 %2176
    %v2179 = vadd.f32 %v2169, %v2177
    %v2180 = vtanh.pop %v2179
    %2182 = vrot.lane.b32.xlu0 %v2180, 64
    %v2183 = vpop.permute.xlu0 %2182
    %v2185 = vmul.f32 %v2164, %v2183
    %v2187 = vrot.slane %v2185, 4
    %v2188 = vsel %vm125, %v2187, 0
    %2190 = vmatprep.subr.mxu0 0.0
    %2191 = vmatpush1.msra.mxu0 0.0
    %2192 = vmatprep.subr.mxu0 0.0
    %2193 = vmatpush1.msra.mxu0 0.0
    %2194 = vmatprep.subr.mxu0 0.0
    %2195 = vmatpush1.msra.mxu0 0.0
    %2196 = vmatprep.subr.mxu0 0.0
    %2197 = vmatpush1.msra.mxu0 0.0
    %2198 = vmatprep.subr.mxu0 0.0
    %2199 = vmatpush1.msra.mxu0 0.0
    %2200 = vmatprep.subr.mxu0 0.0
    %2201 = vmatpush1.msra.mxu0 0.0
    %2202 = vmatprep.subr.mxu0 0.0
    %2203 = vmatpush1.msra.mxu0 0.0
    %2204 = vmatprep.subr.mxu0 0.0
    %2205 = vmatpush1.msra.mxu0 0.0
    %2206 = vmatprep.subr.mxu0 %v1387
    %2207 = vmatpush1.msra.mxu0 %v1386
    %2208 = vmatprep.subr.mxu0 %v1385
    %2209 = vmatpush1.msra.mxu0 %v1384
    %2210 = vmatprep.subr.mxu0 %v1383
    %2211 = vmatpush1.msra.mxu0 %v1382
    %2212 = vmatprep.subr.mxu0 %v1381
    %2213 = vmatpush1.msra.mxu0 %v1380
    %2214 = vmatprep.subr.mxu0 %v1379
    %2215 = vmatpush1.msra.mxu0 %v1378
    %2216 = vmatprep.subr.mxu0 %v1377
    %2217 = vmatpush1.msra.mxu0 %v1376
    %2218 = vmatprep.subr.mxu0 %v1375
    %2219 = vmatpush1.msra.mxu0 %v1374
    %2220 = vmatprep.subr.mxu0 %v1373
    %2221 = vmatpush1.msra.mxu0 %v1372
    %2222 = vmatprep.subr.mxu0 0.0
    %2223 = vmatpush2.msra.mxu0 0.0
    %2224 = vmatprep.subr.mxu0 0.0
    %2225 = vmatpush2.msra.mxu0 0.0
    %2226 = vmatprep.subr.mxu0 0.0
    %2227 = vmatpush2.msra.mxu0 0.0
    %2228 = vmatprep.subr.mxu0 0.0
    %2229 = vmatpush2.msra.mxu0 0.0
    %2230 = vmatprep.subr.mxu0 0.0
    %2231 = vmatpush2.msra.mxu0 0.0
    %2232 = vmatprep.subr.mxu0 0.0
    %2233 = vmatpush2.msra.mxu0 0.0
    %2234 = vmatprep.subr.mxu0 0.0
    %2235 = vmatpush2.msra.mxu0 0.0
    %2236 = vmatprep.subr.mxu0 0.0
    %2237 = vmatpush2.msra.mxu0 0.0
    %2238 = vmatprep.subr.mxu0 0.0
    %2239 = vmatpush2.msra.mxu0 0.0
    %2240 = vmatprep.subr.mxu0 0.0
    %2241 = vmatpush2.msra.mxu0 0.0
    %2242 = vmatprep.subr.mxu0 0.0
    %2243 = vmatpush2.msra.mxu0 0.0
    %2244 = vmatprep.subr.mxu0 0.0
    %2245 = vmatpush2.msra.mxu0 0.0
    %2246 = vmatprep.subr.mxu0 0.0
    %2247 = vmatpush2.msra.mxu0 0.0
    %2248 = vmatprep.subr.mxu0 0.0
    %2249 = vmatpush2.msra.mxu0 0.0
    %2250 = vmatprep.subr.mxu0 0.0
    %2251 = vmatpush2.msra.mxu0 0.0
    %2252 = vmatprep.subr.mxu0 0.0
    %2253 = vmatpush2.msra.mxu0 0.0
    %2254 = vmatprep.mubr.f32.mxu0 0.0
    %2255 = vmatmul.mubr.f32.gmra.mxu0 %v2188
    %v2256 = vpop.f32.mrf.mxu0
    %v2257 = vadd.f32 0.0, %v2256
    %v2258 = vpop.f32.mrf.mxu0
    %v2259 = vadd.f32 0.0, %v2258
    %2260 = vdwg.mxu0
    %v2263 = vrot.slane %v2257, 2
    %v2264 = vrot.slane %v2259, 2
    %v2267 = vadd.f32 %v1368, %v2263
    %v2268 = vadd.f32 %v1370, %v2264
    %v2269 = vxor.u32 %v2267, 2147483648
    %v2270 = vxor.u32 %v2268, 2147483648
    %v2271 = vmul.f32 %v2269, 1.442695
    %v2272 = vpow.pop %v2271
    %v2273 = vmul.f32 %v2270, 1.442695
    %v2274 = vpow.pop %v2273
    %v2275 = vadd.f32 %v2272, 1.0
    %v2276 = vadd.f32 %v2274, 1.0
    %v2277 = vrcp.pop %v2275
    %v2278 = vmul.f32 1.0, %v2277
    %v2279 = vrcp.pop %v2276
    %v2280 = vmul.f32 1.0, %v2279
    %v2281 = vtanh.pop %v2268
    %v2283 = vrot.slane %v2179, 6
    %v2285 = vmul.f32 %v2278, %v2283
    %2287 = vrot.lane.b32.xlu0 %v2281, 64
    %v2288 = vpop.permute.xlu0 %2287
    %v2290 = vmul.f32 %v2278, %v2288
    %2292 = vrot.lane.b32.xlu0 %v2290, 64
    %v2293 = vpop.permute.xlu0 %2292
    %v2295 = vadd.f32 %v2285, %v2293
    %v2296 = vtanh.pop %v2295
    %2298 = vrot.lane.b32.xlu0 %v2296, 64
    %v2299 = vpop.permute.xlu0 %2298
    %v2301 = vmul.f32 %v2280, %v2299
    %v2302 = vsel %vm1250, %v1497, %v1612
    %v2303 = vsel %vm1252, %v2302, %v1728
    %v2304 = vsel %vm1254, %v2303, %v1844
    %v2305 = vsel %vm1250, %v1954, %v2069
    %v2306 = vsel %vm1252, %v2305, %v2185
    %v2307 = vsel %vm1254, %v2306, %v2301
    %v2308 = vadd.f32 %v2304, %v1259
    %v2309 = vadd.f32 %v2307, %v1260
    %v2311 = vrot.slane %v2308, 1
    %v2313 = vrot.slane %v2308, 2
    %v2315 = vrot.slane %v2308, 3
    %v2318 = vrot.slane %v2309, 4
    %v2320 = vrot.slane %v2309, 5
    %v2322 = vrot.slane %v2309, 6
    %v2324 = vrot.slane %v2309, 7
    %v2326 = vrot.slane %v2308, 4
    %vm2328 = vcmask 1040384
    %v2329 = vsel %vm2328, %v2308, %v2311
    %v2330 = vsel %vm1250, %v2329, %v2313
    %vm2331 = vcmask 1042432
    %v2332 = vsel %vm2331, %v2330, %v2315
    %v2333 = vsel %vm1252, %v2332, %v2318
    %vm2334 = vcmask 1044480
    %v2335 = vsel %vm2334, %v2333, %v2320
    %v2336 = vsel %vm1254, %v2335, %v2322
    %vm2337 = vcmask 1046528
    %v2338 = vsel %vm2337, %v2336, %v2324
    %v2339 = vsel %vm2328, %v2311, %v2313
    %v2340 = vsel %vm1250, %v2339, %v2315
    %v2341 = vsel %vm2331, %v2340, %v2326
    %v2342 = vsel %vm1252, %v2341, %v2320
    %v2343 = vsel %vm2334, %v2342, %v2322
    %v2344 = vsel %vm1254, %v2343, %v2324
    %v2345 = vsel %vm2337, %v2344, %v2309
    %v2346 = vld [vmem:[%s15] sm:$0xff]
    %v2348 = vsel %vm125, %v2338, 0
    %v2351 = vsel %vm125, %v2346, 0
    %2353 = vmatprep.subr.mxu0 0.0
    %2354 = vmatpush1.xpose.msra.mxu0 0.0
    %2355 = vmatprep.subr.mxu0 0.0
    %2356 = vmatpush1.xpose.msra.mxu0 0.0
    %2357 = vmatprep.subr.mxu0 0.0
    %2358 = vmatpush1.xpose.msra.mxu0 0.0
    %2359 = vmatprep.subr.mxu0 0.0
    %2360 = vmatpush1.xpose.msra.mxu0 0.0
    %2361 = vmatprep.subr.mxu0 0.0
    %2362 = vmatpush1.xpose.msra.mxu0 0.0
    %2363 = vmatprep.subr.mxu0 0.0
    %2364 = vmatpush1.xpose.msra.mxu0 0.0
    %2365 = vmatprep.subr.mxu0 0.0
    %2366 = vmatpush1.xpose.msra.mxu0 0.0
    %2367 = vmatprep.subr.mxu0 0.0
    %2368 = vmatpush1.xpose.msra.mxu0 0.0
    %2369 = vmatprep.subr.mxu0 0.0
    %2370 = vmatpush1.xpose.msra.mxu0 0.0
    %2371 = vmatprep.subr.mxu0 0.0
    %2372 = vmatpush1.xpose.msra.mxu0 0.0
    %2373 = vmatprep.subr.mxu0 0.0
    %2374 = vmatpush1.xpose.msra.mxu0 0.0
    %2375 = vmatprep.subr.mxu0 0.0
    %2376 = vmatpush1.xpose.msra.mxu0 0.0
    %2377 = vmatprep.subr.mxu0 0.0
    %2378 = vmatpush1.xpose.msra.mxu0 0.0
    %2379 = vmatprep.subr.mxu0 0.0
    %2380 = vmatpush1.xpose.msra.mxu0 0.0
    %2381 = vmatprep.subr.mxu0 0.0
    %2382 = vmatpush1.xpose.msra.mxu0 0.0
    %2383 = vmatprep.subr.mxu0 0.0
    %2384 = vmatpush1.xpose.msra.mxu0 %v2351
    %2385 = vmatprep.subr.mxu0 0.0
    %2386 = vmatpush2.xpose.msra.mxu0 0.0
    %2387 = vmatprep.subr.mxu0 0.0
    %2388 = vmatpush2.xpose.msra.mxu0 0.0
    %2389 = vmatprep.subr.mxu0 0.0
    %2390 = vmatpush2.xpose.msra.mxu0 0.0
    %2391 = vmatprep.subr.mxu0 0.0
    %2392 = vmatpush2.xpose.msra.mxu0 0.0
    %2393 = vmatprep.subr.mxu0 0.0
    %2394 = vmatpush2.xpose.msra.mxu0 0.0
    %2395 = vmatprep.subr.mxu0 0.0
    %2396 = vmatpush2.xpose.msra.mxu0 0.0
    %2397 = vmatprep.subr.mxu0 0.0
    %2398 = vmatpush2.xpose.msra.mxu0 0.0
    %2399 = vmatprep.subr.mxu0 0.0
    %2400 = vmatpush2.xpose.msra.mxu0 0.0
    %2401 = vmatprep.subr.mxu0 0.0
    %2402 = vmatpush2.xpose.msra.mxu0 0.0
    %2403 = vmatprep.subr.mxu0 0.0
    %2404 = vmatpush2.xpose.msra.mxu0 0.0
    %2405 = vmatprep.subr.mxu0 0.0
    %2406 = vmatpush2.xpose.msra.mxu0 0.0
    %2407 = vmatprep.subr.mxu0 0.0
    %2408 = vmatpush2.xpose.msra.mxu0 0.0
    %2409 = vmatprep.subr.mxu0 0.0
    %2410 = vmatpush2.xpose.msra.mxu0 0.0
    %2411 = vmatprep.subr.mxu0 0.0
    %2412 = vmatpush2.xpose.msra.mxu0 0.0
    %2413 = vmatprep.subr.mxu0 0.0
    %2414 = vmatpush2.xpose.msra.mxu0 0.0
    %2415 = vmatprep.subr.mxu0 0.0
    %2416 = vmatpush2.xpose.msra.mxu0 0.0
    %2417 = vmatprep.mubr.f32.mxu0 0.0
    %2418 = vmatmul.mubr.f32.gmra.mxu0 %v2348
    %v2419 = vpop.f32.mrf.mxu0
    %v2420 = vadd.f32 0.0, %v2419
    %v2421 = vpop.f32.mrf.mxu0
    %2422 = vdwg.mxu0
    %vm2423 = vcmask 64512
    %v2424 = vsel %vm2423, %v2420, -inf
    %2425 = vmax.xlane.f32.xlu0 %v2424
    %v2426 = vpop.xlane.xlu0 %2425
    %v2427 = vsub.f32 %v2420, %v2426
    %v2428 = vmul.f32 %v2427, 1.442695
    %v2429 = vpow.pop %v2428
    %v2430 = vsel %vm2423, %v2429, 0.0
    %2431 = vadd.xlane.f32.xlu0 %v2430
    %v2432 = vpop.xlane.xlu0 %2431
    %v2433 = vrcp.pop %v2432
    %v2434 = vmul.f32 %v2429, %v2433
    %2435 = vst.msk [vmem:[#allocation12] sm:$0xff] %vm2423, %v2434
    %v2437 = vsel %vm2423, %v2434, 0
    %2439 = vmatprep.subr.mxu0 0.0
    %2440 = vmatpush1.msra.mxu0 0.0
    %2441 = vmatprep.subr.mxu0 0.0
    %2442 = vmatpush1.msra.mxu0 0.0
    %2443 = vmatprep.subr.mxu0 0.0
    %2444 = vmatpush1.msra.mxu0 0.0
    %2445 = vmatprep.subr.mxu0 0.0
    %2446 = vmatpush1.msra.mxu0 0.0
    %2447 = vmatprep.subr.mxu0 0.0
    %2448 = vmatpush1.msra.mxu0 0.0
    %2449 = vmatprep.subr.mxu0 0.0
    %2450 = vmatpush1.msra.mxu0 0.0
    %2451 = vmatprep.subr.mxu0 0.0
    %2452 = vmatpush1.msra.mxu0 0.0
    %2453 = vmatprep.subr.mxu0 0.0
    %2454 = vmatpush1.msra.mxu0 0.0
    %2455 = vmatprep.subr.mxu0 0.0
    %2456 = vmatpush1.msra.mxu0 0.0
    %2457 = vmatprep.subr.mxu0 0.0
    %2458 = vmatpush1.msra.mxu0 0.0
    %2459 = vmatprep.subr.mxu0 0.0
    %2460 = vmatpush1.msra.mxu0 0.0
    %2461 = vmatprep.subr.mxu0 0.0
    %2462 = vmatpush1.msra.mxu0 0.0
    %2463 = vmatprep.subr.mxu0 0.0
    %2464 = vmatpush1.msra.mxu0 0.0
    %2465 = vmatprep.subr.mxu0 0.0
    %2466 = vmatpush1.msra.mxu0 0.0
    %2467 = vmatprep.subr.mxu0 0.0
    %2468 = vmatpush1.msra.mxu0 0.0
    %2469 = vmatprep.subr.mxu0 0.0
    %2470 = vmatpush1.msra.mxu0 %v2346
    %2471 = vmatprep.subr.mxu0 0.0
    %2472 = vmatpush2.msra.mxu0 0.0
    %2473 = vmatprep.subr.mxu0 0.0
    %2474 = vmatpush2.msra.mxu0 0.0
    %2475 = vmatprep.subr.mxu0 0.0
    %2476 = vmatpush2.msra.mxu0 0.0
    %2477 = vmatprep.subr.mxu0 0.0
    %2478 = vmatpush2.msra.mxu0 0.0
    %2479 = vmatprep.subr.mxu0 0.0
    %2480 = vmatpush2.msra.mxu0 0.0
    %2481 = vmatprep.subr.mxu0 0.0
    %2482 = vmatpush2.msra.mxu0 0.0
    %2483 = vmatprep.subr.mxu0 0.0
    %2484 = vmatpush2.msra.mxu0 0.0
    %2485 = vmatprep.subr.mxu0 0.0
    %2486 = vmatpush2.msra.mxu0 0.0
    %2487 = vmatprep.subr.mxu0 0.0
    %2488 = vmatpush2.msra.mxu0 0.0
    %2489 = vmatprep.subr.mxu0 0.0
    %2490 = vmatpush2.msra.mxu0 0.0
    %2491 = vmatprep.subr.mxu0 0.0
    %2492 = vmatpush2.msra.mxu0 0.0
    %2493 = vmatprep.subr.mxu0 0.0
    %2494 = vmatpush2.msra.mxu0 0.0
    %2495 = vmatprep.subr.mxu0 0.0
    %2496 = vmatpush2.msra.mxu0 0.0
    %2497 = vmatprep.subr.mxu0 0.0
    %2498 = vmatpush2.msra.mxu0 0.0
    %2499 = vmatprep.subr.mxu0 0.0
    %2500 = vmatpush2.msra.mxu0 0.0
    %2501 = vmatprep.subr.mxu0 0.0
    %2502 = vmatpush2.msra.mxu0 0.0
    %2503 = vmatprep.mubr.f32.mxu0 0.0
    %2504 = vmatmul.mubr.f32.gmra.mxu0 %v2437
    %v2505 = vpop.f32.mrf.mxu0
    %v2506 = vadd.f32 0.0, %v2505
    %v2507 = vpop.f32.mrf.mxu0
    %2508 = vdwg.mxu0
    %s2509 = scalar_lea.vmem %s15, 8
    %v2510 = vld [vmem:[%s2509] sm:$0xff]
    %v2512 = vsel %vm125, %v2345, 0
    %v2515 = vsel %vm125, %v2510, 0
    %2517 = vmatprep.subr.mxu0 0.0
    %2518 = vmatpush1.xpose.msra.mxu0 0.0
    %2519 = vmatprep.subr.mxu0 0.0
    %2520 = vmatpush1.xpose.msra.mxu0 0.0
    %2521 = vmatprep.subr.mxu0 0.0
    %2522 = vmatpush1.xpose.msra.mxu0 0.0
    %2523 = vmatprep.subr.mxu0 0.0
    %2524 = vmatpush1.xpose.msra.mxu0 0.0
    %2525 = vmatprep.subr.mxu0 0.0
    %2526 = vmatpush1.xpose.msra.mxu0 0.0
    %2527 = vmatprep.subr.mxu0 0.0
    %2528 = vmatpush1.xpose.msra.mxu0 0.0
    %2529 = vmatprep.subr.mxu0 0.0
    %2530 = vmatpush1.xpose.msra.mxu0 0.0
    %2531 = vmatprep.subr.mxu0 0.0
    %2532 = vmatpush1.xpose.msra.mxu0 0.0
    %2533 = vmatprep.subr.mxu0 0.0
    %2534 = vmatpush1.xpose.msra.mxu0 0.0
    %2535 = vmatprep.subr.mxu0 0.0
    %2536 = vmatpush1.xpose.msra.mxu0 0.0
    %2537 = vmatprep.subr.mxu0 0.0
    %2538 = vmatpush1.xpose.msra.mxu0 0.0
    %2539 = vmatprep.subr.mxu0 0.0
    %2540 = vmatpush1.xpose.msra.mxu0 0.0
    %2541 = vmatprep.subr.mxu0 0.0
    %2542 = vmatpush1.xpose.msra.mxu0 0.0
    %2543 = vmatprep.subr.mxu0 0.0
    %2544 = vmatpush1.xpose.msra.mxu0 0.0
    %2545 = vmatprep.subr.mxu0 0.0
    %2546 = vmatpush1.xpose.msra.mxu0 0.0
    %2547 = vmatprep.subr.mxu0 0.0
    %2548 = vmatpush1.xpose.msra.mxu0 %v2515
    %2549 = vmatprep.subr.mxu0 0.0
    %2550 = vmatpush2.xpose.msra.mxu0 0.0
    %2551 = vmatprep.subr.mxu0 0.0
    %2552 = vmatpush2.xpose.msra.mxu0 0.0
    %2553 = vmatprep.subr.mxu0 0.0
    %2554 = vmatpush2.xpose.msra.mxu0 0.0
    %2555 = vmatprep.subr.mxu0 0.0
    %2556 = vmatpush2.xpose.msra.mxu0 0.0
    %2557 = vmatprep.subr.mxu0 0.0
    %2558 = vmatpush2.xpose.msra.mxu0 0.0
    %2559 = vmatprep.subr.mxu0 0.0
    %2560 = vmatpush2.xpose.msra.mxu0 0.0
    %2561 = vmatprep.subr.mxu0 0.0
    %2562 = vmatpush2.xpose.msra.mxu0 0.0
    %2563 = vmatprep.subr.mxu0 0.0
    %2564 = vmatpush2.xpose.msra.mxu0 0.0
    %2565 = vmatprep.subr.mxu0 0.0
    %2566 = vmatpush2.xpose.msra.mxu0 0.0
    %2567 = vmatprep.subr.mxu0 0.0
    %2568 = vmatpush2.xpose.msra.mxu0 0.0
    %2569 = vmatprep.subr.mxu0 0.0
    %2570 = vmatpush2.xpose.msra.mxu0 0.0
    %2571 = vmatprep.subr.mxu0 0.0
    %2572 = vmatpush2.xpose.msra.mxu0 0.0
    %2573 = vmatprep.subr.mxu0 0.0
    %2574 = vmatpush2.xpose.msra.mxu0 0.0
    %2575 = vmatprep.subr.mxu0 0.0
    %2576 = vmatpush2.xpose.msra.mxu0 0.0
    %2577 = vmatprep.subr.mxu0 0.0
    %2578 = vmatpush2.xpose.msra.mxu0 0.0
    %2579 = vmatprep.subr.mxu0 0.0
    %2580 = vmatpush2.xpose.msra.mxu0 0.0
    %2581 = vmatprep.mubr.f32.mxu0 0.0
    %2582 = vmatmul.mubr.f32.gmra.mxu0 %v2512
    %v2583 = vpop.f32.mrf.mxu0
    %v2584 = vadd.f32 0.0, %v2583
    %v2585 = vpop.f32.mrf.mxu0
    %2586 = vdwg.mxu0
    %v2587 = vsel %vm2423, %v2584, -inf
    %2588 = vmax.xlane.f32.xlu0 %v2587
    %v2589 = vpop.xlane.xlu0 %2588
    %v2590 = vsub.f32 %v2584, %v2589
    %v2591 = vmul.f32 %v2590, 1.442695
    %v2592 = vpow.pop %v2591
    %v2593 = vsel %vm2423, %v2592, 0.0
    %2594 = vadd.xlane.f32.xlu0 %v2593
    %v2595 = vpop.xlane.xlu0 %2594
    %v2596 = vrcp.pop %v2595
    %v2597 = vmul.f32 %v2592, %v2596
    %s2598 = scalar_lea.vmem [#allocation12], 8
    %2599 = vst.msk [vmem:[%s2598] sm:$0xff] %vm2423, %v2597
    %v2601 = vsel %vm2423, %v2597, 0
    %2603 = vmatprep.subr.mxu0 0.0
    %2604 = vmatpush1.msra.mxu0 0.0
    %2605 = vmatprep.subr.mxu0 0.0
    %2606 = vmatpush1.msra.mxu0 0.0
    %2607 = vmatprep.subr.mxu0 0.0
    %2608 = vmatpush1.msra.mxu0 0.0
    %2609 = vmatprep.subr.mxu0 0.0
    %2610 = vmatpush1.msra.mxu0 0.0
    %2611 = vmatprep.subr.mxu0 0.0
    %2612 = vmatpush1.msra.mxu0 0.0
    %2613 = vmatprep.subr.mxu0 0.0
    %2614 = vmatpush1.msra.mxu0 0.0
    %2615 = vmatprep.subr.mxu0 0.0
    %2616 = vmatpush1.msra.mxu0 0.0
    %2617 = vmatprep.subr.mxu0 0.0
    %2618 = vmatpush1.msra.mxu0 0.0
    %2619 = vmatprep.subr.mxu0 0.0
    %2620 = vmatpush1.msra.mxu0 0.0
    %2621 = vmatprep.subr.mxu0 0.0
    %2622 = vmatpush1.msra.mxu0 0.0
    %2623 = vmatprep.subr.mxu0 0.0
    %2624 = vmatpush1.msra.mxu0 0.0
    %2625 = vmatprep.subr.mxu0 0.0
    %2626 = vmatpush1.msra.mxu0 0.0
    %2627 = vmatprep.subr.mxu0 0.0
    %2628 = vmatpush1.msra.mxu0 0.0
    %2629 = vmatprep.subr.mxu0 0.0
    %2630 = vmatpush1.msra.mxu0 0.0
    %2631 = vmatprep.subr.mxu0 0.0
    %2632 = vmatpush1.msra.mxu0 0.0
    %2633 = vmatprep.subr.mxu0 0.0
    %2634 = vmatpush1.msra.mxu0 %v2510
    %2635 = vmatprep.subr.mxu0 0.0
    %2636 = vmatpush2.msra.mxu0 0.0
    %2637 = vmatprep.subr.mxu0 0.0
    %2638 = vmatpush2.msra.mxu0 0.0
    %2639 = vmatprep.subr.mxu0 0.0
    %2640 = vmatpush2.msra.mxu0 0.0
    %2641 = vmatprep.subr.mxu0 0.0
    %2642 = vmatpush2.msra.mxu0 0.0
    %2643 = vmatprep.subr.mxu0 0.0
    %2644 = vmatpush2.msra.mxu0 0.0
    %2645 = vmatprep.subr.mxu0 0.0
    %2646 = vmatpush2.msra.mxu0 0.0
    %2647 = vmatprep.subr.mxu0 0.0
    %2648 = vmatpush2.msra.mxu0 0.0
    %2649 = vmatprep.subr.mxu0 0.0
    %2650 = vmatpush2.msra.mxu0 0.0
    %2651 = vmatprep.subr.mxu0 0.0
    %2652 = vmatpush2.msra.mxu0 0.0
    %2653 = vmatprep.subr.mxu0 0.0
    %2654 = vmatpush2.msra.mxu0 0.0
    %2655 = vmatprep.subr.mxu0 0.0
    %2656 = vmatpush2.msra.mxu0 0.0
    %2657 = vmatprep.subr.mxu0 0.0
    %2658 = vmatpush2.msra.mxu0 0.0
    %2659 = vmatprep.subr.mxu0 0.0
    %2660 = vmatpush2.msra.mxu0 0.0
    %2661 = vmatprep.subr.mxu0 0.0
    %2662 = vmatpush2.msra.mxu0 0.0
    %2663 = vmatprep.subr.mxu0 0.0
    %2664 = vmatpush2.msra.mxu0 0.0
    %2665 = vmatprep.subr.mxu0 0.0
    %2666 = vmatpush2.msra.mxu0 0.0
    %2667 = vmatprep.mubr.f32.mxu0 0.0
    %2668 = vmatmul.mubr.f32.gmra.mxu0 %v2601
    %v2669 = vpop.f32.mrf.mxu0
    %v2670 = vadd.f32 0.0, %v2669
    %v2671 = vpop.f32.mrf.mxu0
    %2672 = vdwg.mxu0
    %v2673 = vld [vmem:[#allocation5] sm:$0xff]
    %v2674 = vld [vmem:[#allocation5 + $0x8] sm:$0xff]
    %v2675 = vld [vmem:[#allocation5 + $0x10] sm:$0xff]
    %v2676 = vld [vmem:[#allocation5 + $0x18] sm:$0xff]
    %v2677 = vld [vmem:[#allocation5 + $0x20] sm:$0xff]
    %v2678 = vld [vmem:[#allocation5 + $0x28] sm:$0xff]
    %v2679 = vld [vmem:[#allocation5 + $0x30] sm:$0xff]
    %v2680 = vld [vmem:[#allocation5 + $0x38] sm:$0xff]
    %v2681 = vld [vmem:[#allocation7] sm:$0xff]
    %v2682 = vld [vmem:[#allocation7 + $0x8] sm:$0xff]
    %v2683 = vld [vmem:[#allocation7 + $0x10] sm:$0xff]
    %v2684 = vld [vmem:[#allocation7 + $0x18] sm:$0xff]
    %v2685 = vld [vmem:[#allocation7 + $0x20] sm:$0xff]
    %v2686 = vld [vmem:[#allocation7 + $0x28] sm:$0xff]
    %v2687 = vld [vmem:[#allocation7 + $0x30] sm:$0xff]
    %v2688 = vld [vmem:[#allocation7 + $0x38] sm:$0xff]
    %2689 = vmatprep.subr.mxu0 0.0
    %2690 = vmatpush1.msra.mxu0 0.0
    %2691 = vmatprep.subr.mxu0 0.0
    %2692 = vmatpush1.msra.mxu0 0.0
    %2693 = vmatprep.subr.mxu0 0.0
    %2694 = vmatpush1.msra.mxu0 0.0
    %2695 = vmatprep.subr.mxu0 0.0
    %2696 = vmatpush1.msra.mxu0 0.0
    %2697 = vmatprep.subr.mxu0 0.0
    %2698 = vmatpush1.msra.mxu0 0.0
    %2699 = vmatprep.subr.mxu0 0.0
    %2700 = vmatpush1.msra.mxu0 0.0
    %2701 = vmatprep.subr.mxu0 0.0
    %2702 = vmatpush1.msra.mxu0 0.0
    %2703 = vmatprep.subr.mxu0 0.0
    %2704 = vmatpush1.msra.mxu0 0.0
    %2705 = vmatprep.subr.mxu0 0.0
    %2706 = vmatpush1.msra.mxu0 %v2688
    %2707 = vmatprep.subr.mxu0 0.0
    %2708 = vmatpush1.msra.mxu0 %v2687
    %2709 = vmatprep.subr.mxu0 0.0
    %2710 = vmatpush1.msra.mxu0 %v2686
    %2711 = vmatprep.subr.mxu0 0.0
    %2712 = vmatpush1.msra.mxu0 %v2685
    %2713 = vmatprep.subr.mxu0 0.0
    %2714 = vmatpush1.msra.mxu0 %v2684
    %2715 = vmatprep.subr.mxu0 0.0
    %2716 = vmatpush1.msra.mxu0 %v2683
    %2717 = vmatprep.subr.mxu0 0.0
    %2718 = vmatpush1.msra.mxu0 %v2682
    %2719 = vmatprep.subr.mxu0 0.0
    %2720 = vmatpush1.msra.mxu0 %v2681
    %2721 = vmatprep.subr.mxu0 0.0
    %2722 = vmatpush2.msra.mxu0 0.0
    %2723 = vmatprep.subr.mxu0 0.0
    %2724 = vmatpush2.msra.mxu0 0.0
    %2725 = vmatprep.subr.mxu0 0.0
    %2726 = vmatpush2.msra.mxu0 0.0
    %2727 = vmatprep.subr.mxu0 0.0
    %2728 = vmatpush2.msra.mxu0 0.0
    %2729 = vmatprep.subr.mxu0 0.0
    %2730 = vmatpush2.msra.mxu0 0.0
    %2731 = vmatprep.subr.mxu0 0.0
    %2732 = vmatpush2.msra.mxu0 0.0
    %2733 = vmatprep.subr.mxu0 0.0
    %2734 = vmatpush2.msra.mxu0 0.0
    %2735 = vmatprep.subr.mxu0 0.0
    %2736 = vmatpush2.msra.mxu0 0.0
    %2737 = vmatprep.subr.mxu0 0.0
    %2738 = vmatpush2.msra.mxu0 0.0
    %2739 = vmatprep.subr.mxu0 0.0
    %2740 = vmatpush2.msra.mxu0 0.0
    %2741 = vmatprep.subr.mxu0 0.0
    %2742 = vmatpush2.msra.mxu0 0.0
    %2743 = vmatprep.subr.mxu0 0.0
    %2744 = vmatpush2.msra.mxu0 0.0
    %2745 = vmatprep.subr.mxu0 0.0
    %2746 = vmatpush2.msra.mxu0 0.0
    %2747 = vmatprep.subr.mxu0 0.0
    %2748 = vmatpush2.msra.mxu0 0.0
    %2749 = vmatprep.subr.mxu0 0.0
    %2750 = vmatpush2.msra.mxu0 0.0
    %2751 = vmatprep.subr.mxu0 0.0
    %2752 = vmatpush2.msra.mxu0 0.0
    %2753 = vmatprep.mubr.f32.mxu0 0.0
    %2754 = vmatmul.mubr.f32.gmra.mxu0 %v2348
    %v2755 = vpop.f32.mrf.mxu0
    %v2756 = vadd.f32 0.0, %v2755
    %v2757 = vpop.f32.mrf.mxu0
    %2758 = vmatprep.mubr.f32.mxu0 0.0
    %2759 = vmatmul.mubr.f32.gmra.mxu0 %v2512
    %v2760 = vpop.f32.mrf.mxu0
    %v2761 = vadd.f32 0.0, %v2760
    %v2762 = vpop.f32.mrf.mxu0
    %2763 = vdwg.mxu0
    %v2765 = vsel %vm125, %v2506, 0
    %v2768 = vsel %vm125, %v2670, 0
    %2770 = vmatprep.subr.mxu0 0.0
    %2771 = vmatpush1.msra.mxu0 0.0
    %2772 = vmatprep.subr.mxu0 0.0
    %2773 = vmatpush1.msra.mxu0 0.0
    %2774 = vmatprep.subr.mxu0 0.0
    %2775 = vmatpush1.msra.mxu0 0.0
    %2776 = vmatprep.subr.mxu0 0.0
    %2777 = vmatpush1.msra.mxu0 0.0
    %2778 = vmatprep.subr.mxu0 0.0
    %2779 = vmatpush1.msra.mxu0 0.0
    %2780 = vmatprep.subr.mxu0 0.0
    %2781 = vmatpush1.msra.mxu0 0.0
    %2782 = vmatprep.subr.mxu0 0.0
    %2783 = vmatpush1.msra.mxu0 0.0
    %2784 = vmatprep.subr.mxu0 0.0
    %2785 = vmatpush1.msra.mxu0 0.0
    %2786 = vmatprep.subr.mxu0 0.0
    %2787 = vmatpush1.msra.mxu0 %v2680
    %2788 = vmatprep.subr.mxu0 0.0
    %2789 = vmatpush1.msra.mxu0 %v2679
    %2790 = vmatprep.subr.mxu0 0.0
    %2791 = vmatpush1.msra.mxu0 %v2678
    %2792 = vmatprep.subr.mxu0 0.0
    %2793 = vmatpush1.msra.mxu0 %v2677
    %2794 = vmatprep.subr.mxu0 0.0
    %2795 = vmatpush1.msra.mxu0 %v2676
    %2796 = vmatprep.subr.mxu0 0.0
    %2797 = vmatpush1.msra.mxu0 %v2675
    %2798 = vmatprep.subr.mxu0 0.0
    %2799 = vmatpush1.msra.mxu0 %v2674
    %2800 = vmatprep.subr.mxu0 0.0
    %2801 = vmatpush1.msra.mxu0 %v2673
    %2802 = vmatprep.subr.mxu0 0.0
    %2803 = vmatpush2.msra.mxu0 0.0
    %2804 = vmatprep.subr.mxu0 0.0
    %2805 = vmatpush2.msra.mxu0 0.0
    %2806 = vmatprep.subr.mxu0 0.0
    %2807 = vmatpush2.msra.mxu0 0.0
    %2808 = vmatprep.subr.mxu0 0.0
    %2809 = vmatpush2.msra.mxu0 0.0
    %2810 = vmatprep.subr.mxu0 0.0
    %2811 = vmatpush2.msra.mxu0 0.0
    %2812 = vmatprep.subr.mxu0 0.0
    %2813 = vmatpush2.msra.mxu0 0.0
    %2814 = vmatprep.subr.mxu0 0.0
    %2815 = vmatpush2.msra.mxu0 0.0
    %2816 = vmatprep.subr.mxu0 0.0
    %2817 = vmatpush2.msra.mxu0 0.0
    %2818 = vmatprep.subr.mxu0 0.0
    %2819 = vmatpush2.msra.mxu0 0.0
    %2820 = vmatprep.subr.mxu0 0.0
    %2821 = vmatpush2.msra.mxu0 0.0
    %2822 = vmatprep.subr.mxu0 0.0
    %2823 = vmatpush2.msra.mxu0 0.0
    %2824 = vmatprep.subr.mxu0 0.0
    %2825 = vmatpush2.msra.mxu0 0.0
    %2826 = vmatprep.subr.mxu0 0.0
    %2827 = vmatpush2.msra.mxu0 0.0
    %2828 = vmatprep.subr.mxu0 0.0
    %2829 = vmatpush2.msra.mxu0 0.0
    %2830 = vmatprep.subr.mxu0 0.0
    %2831 = vmatpush2.msra.mxu0 0.0
    %2832 = vmatprep.subr.mxu0 0.0
    %2833 = vmatpush2.msra.mxu0 0.0
    %2834 = vmatprep.mubr.f32.mxu0 0.0
    %2835 = vmatmul.mubr.f32.gmra.mxu0 %v2765
    %v2836 = vpop.f32.mrf.mxu0
    %v2837 = vadd.f32 %v2756, %v2836
    %v2838 = vpop.f32.mrf.mxu0
    %2839 = vmatprep.mubr.f32.mxu0 0.0
    %2840 = vmatmul.mubr.f32.gmra.mxu0 %v2768
    %v2841 = vpop.f32.mrf.mxu0
    %v2842 = vadd.f32 %v2761, %v2841
    %v2843 = vpop.f32.mrf.mxu0
    %2844 = vdwg.mxu0
    %v2845 = vld [vmem:[%s12] sm:$0x1]
    %v2847 = vlaneseq
    %v2848 = vshrl.u32 %v2847, 7
    %v2849 = vsub.s32 0, %v2848
    %v2850 = vrot.slane %v2845, %v2849
    %v2852 = vadd.f32 %v2837, %v2850
    %v2853 = vadd.f32 %v2842, %v2850
    %v2854 = vtanh.pop %v2852
    %v2855 = vtanh.pop %v2853
    %v2856 = vld [vmem:[%s13] sm:$0xff]
    %v2857 = vld [vmem:[%s13 + $0x8] sm:$0xff]
    %v2858 = vld [vmem:[%s13 + $0x10] sm:$0xff]
    %v2859 = vld [vmem:[%s13 + $0x18] sm:$0xff]
    %v2860 = vld [vmem:[%s13 + $0x20] sm:$0xff]
    %v2861 = vld [vmem:[%s13 + $0x28] sm:$0xff]
    %v2862 = vld [vmem:[%s13 + $0x30] sm:$0xff]
    %v2863 = vld [vmem:[%s13 + $0x38] sm:$0xff]
    %v2864 = vld [vmem:[%s14] sm:$0x1]
    %v2866 = vlaneseq
    %v2867 = vshrl.u32 %v2866, 7
    %v2868 = vsub.s32 0, %v2867
    %v2869 = vrot.slane %v2864, %v2868
    %v2872 = vsel %vm125, %v2854, 0
    %v2875 = vsel %vm125, %v2855, 0
    %2877 = vmatprep.subr.mxu0 0.0
    %2878 = vmatpush1.msra.mxu0 0.0
    %2879 = vmatprep.subr.mxu0 0.0
    %2880 = vmatpush1.msra.mxu0 0.0
    %2881 = vmatprep.subr.mxu0 0.0
    %2882 = vmatpush1.msra.mxu0 0.0
    %2883 = vmatprep.subr.mxu0 0.0
    %2884 = vmatpush1.msra.mxu0 0.0
    %2885 = vmatprep.subr.mxu0 0.0
    %2886 = vmatpush1.msra.mxu0 0.0
    %2887 = vmatprep.subr.mxu0 0.0
    %2888 = vmatpush1.msra.mxu0 0.0
    %2889 = vmatprep.subr.mxu0 0.0
    %2890 = vmatpush1.msra.mxu0 0.0
    %2891 = vmatprep.subr.mxu0 0.0
    %2892 = vmatpush1.msra.mxu0 0.0
    %2893 = vmatprep.subr.mxu0 0.0
    %2894 = vmatpush1.msra.mxu0 %v2863
    %2895 = vmatprep.subr.mxu0 0.0
    %2896 = vmatpush1.msra.mxu0 %v2862
    %2897 = vmatprep.subr.mxu0 0.0
    %2898 = vmatpush1.msra.mxu0 %v2861
    %2899 = vmatprep.subr.mxu0 0.0
    %2900 = vmatpush1.msra.mxu0 %v2860
    %2901 = vmatprep.subr.mxu0 0.0
    %2902 = vmatpush1.msra.mxu0 %v2859
    %2903 = vmatprep.subr.mxu0 0.0
    %2904 = vmatpush1.msra.mxu0 %v2858
    %2905 = vmatprep.subr.mxu0 0.0
    %2906 = vmatpush1.msra.mxu0 %v2857
    %2907 = vmatprep.subr.mxu0 0.0
    %2908 = vmatpush1.msra.mxu0 %v2856
    %2909 = vmatprep.subr.mxu0 0.0
    %2910 = vmatpush2.msra.mxu0 0.0
    %2911 = vmatprep.subr.mxu0 0.0
    %2912 = vmatpush2.msra.mxu0 0.0
    %2913 = vmatprep.subr.mxu0 0.0
    %2914 = vmatpush2.msra.mxu0 0.0
    %2915 = vmatprep.subr.mxu0 0.0
    %2916 = vmatpush2.msra.mxu0 0.0
    %2917 = vmatprep.subr.mxu0 0.0
    %2918 = vmatpush2.msra.mxu0 0.0
    %2919 = vmatprep.subr.mxu0 0.0
    %2920 = vmatpush2.msra.mxu0 0.0
    %2921 = vmatprep.subr.mxu0 0.0
    %2922 = vmatpush2.msra.mxu0 0.0
    %2923 = vmatprep.subr.mxu0 0.0
    %2924 = vmatpush2.msra.mxu0 0.0
    %2925 = vmatprep.subr.mxu0 0.0
    %2926 = vmatpush2.msra.mxu0 0.0
    %2927 = vmatprep.subr.mxu0 0.0
    %2928 = vmatpush2.msra.mxu0 0.0
    %2929 = vmatprep.subr.mxu0 0.0
    %2930 = vmatpush2.msra.mxu0 0.0
    %2931 = vmatprep.subr.mxu0 0.0
    %2932 = vmatpush2.msra.mxu0 0.0
    %2933 = vmatprep.subr.mxu0 0.0
    %2934 = vmatpush2.msra.mxu0 0.0
    %2935 = vmatprep.subr.mxu0 0.0
    %2936 = vmatpush2.msra.mxu0 0.0
    %2937 = vmatprep.subr.mxu0 0.0
    %2938 = vmatpush2.msra.mxu0 0.0
    %2939 = vmatprep.subr.mxu0 0.0
    %2940 = vmatpush2.msra.mxu0 0.0
    %2941 = vmatprep.mubr.f32.mxu0 0.0
    %2942 = vmatmul.mubr.f32.gmra.mxu0 %v2872
    %v2943 = vpop.f32.mrf.mxu0
    %v2944 = vadd.f32 %v2869, %v2943
    %v2945 = vpop.f32.mrf.mxu0
    %2946 = vmatprep.mubr.f32.mxu0 0.0
    %2947 = vmatmul.mubr.f32.gmra.mxu0 %v2875
    %v2948 = vpop.f32.mrf.mxu0
    %v2949 = vadd.f32 %v2869, %v2948
    %v2950 = vpop.f32.mrf.mxu0
    %2951 = vdwg.mxu0
    %2952 = vst [vmem:[#allocation8] sm:$0xff] %v2944
    %2953 = vst [vmem:[#allocation8 + $0x8] sm:$0xff] %v2949
    %vm2954 = vcmask 523270
    %2955 = vst.msk [vmem:[#allocation9 - $0x6] sm:$0xc0] %vm2954, %v2301
    %2957 = vrot.lane.b32.xlu0 %v2295, 64
    %v2958 = vpop.permute.xlu0 %2957
    %2960 = vst.msk [vmem:[#allocation11 - $0x6] sm:$0xc0] %vm2954, %v2958
    // Predicated region
    $region78: #{lstm_decoder_forward.1} parent=1 // pred_check
      _
    $region79: #{lstm_decoder_forward.1} parent=1 // pred_check_branch
      %2962 = sbr.rel (0) target = $region81
    $region80: #{lstm_decoder_forward.1} parent=1 // pred_region
      %s2964 = ssub.s32 256, 256
      %2965 = vsyncadd [#allocation4], %s2964
      %s2966 = sshll.u32 [#allocation8], 4
      %s2967 = int_to_ptr.vmem [resolvable:$true] %s2966
      %2972 = dma.vmem_to_hbm [thread:$0]  %s2967, 256, %s16, [#allocation4], 128, 128, 8
    $region81: #{lstm_decoder_forward.1} parent=1 // pred_fallthru
      _
    // Predicated region
    $region82: #{lstm_decoder_forward.1} parent=1 // pred_check
      _
    $region83: #{lstm_decoder_forward.1} parent=1 // pred_check_branch
      %2974 = sbr.rel (0) target = $region85
    $region84: #{lstm_decoder_forward.1} parent=1 // pred_region
      %s2976 = ssub.s32 32, 32
      %2977 = vsyncadd [#allocation10], %s2976
      %s2979 = sshll.u32 [#allocation9], 4
      %s2980 = int_to_ptr.vmem [resolvable:$true] %s2979
      %2982 = dma.vmem_to_hbm [thread:$0]  %s2980, 32, %s17, [#allocation10]
    $region85: #{lstm_decoder_forward.1} parent=1 // pred_fallthru
      _
    // Predicated region
    $region86: #{lstm_decoder_forward.1} parent=1 // pred_check
      _
    $region87: #{lstm_decoder_forward.1} parent=1 // pred_check_branch
      %2984 = sbr.rel (0) target = $region89
    $region88: #{lstm_decoder_forward.1} parent=1 // pred_region
      %s2986 = ssub.s32 32, 32
      %2987 = vsyncadd [#allocation10], %s2986
      %s2989 = sshll.u32 [#allocation11], 4
      %s2990 = int_to_ptr.vmem [resolvable:$true] %s2989
      %2992 = dma.vmem_to_hbm [thread:$0]  %s2990, 32, %s18, [#allocation10]
    $region89: #{lstm_decoder_forward.1} parent=1 // pred_fallthru
      _
    // Predicated region
    $region90: #{lstm_decoder_forward.1} parent=1 // pred_check
      _
    $region91: #{lstm_decoder_forward.1} parent=1 // pred_check_branch
      %2994 = sbr.rel (0) target = $region93
    $region92: #{lstm_decoder_forward.1} parent=1 // pred_region
      %s2996 = ssub.s32 256, 256
      %2997 = vsyncadd [#allocation13], %s2996
      %s2998 = sshll.u32 [#allocation12], 4
      %s2999 = int_to_ptr.vmem [resolvable:$true] %s2998
      %3004 = dma.vmem_to_hbm [thread:$0]  %s2999, 256, %s19, [#allocation13], 128, 128, 8
    $region93: #{lstm_decoder_forward.1} parent=1 // pred_fallthru
      _
    // Predicated region
    $region94: #{lstm_decoder_forward.1} parent=1 // pred_check
      _
    $region95: #{lstm_decoder_forward.1} parent=1 // pred_check_branch
      %3006 = sbr.rel (0) target = $region97
    $region96: #{lstm_decoder_forward.1} parent=1 // pred_region
      %3007 = dma.done [#allocation4], 256
    $region97: #{lstm_decoder_forward.1} parent=1 // pred_fallthru
      _
    // Predicated region
    $region98: #{lstm_decoder_forward.1} parent=1 // pred_check
      _
    $region99: #{lstm_decoder_forward.1} parent=1 // pred_check_branch
      %3009 = sbr.rel (0) target = $region101
    $region100: #{lstm_decoder_forward.1} parent=1 // pred_region
      %3010 = dma.done [#allocation10], 32
    $region101: #{lstm_decoder_forward.1} parent=1 // pred_fallthru
      _
    // Predicated region
    $region102: #{lstm_decoder_forward.1} parent=1 // pred_check
      _
    $region103: #{lstm_decoder_forward.1} parent=1 // pred_check_branch
      %3012 = sbr.rel (0) target = $region105
    $region104: #{lstm_decoder_forward.1} parent=1 // pred_region
      %3013 = dma.done [#allocation10], 32
    $region105: #{lstm_decoder_forward.1} parent=1 // pred_fallthru
      _
    // Predicated region
    $region106: #{lstm_decoder_forward.1} parent=1 // pred_check
      _
    $region107: #{lstm_decoder_forward.1} parent=1 // pred_check_branch
      %3015 = sbr.rel (0) target = $region109
    $region108: #{lstm_decoder_forward.1} parent=1 // pred_region
      %3016 = dma.done [#allocation13], 256
    $region109: #{lstm_decoder_forward.1} parent=1 // pred_fallthru
      _
    %3017 = vsyncpa [#allocation3], 1
    %3018 = vsyncpa [#allocation6], 1
    %3019 = vsyncpa [#allocation4], 1
    %3020 = vsyncpa [#allocation10], 1
    %3021 = vsyncpa [#allocation13], 1

</llo_original>
